<compile_context>
chip_gen: v7x
topology: tpu7x:2x2x1
jax: 0.10.0
libtpu: 0.0.40
codegen_flags: <defaults>
</compile_context>

<pallas_src>
import jax
import jax.numpy as jnp
from jax import lax
from jax.experimental import pallas as pl
from jax.experimental.pallas import tpu as pltpu

EPS = 1e-5


def _pick_row_tile(ho):
    # Prefer >= 4 row tiles (pipelining + bounded per-step VMEM), else >= 2,
    # else fall back to a single full-height tile (e.g. Ho = 7).
    for min_tiles in (4, 2):
        for th in (16, 14, 8, 7, 4):
            if ho % th == 0 and ho // th >= min_tiles:
                return th
    return ho


def make_bottleneck_kernel(H, W, Cin, width, Cout, stride, TH,
                           has_downsample, compute_dtype):
    Ho = (H + 2 - 3) // stride + 1
    Wo = (W + 2 - 3) // stride + 1
    # Parity-block sizes for the stride-2 layout (see bottleneck_pallas):
    # padded even rows/cols are stored first, then padded odd rows/cols, so all
    # stride-2 taps are contiguous slices.
    He = H // 2 + 1
    We = W // 2 + 1

    def kernel(*refs):
        if has_downsample:
            (x_ref, w1_ref, b1_ref, w2_ref, b2_ref, w3_ref, b3_ref,
             ws_ref, bs_ref, o_ref, pad_ref) = refs
        else:
            (x_ref, w1_ref, b1_ref, w2_ref, b2_ref, w3_ref, b3_ref,
             o_ref, pad_ref) = refs

        r = pl.program_id(1)

        # ---- conv1 (1x1) + bn1 + relu: once per image into padded scratch ----
        @pl.when(r == 0)
        def _():
            # Zero only the 1-pixel border; the interior is fully overwritten.
            zr = jnp.zeros((1, W + 2, width), pad_ref.dtype)
            zc = jnp.zeros((H + 2, 1, width), pad_ref.dtype)
            pad_ref[0:1, :, :] = zr
            pad_ref[H + 1:H + 2, :, :] = zr
            pad_ref[:, 0:1, :] = zc
            pad_ref[:, W + 1:W + 2, :] = zc
            x = x_ref[0]                                        # (H, W, Cin)
            h1 = jnp.dot(x.reshape(H * W, Cin), w1_ref[...],
                         preferred_element_type=jnp.float32)
            h1 = jnp.maximum(h1 + b1_ref[...], 0.0)             # (H*W, width)
            pad_ref[1:H + 1, 1:W + 1, :] = (
                h1.reshape(H, W, width).astype(pad_ref.dtype))

        row0 = r * TH                                           # output-row offset
        if TH & (TH - 1) == 0:
            row0 = pl.multiple_of(row0, TH)

        # ---- conv2 (3x3, stride, pad=1) + bn2 + relu --------------------------
        # Three dy-group matmuls (K = 3*width) accumulated in f32 instead of a
        # single 9-tap im2col.
        if stride == 1:
            win = pad_ref[pl.ds(row0, TH + 2), :, :]            # (TH+2, W+2, width)
            bands = (win[0:TH], win[1:TH + 1], win[2:TH + 2])   # dy = 0, 1, 2
            col0 = (0, 1, 2)                                    # dx = 0, 1, 2
        else:
            win_e = pad_ref[pl.ds(row0, TH + 1), :, :]          # even pad rows
            win_o = pad_ref[pl.ds(He + row0, TH), :, :]         # odd pad rows
            bands = (win_e[0:TH], win_o, win_e[1:TH + 1])       # dy = 0, 1, 2
            col0 = (0, We, 1)                                   # dx = 0, 1, 2

        acc2 = None
        for dy in range(3):
            band = bands[dy]
            taps = [band[:, c:c + Wo, :] for c in col0]         # 3 x (TH, Wo, width)
            g = jnp.concatenate(taps, axis=-1).reshape(TH * Wo, 3 * width)
            part = jnp.dot(g, w2_ref[dy], preferred_element_type=jnp.float32)
            acc2 = part if acc2 is None else acc2 + part
        h2 = jnp.maximum(acc2 + b2_ref[...], 0.0)               # (TH*Wo, width) f32

        # ---- conv3 (1x1) + bn3 -------------------------------------------------
        h3 = jnp.dot(h2.astype(compute_dtype), w3_ref[...],
                     preferred_element_type=jnp.float32) + b3_ref[...]

        # ---- shortcut ------------------------------------------------------------
        if stride == 1:
            xs = x_ref[0, pl.ds(row0, TH), :, :]                # (TH, W=Wo, Cin)
        else:
            # Original even rows/cols live at offsets (He-1, We-1) of the
            # parity-permuted x -> contiguous slice, no strided access.
            xr = x_ref[0, pl.ds((He - 1) + row0, TH), :, :]     # (TH, W, Cin)
            xs = xr[:, We - 1:We - 1 + Wo, :]
        xs2 = xs.reshape(TH * Wo, Cin)
        if has_downsample:
            sc = jnp.dot(xs2, ws_ref[...],
                         preferred_element_type=jnp.float32) + bs_ref[...]
        else:
            sc = xs2.astype(jnp.float32)                        # identity shortcut

        # ---- residual add + relu, plain NHWC store -------------------------------
        out = jnp.maximum(h3 + sc, 0.0)                         # (TH*Wo, Cout) f32
        o_ref[0] = out.reshape(TH, Wo, Cout).astype(o_ref.dtype)

    return kernel


def bottleneck_pallas(x_nhwc, p, stride, *, compute_dtype=jnp.float32,
                      out_dtype=jnp.float32, has_downsample=True,
                      vmem_limit_bytes=None):
    N, H, W, Cin = x_nhwc.shape
    width = p["w1"].shape[1]
    Cout = p["w3"].shape[1]
    Ho = (H + 2 - 3) // stride + 1
    Wo = (W + 2 - 3) // stride + 1
    TH = _pick_row_tile(Ho)
    R = Ho // TH

    kernel = make_bottleneck_kernel(H, W, Cin, width, Cout, stride, TH,
                                    has_downsample, compute_dtype)

    cdt = compute_dtype
    f32 = jnp.float32

    # Stride-2 blocks: spatially parity-permute x on the host (odd rows/cols
    # first, then even).  conv1 is pointwise, so its in-kernel output lands in
    # a parity-blocked padded scratch; all stride-2 taps + the strided shortcut
    # become contiguous slices inside the kernel.
    if stride == 2:
        assert H % 2 == 0 and W % 2 == 0, "stride-2 path needs even H, W"
        # TODO(synk): odd spatial sizes with stride 2 would need a padded parity split.
        xk = jnp.concatenate([x_nhwc[:, 1::2], x_nhwc[:, 0::2]], axis=1)
        xk = jnp.concatenate([xk[:, :, 1::2], xk[:, :, 0::2]], axis=2)
    else:
        xk = x_nhwc

    # Fold BN scales into the conv weights (outside the kernel); biases stay f32.
    w1 = (p["w1"] * p["s1"]).astype(cdt)                          # (Cin, width)
    w2 = (p["w2"].reshape(3, 3 * width, width) * p["s2"]).astype(cdt)
    w3 = (p["w3"] * p["s3"]).astype(cdt)                          # (width, Cout)

    args = [xk.astype(cdt),
            w1, p["b1"].astype(f32),
            w2, p["b2"].astype(f32),
            w3, p["b3"].astype(f32)]
    if has_downsample:
        args += [(p["ws"] * p["ss"]).astype(cdt), p["bs"].astype(f32)]

    def build_specs(single_buffer_weights):
        def cspec(shape):
            nd = len(shape)
            idx = lambda n, r: (0,) * nd
            if single_buffer_weights:
                # Constant-index weights/biases: double buffering is pure VMEM waste.
                return pl.BlockSpec(shape, idx, pipeline_mode=pl.Buffered(1))
            return pl.BlockSpec(shape, idx)
        specs = [pl.BlockSpec((1, H, W, Cin), lambda n, r: (n, 0, 0, 0)),
                 cspec((Cin, width)), cspec((1, width)),
                 cspec((3, 3 * width, width)), cspec((1, width)),
                 cspec((width, Cout)), cspec((1, Cout))]
        if has_downsample:
            specs += [cspec((Cin, Cout)), cspec((1, Cout))]
        return specs

    def run(single_buffer_weights):
        return pl.pallas_call(
            kernel,
            out_shape=jax.ShapeDtypeStruct((N, Ho, Wo, Cout), out_dtype),
            grid=(N, R),
            in_specs=build_specs(single_buffer_weights),
            out_specs=pl.BlockSpec((1, TH, Wo, Cout), lambda n, r: (n, r, 0, 0)),
            scratch_shapes=[pltpu.VMEM((H + 2, W + 2, width), cdt)],
            compiler_params=pltpu.CompilerParams(
                # Batch axis is independent (megacore); the row-tile axis carries
                # the per-image padded-h1 scratch -> arbitrary.
                # TODO(synk): for v7x with N=1, recompute conv1 per row tile with a
                # halo so the r axis can also be marked parallel.
                dimension_semantics=("parallel", "arbitrary"),
                vmem_limit_bytes=vmem_limit_bytes),
        )(*args)

    try:
        return run(True)
    except Exception:
        # Fallback if single-buffered (pl.Buffered(1)) block specs are unsupported.
        return run(False)


def bottleneck_ref(x_nhwc, p, stride, has_downsample=True):
    """Pure-JAX reference using lax.conv_general_dilated (NHWC, high precision)."""
    def conv(x, w_hwio, s, pad):
        return lax.conv_general_dilated(
            x, w_hwio, (s, s), pad,
            dimension_numbers=("NHWC", "HWIO", "NHWC"),
            precision=lax.Precision.HIGHEST)
    h = conv(x_nhwc, p["w1_hwio"], 1, "VALID")
    h = jnp.maximum(h * p["s1"] + p["b1"], 0.0)
    h = conv(h, p["w2_hwio"], stride, [(1, 1), (1, 1)])
    h = jnp.maximum(h * p["s2"] + p["b2"], 0.0)
    h = conv(h, p["w3_hwio"], 1, "VALID")
    h = h * p["s3"] + p["b3"]
    if has_downsample:
        sc = conv(x_nhwc, p["ws_hwio"], stride, "VALID")
        sc = sc * p["ss"] + p["bs"]
    else:
        sc = x_nhwc
    return jnp.maximum(h + sc, 0.0)


def fold_bn(gamma, beta, mean, var):
    scale = gamma / jnp.sqrt(var + EPS)
    bias = beta - mean * scale
    return scale[None, :], bias[None, :]


def make_params(key, in_planes, planes, groups=1, base_width=64):
    expansion = 4
    width = int(planes * (base_width / 64.0)) * groups
    cout = planes * expansion
    ks = jax.random.split(key, 20)

    def bn(k, c):
        k0, k1, k2, k3 = jax.random.split(k, 4)
        gamma = jax.random.uniform(k0, (c,), jnp.float32, 0.5, 1.5)
        beta = jax.random.normal(k1, (c,), jnp.float32) * 0.1
        mean = jax.random.normal(k2, (c,), jnp.float32) * 0.1
        var = jax.random.uniform(k3, (c,), jnp.float32, 0.5, 1.5)
        # TODO(synk): PyTorch BatchNorm2d in training mode uses batch stats;
        # here we reproduce eval-mode semantics with folded scale/bias.
        return fold_bn(gamma, beta, mean, var)

    # PyTorch conv weights are OIHW; build them then convert.
    w1_oihw = jax.random.normal(ks[0], (width, in_planes, 1, 1), jnp.float32) * 0.2
    w2_oihw = jax.random.normal(ks[1], (width, width, 3, 3), jnp.float32) * 0.1
    w3_oihw = jax.random.normal(ks[2], (cout, width, 1, 1), jnp.float32) * 0.2
    ws_oihw = jax.random.normal(ks[3], (cout, in_planes, 1, 1), jnp.float32) * 0.2

    s1, b1 = bn(ks[4], width)
    s2, b2 = bn(ks[5], width)
    s3, b3 = bn(ks[6], cout)
    ss, bs = bn(ks[7], cout)

    return dict(
        # matmul-form weights for the Pallas kernel
        w1=w1_oihw[:, :, 0, 0].T,                       # (Cin, width)
        w2=jnp.transpose(w2_oihw, (2, 3, 1, 0)),        # (3, 3, width, width) HWIO
        w3=w3_oihw[:, :, 0, 0].T,                       # (width, Cout)
        ws=ws_oihw[:, :, 0, 0].T,                       # (Cin, Cout)
        # HWIO weights for the lax reference
        w1_hwio=jnp.transpose(w1_oihw, (2, 3, 1, 0)),
        w2_hwio=jnp.transpose(w2_oihw, (2, 3, 1, 0)),
        w3_hwio=jnp.transpose(w3_oihw, (2, 3, 1, 0)),
        ws_hwio=jnp.transpose(ws_oihw, (2, 3, 1, 0)),
        s1=s1, b1=b1, s2=s2, b2=b2, s3=s3, b3=b3, ss=ss, bs=bs,
    )


if __name__ == "__main__":
    key = jax.random.PRNGKey(0)

    def run_case(idx, in_planes, planes, stride, compute_dtype, atol, rtol,
                 N=2, H=16, W=16):
        kx, kp = jax.random.split(jax.random.fold_in(key, idx))
        x_nchw = jax.random.normal(kx, (N, in_planes, H, W), jnp.float32)
        x_nhwc = jnp.transpose(x_nchw, (0, 2, 3, 1))
        params = make_params(kp, in_planes, planes)
        has_ds = (stride != 1) or (in_planes != 4 * planes)  # PyTorch rule
        out = jax.block_until_ready(
            bottleneck_pallas(x_nhwc, params, stride,
                              compute_dtype=compute_dtype,
                              has_downsample=has_ds))
        ref = jax.block_until_ready(
            bottleneck_ref(x_nhwc, params, stride, has_downsample=has_ds))
        assert out.shape == ref.shape, (idx, out.shape, ref.shape)
        err = float(jnp.max(jnp.abs(out - ref)))
        assert jnp.allclose(out, ref, atol=atol, rtol=rtol), (idx, err)

    # 1) Bottleneck(4, 4), stride 1, projected shortcut (in_planes != 4*planes).
    run_case(0, 4, 4, 1, jnp.float32, 2e-2, 2e-2)
    # 2) Same block with bf16 MXU inputs / f32 accumulation (perf mode).
    run_case(1, 4, 4, 1, jnp.bfloat16, 1e-1, 1e-1)
    # 3) Stride-2 downsampling block (parity-permuted, contiguous-tap path).
    run_case(2, 4, 4, 2, jnp.float32, 2e-2, 2e-2)
    # 4) Identity-shortcut block (in_planes == 4*planes, stride 1).
    run_case(3, 16, 4, 1, jnp.float32, 2e-2, 2e-2)

    print("KERNEL_OK")
</pallas_src>

<mosaic_0001>
module attributes {stable_mosaic.version = 11 : i64} {
  func.func @kernel(%arg0: i32, %arg1: i32, %arg2: memref<1x16x16x4xf32, #tpu.memory_space<vmem>>, %arg3: memref<4x4xf32, #tpu.memory_space<vmem>>, %arg4: memref<1x4xf32, #tpu.memory_space<vmem>>, %arg5: memref<3x12x4xf32, #tpu.memory_space<vmem>>, %arg6: memref<1x4xf32, #tpu.memory_space<vmem>>, %arg7: memref<4x16xf32, #tpu.memory_space<vmem>>, %arg8: memref<1x16xf32, #tpu.memory_space<vmem>>, %arg9: memref<4x16xf32, #tpu.memory_space<vmem>>, %arg10: memref<1x16xf32, #tpu.memory_space<vmem>>, %arg11: memref<1x4x16x16xf32, #tpu.memory_space<vmem>>, %arg12: memref<18x18x4xf32, #tpu.memory_space<vmem>>) attributes {dimension_semantics = [#tpu.dimension_semantics<parallel>, #tpu.dimension_semantics<arbitrary>], iteration_bounds = array<i64: 2, 4>, scalar_prefetch = 0 : i64, scratch_operands = 1 : i64, tpu.core_type = #tpu.core_type<tc>, window_params = [{transform_indices = @transform_0, window_bounds = array<i64: 1, 16, 16, 4>}, {pipeline_mode = #tpu.pipeline_mode<synchronous>, transform_indices = @transform_1, window_bounds = array<i64: 4, 4>}, {pipeline_mode = #tpu.pipeline_mode<synchronous>, transform_indices = @transform_2, window_bounds = array<i64: 1, 4>}, {pipeline_mode = #tpu.pipeline_mode<synchronous>, transform_indices = @transform_3, window_bounds = array<i64: 3, 12, 4>}, {pipeline_mode = #tpu.pipeline_mode<synchronous>, transform_indices = @transform_4, window_bounds = array<i64: 1, 4>}, {pipeline_mode = #tpu.pipeline_mode<synchronous>, transform_indices = @transform_5, window_bounds = array<i64: 4, 16>}, {pipeline_mode = #tpu.pipeline_mode<synchronous>, transform_indices = @transform_6, window_bounds = array<i64: 1, 16>}, {pipeline_mode = #tpu.pipeline_mode<synchronous>, transform_indices = @transform_7, window_bounds = array<i64: 4, 16>}, {pipeline_mode = #tpu.pipeline_mode<synchronous>, transform_indices = @transform_8, window_bounds = array<i64: 1, 16>}, {transform_indices = @transform_9, window_bounds = array<i64: 1, 4, 16, 16>}]} {
    %c0_i32 = arith.constant 0 : i32
    %0 = arith.cmpi eq, %arg1, %c0_i32 : i32
    %1 = arith.extui %0 : i1 to i32
    %c0_i32_0 = arith.constant 0 : i32
    %2 = arith.cmpi ne, %1, %c0_i32_0 : i32
    scf.if %2 {
      %cst_32 = arith.constant 0.000000e+00 : f32
      %62 = vector.broadcast %cst_32 : f32 to vector<1x18x4xf32>
      %cst_33 = arith.constant 0.000000e+00 : f32
      %63 = vector.broadcast %cst_33 : f32 to vector<18x1x4xf32>
      %c0_34 = arith.constant 0 : index
      %c0_35 = arith.constant 0 : index
      %c0_36 = arith.constant 0 : index
      %64 = vector.load %arg12[%c0_34, %c0_35, %c0_36] : memref<18x18x4xf32, #tpu.memory_space<vmem>>, vector<1x18x4xf32>
      tpu.vector_store %arg12[%c0_34, %c0_35, %c0_36], %62 {strides = array<i32>} : memref<18x18x4xf32, #tpu.memory_space<vmem>>, vector<1x18x4xf32>,
      %c17 = arith.constant 17 : index
      %c0_37 = arith.constant 0 : index
      %c0_38 = arith.constant 0 : index
      %65 = vector.load %arg12[%c17, %c0_37, %c0_38] : memref<18x18x4xf32, #tpu.memory_space<vmem>>, vector<1x18x4xf32>
      tpu.vector_store %arg12[%c17, %c0_37, %c0_38], %62 {strides = array<i32>} : memref<18x18x4xf32, #tpu.memory_space<vmem>>, vector<1x18x4xf32>,
      %c0_39 = arith.constant 0 : index
      %c0_40 = arith.constant 0 : index
      %c0_41 = arith.constant 0 : index
      %66 = vector.load %arg12[%c0_39, %c0_40, %c0_41] : memref<18x18x4xf32, #tpu.memory_space<vmem>>, vector<18x1x4xf32>
      tpu.vector_store %arg12[%c0_39, %c0_40, %c0_41], %63 {strides = array<i32>} : memref<18x18x4xf32, #tpu.memory_space<vmem>>, vector<18x1x4xf32>,
      %c0_42 = arith.constant 0 : index
      %c17_43 = arith.constant 17 : index
      %c0_44 = arith.constant 0 : index
      %67 = vector.load %arg12[%c0_42, %c17_43, %c0_44] : memref<18x18x4xf32, #tpu.memory_space<vmem>>, vector<18x1x4xf32>
      tpu.vector_store %arg12[%c0_42, %c17_43, %c0_44], %63 {strides = array<i32>} : memref<18x18x4xf32, #tpu.memory_space<vmem>>, vector<18x1x4xf32>,
      %c0_45 = arith.constant 0 : index
      %c0_46 = arith.constant 0 : index
      %c0_47 = arith.constant 0 : index
      %c0_48 = arith.constant 0 : index
      %68 = vector.load %arg2[%c0_45, %c0_46, %c0_47, %c0_48] : memref<1x16x16x4xf32, #tpu.memory_space<vmem>>, vector<1x16x16x4xf32>
      %69 = vector.shape_cast %68 : vector<1x16x16x4xf32> to vector<16x16x4xf32>
      %70 = vector.shape_cast %69 : vector<16x16x4xf32> to vector<256x4xf32>
      %c0_49 = arith.constant 0 : index
      %c0_50 = arith.constant 0 : index
      %71 = vector.load %arg3[%c0_49, %c0_50] : memref<4x4xf32, #tpu.memory_space<vmem>>, vector<4x4xf32>
      %cst_51 = arith.constant dense<0.000000e+00> : vector<256x4xf32>
      %72 = tpu.matmul %70, %71, %cst_51 {dimension_numbers = #tpu.dot_dimension_numbers<[1], [0], [0], [1], [0, 0, 1, 1], [], []>} : vector<256x4xf32>, vector<4x4xf32>, vector<256x4xf32> -> vector<256x4xf32>
      %c0_52 = arith.constant 0 : index
      %c0_53 = arith.constant 0 : index
      %73 = vector.load %arg4[%c0_52, %c0_53] : memref<1x4xf32, #tpu.memory_space<vmem>>, vector<1x4xf32>
      %74 = vector.broadcast %73 : vector<1x4xf32> to vector<256x4xf32>
      %75 = arith.addf %72, %74 : vector<256x4xf32>
      %cst_54 = arith.constant 0.000000e+00 : f32
      %76 = vector.broadcast %cst_54 : f32 to vector<256x4xf32>
      %77 = arith.maximumf %75, %76 : vector<256x4xf32>
      %78 = vector.shape_cast %77 : vector<256x4xf32> to vector<16x16x4xf32>
      %c1_55 = arith.constant 1 : index
      %c1_56 = arith.constant 1 : index
      %c0_57 = arith.constant 0 : index
      %79 = vector.load %arg12[%c1_55, %c1_56, %c0_57] : memref<18x18x4xf32, #tpu.memory_space<vmem>>, vector<16x16x4xf32>
      tpu.vector_store %arg12[%c1_55, %c1_56, %c0_57], %78 {strides = array<i32>} : memref<18x18x4xf32, #tpu.memory_space<vmem>>, vector<16x16x4xf32>,
    } else {
    }
    %c4_i32 = arith.constant 4 : i32
    %3 = arith.muli %arg1, %c4_i32 : i32
    %4 = tpu.assume_multiple %3, 4 : i32
    %5 = arith.index_cast %4 : i32 to index
    %c0 = arith.constant 0 : index
    %c0_1 = arith.constant 0 : index
    %6 = vector.load %arg12[%5, %c0, %c0_1] : memref<18x18x4xf32, #tpu.memory_space<vmem>>, vector<6x18x4xf32>
    %7 = vector.extract_strided_slice %6 {offsets = [0, 0, 0], sizes = [4, 18, 4], strides = [1, 1, 1]} : vector<6x18x4xf32> to vector<4x18x4xf32>
    %8 = vector.extract_strided_slice %6 {offsets = [1, 0, 0], sizes = [4, 18, 4], strides = [1, 1, 1]} : vector<6x18x4xf32> to vector<4x18x4xf32>
    %9 = vector.extract_strided_slice %6 {offsets = [2, 0, 0], sizes = [4, 18, 4], strides = [1, 1, 1]} : vector<6x18x4xf32> to vector<4x18x4xf32>
    %10 = vector.extract_strided_slice %7 {offsets = [0, 0, 0], sizes = [4, 16, 4], strides = [1, 1, 1]} : vector<4x18x4xf32> to vector<4x16x4xf32>
    %11 = vector.extract_strided_slice %7 {offsets = [0, 1, 0], sizes = [4, 16, 4], strides = [1, 1, 1]} : vector<4x18x4xf32> to vector<4x16x4xf32>
    %12 = vector.extract_strided_slice %7 {offsets = [0, 2, 0], sizes = [4, 16, 4], strides = [1, 1, 1]} : vector<4x18x4xf32> to vector<4x16x4xf32>
    %13 = tpu.concatenate %10, %11, %12 in 2 : vector<4x16x4xf32>, vector<4x16x4xf32>, vector<4x16x4xf32> -> vector<4x16x12xf32>
    %14 = vector.shape_cast %13 : vector<4x16x12xf32> to vector<64x12xf32>
    %c0_2 = arith.constant 0 : index
    %c0_3 = arith.constant 0 : index
    %c0_4 = arith.constant 0 : index
    %15 = vector.load %arg5[%c0_2, %c0_3, %c0_4] : memref<3x12x4xf32, #tpu.memory_space<vmem>>, vector<1x12x4xf32>
    %16 = vector.shape_cast %15 : vector<1x12x4xf32> to vector<12x4xf32>
    %cst = arith.constant dense<0.000000e+00> : vector<64x4xf32>
    %17 = tpu.matmul %14, %16, %cst {dimension_numbers = #tpu.dot_dimension_numbers<[1], [0], [0], [1], [0, 0, 1, 1], [], []>} : vector<64x12xf32>, vector<12x4xf32>, vector<64x4xf32> -> vector<64x4xf32>
    %18 = vector.extract_strided_slice %8 {offsets = [0, 0, 0], sizes = [4, 16, 4], strides = [1, 1, 1]} : vector<4x18x4xf32> to vector<4x16x4xf32>
    %19 = vector.extract_strided_slice %8 {offsets = [0, 1, 0], sizes = [4, 16, 4], strides = [1, 1, 1]} : vector<4x18x4xf32> to vector<4x16x4xf32>
    %20 = vector.extract_strided_slice %8 {offsets = [0, 2, 0], sizes = [4, 16, 4], strides = [1, 1, 1]} : vector<4x18x4xf32> to vector<4x16x4xf32>
    %21 = tpu.concatenate %18, %19, %20 in 2 : vector<4x16x4xf32>, vector<4x16x4xf32>, vector<4x16x4xf32> -> vector<4x16x12xf32>
    %22 = vector.shape_cast %21 : vector<4x16x12xf32> to vector<64x12xf32>
    %c1 = arith.constant 1 : index
    %c0_5 = arith.constant 0 : index
    %c0_6 = arith.constant 0 : index
    %23 = vector.load %arg5[%c1, %c0_5, %c0_6] : memref<3x12x4xf32, #tpu.memory_space<vmem>>, vector<1x12x4xf32>
    %24 = vector.shape_cast %23 : vector<1x12x4xf32> to vector<12x4xf32>
    %cst_7 = arith.constant dense<0.000000e+00> : vector<64x4xf32>
    %25 = tpu.matmul %22, %24, %cst_7 {dimension_numbers = #tpu.dot_dimension_numbers<[1], [0], [0], [1], [0, 0, 1, 1], [], []>} : vector<64x12xf32>, vector<12x4xf32>, vector<64x4xf32> -> vector<64x4xf32>
    %26 = arith.addf %17, %25 : vector<64x4xf32>
    %27 = vector.extract_strided_slice %9 {offsets = [0, 0, 0], sizes = [4, 16, 4], strides = [1, 1, 1]} : vector<4x18x4xf32> to vector<4x16x4xf32>
    %28 = vector.extract_strided_slice %9 {offsets = [0, 1, 0], sizes = [4, 16, 4], strides = [1, 1, 1]} : vector<4x18x4xf32> to vector<4x16x4xf32>
    %29 = vector.extract_strided_slice %9 {offsets = [0, 2, 0], sizes = [4, 16, 4], strides = [1, 1, 1]} : vector<4x18x4xf32> to vector<4x16x4xf32>
    %30 = tpu.concatenate %27, %28, %29 in 2 : vector<4x16x4xf32>, vector<4x16x4xf32>, vector<4x16x4xf32> -> vector<4x16x12xf32>
    %31 = vector.shape_cast %30 : vector<4x16x12xf32> to vector<64x12xf32>
    %c2 = arith.constant 2 : index
    %c0_8 = arith.constant 0 : index
    %c0_9 = arith.constant 0 : index
    %32 = vector.load %arg5[%c2, %c0_8, %c0_9] : memref<3x12x4xf32, #tpu.memory_space<vmem>>, vector<1x12x4xf32>
    %33 = vector.shape_cast %32 : vector<1x12x4xf32> to vector<12x4xf32>
    %cst_10 = arith.constant dense<0.000000e+00> : vector<64x4xf32>
    %34 = tpu.matmul %31, %33, %cst_10 {dimension_numbers = #tpu.dot_dimension_numbers<[1], [0], [0], [1], [0, 0, 1, 1], [], []>} : vector<64x12xf32>, vector<12x4xf32>, vector<64x4xf32> -> vector<64x4xf32>
    %35 = arith.addf %26, %34 : vector<64x4xf32>
    %c0_11 = arith.constant 0 : index
    %c0_12 = arith.constant 0 : index
    %36 = vector.load %arg6[%c0_11, %c0_12] : memref<1x4xf32, #tpu.memory_space<vmem>>, vector<1x4xf32>
    %37 = vector.broadcast %36 : vector<1x4xf32> to vector<64x4xf32>
    %38 = arith.addf %35, %37 : vector<64x4xf32>
    %cst_13 = arith.constant 0.000000e+00 : f32
    %39 = vector.broadcast %cst_13 : f32 to vector<64x4xf32>
    %40 = arith.maximumf %38, %39 : vector<64x4xf32>
    %c0_14 = arith.constant 0 : index
    %c0_15 = arith.constant 0 : index
    %41 = vector.load %arg7[%c0_14, %c0_15] : memref<4x16xf32, #tpu.memory_space<vmem>>, vector<4x16xf32>
    %cst_16 = arith.constant dense<0.000000e+00> : vector<64x16xf32>
    %42 = tpu.matmul %40, %41, %cst_16 {dimension_numbers = #tpu.dot_dimension_numbers<[1], [0], [0], [1], [0, 0, 1, 1], [], []>} : vector<64x4xf32>, vector<4x16xf32>, vector<64x16xf32> -> vector<64x16xf32>
    %c0_17 = arith.constant 0 : index
    %c0_18 = arith.constant 0 : index
    %43 = vector.load %arg8[%c0_17, %c0_18] : memref<1x16xf32, #tpu.memory_space<vmem>>, vector<1x16xf32>
    %44 = vector.broadcast %43 : vector<1x16xf32> to vector<64x16xf32>
    %45 = arith.addf %42, %44 : vector<64x16xf32>
    %c0_19 = arith.constant 0 : index
    %46 = arith.index_cast %4 : i32 to index
    %c0_20 = arith.constant 0 : index
    %c0_21 = arith.constant 0 : index
    %47 = vector.load %arg2[%c0_19, %46, %c0_20, %c0_21] : memref<1x16x16x4xf32, #tpu.memory_space<vmem>>, vector<1x4x16x4xf32>
    %48 = vector.shape_cast %47 : vector<1x4x16x4xf32> to vector<4x16x4xf32>
    %49 = vector.shape_cast %48 : vector<4x16x4xf32> to vector<64x4xf32>
    %c0_22 = arith.constant 0 : index
    %c0_23 = arith.constant 0 : index
    %50 = vector.load %arg9[%c0_22, %c0_23] : memref<4x16xf32, #tpu.memory_space<vmem>>, vector<4x16xf32>
    %cst_24 = arith.constant dense<0.000000e+00> : vector<64x16xf32>
    %51 = tpu.matmul %49, %50, %cst_24 {dimension_numbers = #tpu.dot_dimension_numbers<[1], [0], [0], [1], [0, 0, 1, 1], [], []>} : vector<64x4xf32>, vector<4x16xf32>, vector<64x16xf32> -> vector<64x16xf32>
    %c0_25 = arith.constant 0 : index
    %c0_26 = arith.constant 0 : index
    %52 = vector.load %arg10[%c0_25, %c0_26] : memref<1x16xf32, #tpu.memory_space<vmem>>, vector<1x16xf32>
    %53 = vector.broadcast %52 : vector<1x16xf32> to vector<64x16xf32>
    %54 = arith.addf %51, %53 : vector<64x16xf32>
    %55 = arith.addf %45, %54 : vector<64x16xf32>
    %cst_27 = arith.constant 0.000000e+00 : f32
    %56 = vector.broadcast %cst_27 : f32 to vector<64x16xf32>
    %57 = arith.maximumf %55, %56 : vector<64x16xf32>
    %58 = vector.shape_cast %57 : vector<64x16xf32> to vector<4x16x16xf32>
    %c0_28 = arith.constant 0 : index
    %c0_29 = arith.constant 0 : index
    %c0_30 = arith.constant 0 : index
    %c0_31 = arith.constant 0 : index
    %59 = vector.load %arg11[%c0_28, %c0_29, %c0_30, %c0_31] : memref<1x4x16x16xf32, #tpu.memory_space<vmem>>, vector<1x4x16x16xf32>
    %60 = vector.shape_cast %59 : vector<1x4x16x16xf32> to vector<4x16x16xf32>
    %61 = vector.shape_cast %58 : vector<4x16x16xf32> to vector<1x4x16x16xf32>
    tpu.vector_store %arg11[%c0_28, %c0_29, %c0_30, %c0_31], %61 {strides = array<i32>} : memref<1x4x16x16xf32, #tpu.memory_space<vmem>>, vector<1x4x16x16xf32>,
    return
  }
  func.func @transform_0(%arg0: i32, %arg1: i32) -> (i32, i32, i32, i32) {
    %c0_i32 = arith.constant 0 : i32
    %c0_i32_0 = arith.constant 0 : i32
    %c0_i32_1 = arith.constant 0 : i32
    %c0_i32_2 = arith.constant 0 : i32
    return %arg0, %c0_i32, %c0_i32_0, %c0_i32_1 : i32, i32, i32, i32
  }
  func.func @transform_1(%arg0: i32, %arg1: i32) -> (i32, i32) {
    %c0_i32 = arith.constant 0 : i32
    %c0_i32_0 = arith.constant 0 : i32
    %c0_i32_1 = arith.constant 0 : i32
    return %c0_i32, %c0_i32_0 : i32, i32
  }
  func.func @transform_2(%arg0: i32, %arg1: i32) -> (i32, i32) {
    %c0_i32 = arith.constant 0 : i32
    %c0_i32_0 = arith.constant 0 : i32
    %c0_i32_1 = arith.constant 0 : i32
    return %c0_i32, %c0_i32_0 : i32, i32
  }
  func.func @transform_3(%arg0: i32, %arg1: i32) -> (i32, i32, i32) {
    %c0_i32 = arith.constant 0 : i32
    %c0_i32_0 = arith.constant 0 : i32
    %c0_i32_1 = arith.constant 0 : i32
    %c0_i32_2 = arith.constant 0 : i32
    return %c0_i32, %c0_i32_0, %c0_i32_1 : i32, i32, i32
  }
  func.func @transform_4(%arg0: i32, %arg1: i32) -> (i32, i32) {
    %c0_i32 = arith.constant 0 : i32
    %c0_i32_0 = arith.constant 0 : i32
    %c0_i32_1 = arith.constant 0 : i32
    return %c0_i32, %c0_i32_0 : i32, i32
  }
  func.func @transform_5(%arg0: i32, %arg1: i32) -> (i32, i32) {
    %c0_i32 = arith.constant 0 : i32
    %c0_i32_0 = arith.constant 0 : i32
    %c0_i32_1 = arith.constant 0 : i32
    return %c0_i32, %c0_i32_0 : i32, i32
  }
  func.func @transform_6(%arg0: i32, %arg1: i32) -> (i32, i32) {
    %c0_i32 = arith.constant 0 : i32
    %c0_i32_0 = arith.constant 0 : i32
    %c0_i32_1 = arith.constant 0 : i32
    return %c0_i32, %c0_i32_0 : i32, i32
  }
  func.func @transform_7(%arg0: i32, %arg1: i32) -> (i32, i32) {
    %c0_i32 = arith.constant 0 : i32
    %c0_i32_0 = arith.constant 0 : i32
    %c0_i32_1 = arith.constant 0 : i32
    return %c0_i32, %c0_i32_0 : i32, i32
  }
  func.func @transform_8(%arg0: i32, %arg1: i32) -> (i32, i32) {
    %c0_i32 = arith.constant 0 : i32
    %c0_i32_0 = arith.constant 0 : i32
    %c0_i32_1 = arith.constant 0 : i32
    return %c0_i32, %c0_i32_0 : i32, i32
  }
  func.func @transform_9(%arg0: i32, %arg1: i32) -> (i32, i32, i32, i32) {
    %c0_i32 = arith.constant 0 : i32
    %c0_i32_0 = arith.constant 0 : i32
    %c0_i32_1 = arith.constant 0 : i32
    return %arg0, %arg1, %c0_i32, %c0_i32_0 : i32, i32, i32, i32
  }
}

module attributes {stable_mosaic.version = 11 : i64} {
  func.func @kernel(%arg0: i32, %arg1: i32, %arg2: memref<1x16x16x4xf32, #tpu.memory_space<vmem>>, %arg3: memref<4x4xf32, #tpu.memory_space<vmem>>, %arg4: memref<1x4xf32, #tpu.memory_space<vmem>>, %arg5: memref<3x12x4xf32, #tpu.memory_space<vmem>>, %arg6: memref<1x4xf32, #tpu.memory_space<vmem>>, %arg7: memref<4x16xf32, #tpu.memory_space<vmem>>, %arg8: memref<1x16xf32, #tpu.memory_space<vmem>>, %arg9: memref<4x16xf32, #tpu.memory_space<vmem>>, %arg10: memref<1x16xf32, #tpu.memory_space<vmem>>, %arg11: memref<1x4x16x16xf32, #tpu.memory_space<vmem>>, %arg12: memref<18x18x4xf32, #tpu.memory_space<vmem>>) attributes {dimension_semantics = [#tpu.dimension_semantics<parallel>, #tpu.dimension_semantics<arbitrary>], iteration_bounds = array<i64: 2, 4>, scalar_prefetch = 0 : i64, scratch_operands = 1 : i64, tpu.core_type = #tpu.core_type<tc>, window_params = [{transform_indices = @transform_0, window_bounds = array<i64: 1, 16, 16, 4>}, {pipeline_mode = #tpu.pipeline_mode<synchronous>, transform_indices = @transform_1, window_bounds = array<i64: 4, 4>}, {pipeline_mode = #tpu.pipeline_mode<synchronous>, transform_indices = @transform_2, window_bounds = array<i64: 1, 4>}, {pipeline_mode = #tpu.pipeline_mode<synchronous>, transform_indices = @transform_3, window_bounds = array<i64: 3, 12, 4>}, {pipeline_mode = #tpu.pipeline_mode<synchronous>, transform_indices = @transform_4, window_bounds = array<i64: 1, 4>}, {pipeline_mode = #tpu.pipeline_mode<synchronous>, transform_indices = @transform_5, window_bounds = array<i64: 4, 16>}, {pipeline_mode = #tpu.pipeline_mode<synchronous>, transform_indices = @transform_6, window_bounds = array<i64: 1, 16>}, {pipeline_mode = #tpu.pipeline_mode<synchronous>, transform_indices = @transform_7, window_bounds = array<i64: 4, 16>}, {pipeline_mode = #tpu.pipeline_mode<synchronous>, transform_indices = @transform_8, window_bounds = array<i64: 1, 16>}, {transform_indices = @transform_9, window_bounds = array<i64: 1, 4, 16, 16>}]} {
    %c0_i32 = arith.constant 0 : i32
    %0 = arith.cmpi eq, %arg1, %c0_i32 : i32
    %1 = arith.extui %0 : i1 to i32
    %c0_i32_0 = arith.constant 0 : i32
    %2 = arith.cmpi ne, %1, %c0_i32_0 : i32
    scf.if %2 {
      %cst_32 = arith.constant 0.000000e+00 : f32
      %62 = vector.broadcast %cst_32 : f32 to vector<1x18x4xf32>
      %cst_33 = arith.constant 0.000000e+00 : f32
      %63 = vector.broadcast %cst_33 : f32 to vector<18x1x4xf32>
      %c0_34 = arith.constant 0 : index
      %c0_35 = arith.constant 0 : index
      %c0_36 = arith.constant 0 : index
      %64 = vector.load %arg12[%c0_34, %c0_35, %c0_36] : memref<18x18x4xf32, #tpu.memory_space<vmem>>, vector<1x18x4xf32>
      tpu.vector_store %arg12[%c0_34, %c0_35, %c0_36], %62 {strides = array<i32>} : memref<18x18x4xf32, #tpu.memory_space<vmem>>, vector<1x18x4xf32>,
      %c17 = arith.constant 17 : index
      %c0_37 = arith.constant 0 : index
      %c0_38 = arith.constant 0 : index
      %65 = vector.load %arg12[%c17, %c0_37, %c0_38] : memref<18x18x4xf32, #tpu.memory_space<vmem>>, vector<1x18x4xf32>
      tpu.vector_store %arg12[%c17, %c0_37, %c0_38], %62 {strides = array<i32>} : memref<18x18x4xf32, #tpu.memory_space<vmem>>, vector<1x18x4xf32>,
      %c0_39 = arith.constant 0 : index
      %c0_40 = arith.constant 0 : index
      %c0_41 = arith.constant 0 : index
      %66 = vector.load %arg12[%c0_39, %c0_40, %c0_41] : memref<18x18x4xf32, #tpu.memory_space<vmem>>, vector<18x1x4xf32>
      tpu.vector_store %arg12[%c0_39, %c0_40, %c0_41], %63 {strides = array<i32>} : memref<18x18x4xf32, #tpu.memory_space<vmem>>, vector<18x1x4xf32>,
      %c0_42 = arith.constant 0 : index
      %c17_43 = arith.constant 17 : index
      %c0_44 = arith.constant 0 : index
      %67 = vector.load %arg12[%c0_42, %c17_43, %c0_44] : memref<18x18x4xf32, #tpu.memory_space<vmem>>, vector<18x1x4xf32>
      tpu.vector_store %arg12[%c0_42, %c17_43, %c0_44], %63 {strides = array<i32>} : memref<18x18x4xf32, #tpu.memory_space<vmem>>, vector<18x1x4xf32>,
      %c0_45 = arith.constant 0 : index
      %c0_46 = arith.constant 0 : index
      %c0_47 = arith.constant 0 : index
      %c0_48 = arith.constant 0 : index
      %68 = vector.load %arg2[%c0_45, %c0_46, %c0_47, %c0_48] : memref<1x16x16x4xf32, #tpu.memory_space<vmem>>, vector<1x16x16x4xf32>
      %69 = vector.shape_cast %68 : vector<1x16x16x4xf32> to vector<16x16x4xf32>
      %70 = vector.shape_cast %69 : vector<16x16x4xf32> to vector<256x4xf32>
      %c0_49 = arith.constant 0 : index
      %c0_50 = arith.constant 0 : index
      %71 = vector.load %arg3[%c0_49, %c0_50] : memref<4x4xf32, #tpu.memory_space<vmem>>, vector<4x4xf32>
      %cst_51 = arith.constant dense<0.000000e+00> : vector<256x4xf32>
      %72 = tpu.matmul %70, %71, %cst_51 {dimension_numbers = #tpu.dot_dimension_numbers<[1], [0], [0], [1], [0, 0, 1, 1], [], []>} : vector<256x4xf32>, vector<4x4xf32>, vector<256x4xf32> -> vector<256x4xf32>
      %c0_52 = arith.constant 0 : index
      %c0_53 = arith.constant 0 : index
      %73 = vector.load %arg4[%c0_52, %c0_53] : memref<1x4xf32, #tpu.memory_space<vmem>>, vector<1x4xf32>
      %74 = vector.broadcast %73 : vector<1x4xf32> to vector<256x4xf32>
      %75 = arith.addf %72, %74 : vector<256x4xf32>
      %cst_54 = arith.constant 0.000000e+00 : f32
      %76 = vector.broadcast %cst_54 : f32 to vector<256x4xf32>
      %77 = arith.maximumf %75, %76 : vector<256x4xf32>
      %78 = vector.shape_cast %77 : vector<256x4xf32> to vector<16x16x4xf32>
      %c1_55 = arith.constant 1 : index
      %c1_56 = arith.constant 1 : index
      %c0_57 = arith.constant 0 : index
      %79 = vector.load %arg12[%c1_55, %c1_56, %c0_57] : memref<18x18x4xf32, #tpu.memory_space<vmem>>, vector<16x16x4xf32>
      tpu.vector_store %arg12[%c1_55, %c1_56, %c0_57], %78 {strides = array<i32>} : memref<18x18x4xf32, #tpu.memory_space<vmem>>, vector<16x16x4xf32>,
    } else {
    }
    %c4_i32 = arith.constant 4 : i32
    %3 = arith.muli %arg1, %c4_i32 : i32
    %4 = tpu.assume_multiple %3, 4 : i32
    %5 = arith.index_cast %4 : i32 to index
    %c0 = arith.constant 0 : index
    %c0_1 = arith.constant 0 : index
    %6 = vector.load %arg12[%5, %c0, %c0_1] : memref<18x18x4xf32, #tpu.memory_space<vmem>>, vector<6x18x4xf32>
    %7 = vector.extract_strided_slice %6 {offsets = [0, 0, 0], sizes = [4, 18, 4], strides = [1, 1, 1]} : vector<6x18x4xf32> to vector<4x18x4xf32>
    %8 = vector.extract_strided_slice %6 {offsets = [1, 0, 0], sizes = [4, 18, 4], strides = [1, 1, 1]} : vector<6x18x4xf32> to vector<4x18x4xf32>
    %9 = vector.extract_strided_slice %6 {offsets = [2, 0, 0], sizes = [4, 18, 4], strides = [1, 1, 1]} : vector<6x18x4xf32> to vector<4x18x4xf32>
    %10 = vector.extract_strided_slice %7 {offsets = [0, 0, 0], sizes = [4, 16, 4], strides = [1, 1, 1]} : vector<4x18x4xf32> to vector<4x16x4xf32>
    %11 = vector.extract_strided_slice %7 {offsets = [0, 1, 0], sizes = [4, 16, 4], strides = [1, 1, 1]} : vector<4x18x4xf32> to vector<4x16x4xf32>
    %12 = vector.extract_strided_slice %7 {offsets = [0, 2, 0], sizes = [4, 16, 4], strides = [1, 1, 1]} : vector<4x18x4xf32> to vector<4x16x4xf32>
    %13 = tpu.concatenate %10, %11, %12 in 2 : vector<4x16x4xf32>, vector<4x16x4xf32>, vector<4x16x4xf32> -> vector<4x16x12xf32>
    %14 = vector.shape_cast %13 : vector<4x16x12xf32> to vector<64x12xf32>
    %c0_2 = arith.constant 0 : index
    %c0_3 = arith.constant 0 : index
    %c0_4 = arith.constant 0 : index
    %15 = vector.load %arg5[%c0_2, %c0_3, %c0_4] : memref<3x12x4xf32, #tpu.memory_space<vmem>>, vector<1x12x4xf32>
    %16 = vector.shape_cast %15 : vector<1x12x4xf32> to vector<12x4xf32>
    %cst = arith.constant dense<0.000000e+00> : vector<64x4xf32>
    %17 = tpu.matmul %14, %16, %cst {dimension_numbers = #tpu.dot_dimension_numbers<[1], [0], [0], [1], [0, 0, 1, 1], [], []>} : vector<64x12xf32>, vector<12x4xf32>, vector<64x4xf32> -> vector<64x4xf32>
    %18 = vector.extract_strided_slice %8 {offsets = [0, 0, 0], sizes = [4, 16, 4], strides = [1, 1, 1]} : vector<4x18x4xf32> to vector<4x16x4xf32>
    %19 = vector.extract_strided_slice %8 {offsets = [0, 1, 0], sizes = [4, 16, 4], strides = [1, 1, 1]} : vector<4x18x4xf32> to vector<4x16x4xf32>
    %20 = vector.extract_strided_slice %8 {offsets = [0, 2, 0], sizes = [4, 16, 4], strides = [1, 1, 1]} : vector<4x18x4xf32> to vector<4x16x4xf32>
    %21 = tpu.concatenate %18, %19, %20 in 2 : vector<4x16x4xf32>, vector<4x16x4xf32>, vector<4x16x4xf32> -> vector<4x16x12xf32>
    %22 = vector.shape_cast %21 : vector<4x16x12xf32> to vector<64x12xf32>
    %c1 = arith.constant 1 : index
    %c0_5 = arith.constant 0 : index
    %c0_6 = arith.constant 0 : index
    %23 = vector.load %arg5[%c1, %c0_5, %c0_6] : memref<3x12x4xf32, #tpu.memory_space<vmem>>, vector<1x12x4xf32>
    %24 = vector.shape_cast %23 : vector<1x12x4xf32> to vector<12x4xf32>
    %cst_7 = arith.constant dense<0.000000e+00> : vector<64x4xf32>
    %25 = tpu.matmul %22, %24, %cst_7 {dimension_numbers = #tpu.dot_dimension_numbers<[1], [0], [0], [1], [0, 0, 1, 1], [], []>} : vector<64x12xf32>, vector<12x4xf32>, vector<64x4xf32> -> vector<64x4xf32>
    %26 = arith.addf %17, %25 : vector<64x4xf32>
    %27 = vector.extract_strided_slice %9 {offsets = [0, 0, 0], sizes = [4, 16, 4], strides = [1, 1, 1]} : vector<4x18x4xf32> to vector<4x16x4xf32>
    %28 = vector.extract_strided_slice %9 {offsets = [0, 1, 0], sizes = [4, 16, 4], strides = [1, 1, 1]} : vector<4x18x4xf32> to vector<4x16x4xf32>
    %29 = vector.extract_strided_slice %9 {offsets = [0, 2, 0], sizes = [4, 16, 4], strides = [1, 1, 1]} : vector<4x18x4xf32> to vector<4x16x4xf32>
    %30 = tpu.concatenate %27, %28, %29 in 2 : vector<4x16x4xf32>, vector<4x16x4xf32>, vector<4x16x4xf32> -> vector<4x16x12xf32>
    %31 = vector.shape_cast %30 : vector<4x16x12xf32> to vector<64x12xf32>
    %c2 = arith.constant 2 : index
    %c0_8 = arith.constant 0 : index
    %c0_9 = arith.constant 0 : index
    %32 = vector.load %arg5[%c2, %c0_8, %c0_9] : memref<3x12x4xf32, #tpu.memory_space<vmem>>, vector<1x12x4xf32>
    %33 = vector.shape_cast %32 : vector<1x12x4xf32> to vector<12x4xf32>
    %cst_10 = arith.constant dense<0.000000e+00> : vector<64x4xf32>
    %34 = tpu.matmul %31, %33, %cst_10 {dimension_numbers = #tpu.dot_dimension_numbers<[1], [0], [0], [1], [0, 0, 1, 1], [], []>} : vector<64x12xf32>, vector<12x4xf32>, vector<64x4xf32> -> vector<64x4xf32>
    %35 = arith.addf %26, %34 : vector<64x4xf32>
    %c0_11 = arith.constant 0 : index
    %c0_12 = arith.constant 0 : index
    %36 = vector.load %arg6[%c0_11, %c0_12] : memref<1x4xf32, #tpu.memory_space<vmem>>, vector<1x4xf32>
    %37 = vector.broadcast %36 : vector<1x4xf32> to vector<64x4xf32>
    %38 = arith.addf %35, %37 : vector<64x4xf32>
    %cst_13 = arith.constant 0.000000e+00 : f32
    %39 = vector.broadcast %cst_13 : f32 to vector<64x4xf32>
    %40 = arith.maximumf %38, %39 : vector<64x4xf32>
    %c0_14 = arith.constant 0 : index
    %c0_15 = arith.constant 0 : index
    %41 = vector.load %arg7[%c0_14, %c0_15] : memref<4x16xf32, #tpu.memory_space<vmem>>, vector<4x16xf32>
    %cst_16 = arith.constant dense<0.000000e+00> : vector<64x16xf32>
    %42 = tpu.matmul %40, %41, %cst_16 {dimension_numbers = #tpu.dot_dimension_numbers<[1], [0], [0], [1], [0, 0, 1, 1], [], []>} : vector<64x4xf32>, vector<4x16xf32>, vector<64x16xf32> -> vector<64x16xf32>
    %c0_17 = arith.constant 0 : index
    %c0_18 = arith.constant 0 : index
    %43 = vector.load %arg8[%c0_17, %c0_18] : memref<1x16xf32, #tpu.memory_space<vmem>>, vector<1x16xf32>
    %44 = vector.broadcast %43 : vector<1x16xf32> to vector<64x16xf32>
    %45 = arith.addf %42, %44 : vector<64x16xf32>
    %c0_19 = arith.constant 0 : index
    %46 = arith.index_cast %4 : i32 to index
    %c0_20 = arith.constant 0 : index
    %c0_21 = arith.constant 0 : index
    %47 = vector.load %arg2[%c0_19, %46, %c0_20, %c0_21] : memref<1x16x16x4xf32, #tpu.memory_space<vmem>>, vector<1x4x16x4xf32>
    %48 = vector.shape_cast %47 : vector<1x4x16x4xf32> to vector<4x16x4xf32>
    %49 = vector.shape_cast %48 : vector<4x16x4xf32> to vector<64x4xf32>
    %c0_22 = arith.constant 0 : index
    %c0_23 = arith.constant 0 : index
    %50 = vector.load %arg9[%c0_22, %c0_23] : memref<4x16xf32, #tpu.memory_space<vmem>>, vector<4x16xf32>
    %cst_24 = arith.constant dense<0.000000e+00> : vector<64x16xf32>
    %51 = tpu.matmul %49, %50, %cst_24 {dimension_numbers = #tpu.dot_dimension_numbers<[1], [0], [0], [1], [0, 0, 1, 1], [], []>} : vector<64x4xf32>, vector<4x16xf32>, vector<64x16xf32> -> vector<64x16xf32>
    %c0_25 = arith.constant 0 : index
    %c0_26 = arith.constant 0 : index
    %52 = vector.load %arg10[%c0_25, %c0_26] : memref<1x16xf32, #tpu.memory_space<vmem>>, vector<1x16xf32>
    %53 = vector.broadcast %52 : vector<1x16xf32> to vector<64x16xf32>
    %54 = arith.addf %51, %53 : vector<64x16xf32>
    %55 = arith.addf %45, %54 : vector<64x16xf32>
    %cst_27 = arith.constant 0.000000e+00 : f32
    %56 = vector.broadcast %cst_27 : f32 to vector<64x16xf32>
    %57 = arith.maximumf %55, %56 : vector<64x16xf32>
    %58 = vector.shape_cast %57 : vector<64x16xf32> to vector<4x16x16xf32>
    %c0_28 = arith.constant 0 : index
    %c0_29 = arith.constant 0 : index
    %c0_30 = arith.constant 0 : index
    %c0_31 = arith.constant 0 : index
    %59 = vector.load %arg11[%c0_28, %c0_29, %c0_30, %c0_31] : memref<1x4x16x16xf32, #tpu.memory_space<vmem>>, vector<1x4x16x16xf32>
    %60 = vector.shape_cast %59 : vector<1x4x16x16xf32> to vector<4x16x16xf32>
    %61 = vector.shape_cast %58 : vector<4x16x16xf32> to vector<1x4x16x16xf32>
    tpu.vector_store %arg11[%c0_28, %c0_29, %c0_30, %c0_31], %61 {strides = array<i32>} : memref<1x4x16x16xf32, #tpu.memory_space<vmem>>, vector<1x4x16x16xf32>,
    return
  }
  func.func @transform_0(%arg0: i32, %arg1: i32) -> (i32, i32, i32, i32) {
    %c0_i32 = arith.constant 0 : i32
    %c0_i32_0 = arith.constant 0 : i32
    %c0_i32_1 = arith.constant 0 : i32
    %c0_i32_2 = arith.constant 0 : i32
    return %arg0, %c0_i32, %c0_i32_0, %c0_i32_1 : i32, i32, i32, i32
  }
  func.func @transform_1(%arg0: i32, %arg1: i32) -> (i32, i32) {
    %c0_i32 = arith.constant 0 : i32
    %c0_i32_0 = arith.constant 0 : i32
    %c0_i32_1 = arith.constant 0 : i32
    return %c0_i32, %c0_i32_0 : i32, i32
  }
  func.func @transform_2(%arg0: i32, %arg1: i32) -> (i32, i32) {
    %c0_i32 = arith.constant 0 : i32
    %c0_i32_0 = arith.constant 0 : i32
    %c0_i32_1 = arith.constant 0 : i32
    return %c0_i32, %c0_i32_0 : i32, i32
  }
  func.func @transform_3(%arg0: i32, %arg1: i32) -> (i32, i32, i32) {
    %c0_i32 = arith.constant 0 : i32
    %c0_i32_0 = arith.constant 0 : i32
    %c0_i32_1 = arith.constant 0 : i32
    %c0_i32_2 = arith.constant 0 : i32
    return %c0_i32, %c0_i32_0, %c0_i32_1 : i32, i32, i32
  }
  func.func @transform_4(%arg0: i32, %arg1: i32) -> (i32, i32) {
    %c0_i32 = arith.constant 0 : i32
    %c0_i32_0 = arith.constant 0 : i32
    %c0_i32_1 = arith.constant 0 : i32
    return %c0_i32, %c0_i32_0 : i32, i32
  }
  func.func @transform_5(%arg0: i32, %arg1: i32) -> (i32, i32) {
    %c0_i32 = arith.constant 0 : i32
    %c0_i32_0 = arith.constant 0 : i32
    %c0_i32_1 = arith.constant 0 : i32
    return %c0_i32, %c0_i32_0 : i32, i32
  }
  func.func @transform_6(%arg0: i32, %arg1: i32) -> (i32, i32) {
    %c0_i32 = arith.constant 0 : i32
    %c0_i32_0 = arith.constant 0 : i32
    %c0_i32_1 = arith.constant 0 : i32
    return %c0_i32, %c0_i32_0 : i32, i32
  }
  func.func @transform_7(%arg0: i32, %arg1: i32) -> (i32, i32) {
    %c0_i32 = arith.constant 0 : i32
    %c0_i32_0 = arith.constant 0 : i32
    %c0_i32_1 = arith.constant 0 : i32
    return %c0_i32, %c0_i32_0 : i32, i32
  }
  func.func @transform_8(%arg0: i32, %arg1: i32) -> (i32, i32) {
    %c0_i32 = arith.constant 0 : i32
    %c0_i32_0 = arith.constant 0 : i32
    %c0_i32_1 = arith.constant 0 : i32
    return %c0_i32, %c0_i32_0 : i32, i32
  }
  func.func @transform_9(%arg0: i32, %arg1: i32) -> (i32, i32, i32, i32) {
    %c0_i32 = arith.constant 0 : i32
    %c0_i32_0 = arith.constant 0 : i32
    %c0_i32_1 = arith.constant 0 : i32
    return %arg0, %arg1, %c0_i32, %c0_i32_0 : i32, i32, i32, i32
  }
}

</mosaic_0001>

<llo_original>
// kernel: tpu_custom_call.1
$region0: #{tpu_custom_call.1}
  #allocation0 [shape = 'u32[]', space=smem, size = 0x4, offset = 0x4, fixed_abs, tag = 'smem constant byte address 0x4 - core index']
  #allocation1 [shape = 'u32[144,128]{1,0:T(1,128)}', space=vmem, size = 0x12000, scoped, tag = 'internal scratch']
  #allocation2 [shape = 'f32[18,18,4]{2,1,0:T(8,128)}', space=vmem, size = 0x36000, scoped, tag = 'scratch operand']
  %s0 = inlined_call_operand.vmem [shape: f32[2,16,16,4], index: 0, kind: input, shape index: {}]
  %s1 = inlined_call_operand.vmem [shape: f32[4,4], index: 1, kind: input, shape index: {}]
  %s2 = inlined_call_operand.vmem [shape: f32[1,4], index: 2, kind: input, shape index: {}]
  %s3 = inlined_call_operand.vmem [shape: f32[3,12,4], index: 3, kind: input, shape index: {}]
  %s4 = inlined_call_operand.vmem [shape: f32[1,4], index: 4, kind: input, shape index: {}]
  %s5 = inlined_call_operand.vmem [shape: f32[4,16], index: 5, kind: input, shape index: {}]
  %s6 = inlined_call_operand.vmem [shape: f32[1,16], index: 6, kind: input, shape index: {}]
  %s7 = inlined_call_operand.vmem [shape: f32[4,16], index: 7, kind: input, shape index: {}]
  %s8 = inlined_call_operand.vmem [shape: f32[1,16], index: 8, kind: input, shape index: {}]
  %s9 = inlined_call_operand.hbm [shape: f32[2,16,16,16], index: 9, kind: output, shape index: {}]
  %s10 = sld [smem:[#allocation0]]
  $region73: #{tpu_custom_call.1} parent=0
    _
  %s12 = ssub.s32 1, %s10
  %s13 = scalar_select 0, %s12, %s10
  $region1: #{tpu_custom_call.1} parent=0
    #allocation3 [shape = 'u8[65536]{0}', space=vmem, size = 0x10000, scoped, tag = 'output window, operand 0']
    #allocation4 [shape = 's32[2]{0}', space=sflag, size = 0x8, scoped, tag = 'scoped memory for tpu_custom_call.1']
    %14 = vsyncpa [#allocation4], 0
    %s15 = scalar_lea.sflag [#allocation4], 1
    %16 = vsyncpa %s15, 0
    loop: start=0, step=1, limit=10
    $region2: #{tpu_custom_call.1} parent=1 // loop_pre_header
      _
    $region3: #{tpu_custom_call.1} parent=1 // loop_header
      %s18 = sphi 0, %s22
      %p19 = scmp.ge.s32.totalorder %s18, 10
      %s25 = sphi 0, %s37
      %s26 = sphi 0, %s33
      %s27 = sphi 0, %s25
      %s28 = sphi 0, %s26
      %s29 = sphi 0, %s27
      %s30 = sphi 0, %s28
      %s40 = sphi 0, %s42
      %s43 = sphi 0, %s40
      %s44 = sphi 0, %s43
      %s60 = sphi 0, %s44
      %s64 = sphi 0, %s64
      %s66 = sphi 0, %s64
      %s67 = sphi 0, %s66
      %s81 = sphi 0, %s67
      %s85 = sphi 0, %s85
      %s87 = sphi 0, %s85
      %s88 = sphi 0, %s87
      %s102 = sphi 0, %s88
      %s106 = sphi 0, %s106
      %s108 = sphi 0, %s106
      %s109 = sphi 0, %s108
      %s123 = sphi 0, %s109
      %s127 = sphi 0, %s127
      %s129 = sphi 0, %s127
      %s130 = sphi 0, %s129
      %s144 = sphi 0, %s130
      %s148 = sphi 0, %s148
      %s150 = sphi 0, %s148
      %s151 = sphi 0, %s150
      %s165 = sphi 0, %s151
      %s169 = sphi 0, %s169
      %s171 = sphi 0, %s169
      %s172 = sphi 0, %s171
      %s186 = sphi 0, %s172
      %s190 = sphi 0, %s190
      %s192 = sphi 0, %s190
      %s193 = sphi 0, %s192
      %s207 = sphi 0, %s193
      %s211 = sphi 0, %s211
      %s213 = sphi 0, %s211
      %s214 = sphi 0, %s213
      %s228 = sphi 0, %s214
      %s236 = sphi 0, %s238
      %s239 = sphi 0, %s236
      %s240 = sphi 0, %s239
      %s256 = sphi 0, %s240
    $region4: #{tpu_custom_call.1} parent=1 // loop_header_branch
      %21 = sbr.rel (%p19) target = $region8
    $region5: #{tpu_custom_call.1} parent=1 // loop_body
      %s23 = ssub.s32 %s18, 1
      %s24 = ssub.s32 %s18, 2
      %s31 = sadd.s32 1, %s26
      %p32 = scmp.ge.s32.totalorder %s31, 4
      %s33 = scalar_select %p32, 0, %s31
      %s34 = sadd.s32 1, %s25
      %s35 = scalar_select %p32, %s34, %s25
      %p36 = scmp.ge.s32.totalorder %s35, 2
      %s37 = scalar_select %p36, 0, %s35
      %s38 = ssub.s32 %s25, %s37
      %p39 = scmp.eq.s32.totalorder %s38, 0
      %s41 = sadd.s32 %s40, 1
      %s42 = scalar_select %p39, %s40, %s41
      %p45 = pneg %p39
      %p46 = scmp.eq.s32.totalorder %s18, 7
      %p47 = por %p45, %p46
      %p48 = scmp.ne.s32.totalorder %s40, %s43
      %p49 = scmp.eq.s32.totalorder %s18, 0
      %p50 = por %p48, %p49
      %p51 = scmp.ne.s32.totalorder %s40, %s43
      %p52 = scmp.eq.s32.totalorder %s23, 7
      %p53 = por %p51, %p52
      %p54 = scmp.ne.s32.totalorder %s43, %s44
      %p55 = scmp.eq.s32.totalorder %s23, 0
      %p56 = por %p54, %p55
      %p57 = scmp.ne.s32.totalorder %s43, %s44
      %p58 = scmp.eq.s32.totalorder %s24, 7
      %p59 = por %p57, %p58
      %p61 = scmp.ne.s32.totalorder %s44, %s60
      %p62 = scmp.eq.s32.totalorder %s24, 0
      %p63 = por %p61, %p62
      %s65 = sadd.s32 %s64, 1
      %p68 = scmp.eq.s32.totalorder %s18, 7
      %p69 = scmp.ne.s32.totalorder %s64, %s66
      %p70 = scmp.eq.s32.totalorder %s18, 0
      %p71 = por %p69, %p70
      %p72 = scmp.ne.s32.totalorder %s64, %s66
      %p73 = scmp.eq.s32.totalorder %s23, 7
      %p74 = por %p72, %p73
      %p75 = scmp.ne.s32.totalorder %s66, %s67
      %p76 = scmp.eq.s32.totalorder %s23, 0
      %p77 = por %p75, %p76
      %p78 = scmp.ne.s32.totalorder %s66, %s67
      %p79 = scmp.eq.s32.totalorder %s24, 7
      %p80 = por %p78, %p79
      %p82 = scmp.ne.s32.totalorder %s67, %s81
      %p83 = scmp.eq.s32.totalorder %s24, 0
      %p84 = por %p82, %p83
      %s86 = sadd.s32 %s85, 1
      %p89 = scmp.eq.s32.totalorder %s18, 7
      %p90 = scmp.ne.s32.totalorder %s85, %s87
      %p91 = scmp.eq.s32.totalorder %s18, 0
      %p92 = por %p90, %p91
      %p93 = scmp.ne.s32.totalorder %s85, %s87
      %p94 = scmp.eq.s32.totalorder %s23, 7
      %p95 = por %p93, %p94
      %p96 = scmp.ne.s32.totalorder %s87, %s88
      %p97 = scmp.eq.s32.totalorder %s23, 0
      %p98 = por %p96, %p97
      %p99 = scmp.ne.s32.totalorder %s87, %s88
      %p100 = scmp.eq.s32.totalorder %s24, 7
      %p101 = por %p99, %p100
      %p103 = scmp.ne.s32.totalorder %s88, %s102
      %p104 = scmp.eq.s32.totalorder %s24, 0
      %p105 = por %p103, %p104
      %s107 = sadd.s32 %s106, 1
      %p110 = scmp.eq.s32.totalorder %s18, 7
      %p111 = scmp.ne.s32.totalorder %s106, %s108
      %p112 = scmp.eq.s32.totalorder %s18, 0
      %p113 = por %p111, %p112
      %p114 = scmp.ne.s32.totalorder %s106, %s108
      %p115 = scmp.eq.s32.totalorder %s23, 7
      %p116 = por %p114, %p115
      %p117 = scmp.ne.s32.totalorder %s108, %s109
      %p118 = scmp.eq.s32.totalorder %s23, 0
      %p119 = por %p117, %p118
      %p120 = scmp.ne.s32.totalorder %s108, %s109
      %p121 = scmp.eq.s32.totalorder %s24, 7
      %p122 = por %p120, %p121
      %p124 = scmp.ne.s32.totalorder %s109, %s123
      %p125 = scmp.eq.s32.totalorder %s24, 0
      %p126 = por %p124, %p125
      %s128 = sadd.s32 %s127, 1
      %p131 = scmp.eq.s32.totalorder %s18, 7
      %p132 = scmp.ne.s32.totalorder %s127, %s129
      %p133 = scmp.eq.s32.totalorder %s18, 0
      %p134 = por %p132, %p133
      %p135 = scmp.ne.s32.totalorder %s127, %s129
      %p136 = scmp.eq.s32.totalorder %s23, 7
      %p137 = por %p135, %p136
      %p138 = scmp.ne.s32.totalorder %s129, %s130
      %p139 = scmp.eq.s32.totalorder %s23, 0
      %p140 = por %p138, %p139
      %p141 = scmp.ne.s32.totalorder %s129, %s130
      %p142 = scmp.eq.s32.totalorder %s24, 7
      %p143 = por %p141, %p142
      %p145 = scmp.ne.s32.totalorder %s130, %s144
      %p146 = scmp.eq.s32.totalorder %s24, 0
      %p147 = por %p145, %p146
      %s149 = sadd.s32 %s148, 1
      %p152 = scmp.eq.s32.totalorder %s18, 7
      %p153 = scmp.ne.s32.totalorder %s148, %s150
      %p154 = scmp.eq.s32.totalorder %s18, 0
      %p155 = por %p153, %p154
      %p156 = scmp.ne.s32.totalorder %s148, %s150
      %p157 = scmp.eq.s32.totalorder %s23, 7
      %p158 = por %p156, %p157
      %p159 = scmp.ne.s32.totalorder %s150, %s151
      %p160 = scmp.eq.s32.totalorder %s23, 0
      %p161 = por %p159, %p160
      %p162 = scmp.ne.s32.totalorder %s150, %s151
      %p163 = scmp.eq.s32.totalorder %s24, 7
      %p164 = por %p162, %p163
      %p166 = scmp.ne.s32.totalorder %s151, %s165
      %p167 = scmp.eq.s32.totalorder %s24, 0
      %p168 = por %p166, %p167
      %s170 = sadd.s32 %s169, 1
      %p173 = scmp.eq.s32.totalorder %s18, 7
      %p174 = scmp.ne.s32.totalorder %s169, %s171
      %p175 = scmp.eq.s32.totalorder %s18, 0
      %p176 = por %p174, %p175
      %p177 = scmp.ne.s32.totalorder %s169, %s171
      %p178 = scmp.eq.s32.totalorder %s23, 7
      %p179 = por %p177, %p178
      %p180 = scmp.ne.s32.totalorder %s171, %s172
      %p181 = scmp.eq.s32.totalorder %s23, 0
      %p182 = por %p180, %p181
      %p183 = scmp.ne.s32.totalorder %s171, %s172
      %p184 = scmp.eq.s32.totalorder %s24, 7
      %p185 = por %p183, %p184
      %p187 = scmp.ne.s32.totalorder %s172, %s186
      %p188 = scmp.eq.s32.totalorder %s24, 0
      %p189 = por %p187, %p188
      %s191 = sadd.s32 %s190, 1
      %p194 = scmp.eq.s32.totalorder %s18, 7
      %p195 = scmp.ne.s32.totalorder %s190, %s192
      %p196 = scmp.eq.s32.totalorder %s18, 0
      %p197 = por %p195, %p196
      %p198 = scmp.ne.s32.totalorder %s190, %s192
      %p199 = scmp.eq.s32.totalorder %s23, 7
      %p200 = por %p198, %p199
      %p201 = scmp.ne.s32.totalorder %s192, %s193
      %p202 = scmp.eq.s32.totalorder %s23, 0
      %p203 = por %p201, %p202
      %p204 = scmp.ne.s32.totalorder %s192, %s193
      %p205 = scmp.eq.s32.totalorder %s24, 7
      %p206 = por %p204, %p205
      %p208 = scmp.ne.s32.totalorder %s193, %s207
      %p209 = scmp.eq.s32.totalorder %s24, 0
      %p210 = por %p208, %p209
      %s212 = sadd.s32 %s211, 1
      %p215 = scmp.eq.s32.totalorder %s18, 7
      %p216 = scmp.ne.s32.totalorder %s211, %s213
      %p217 = scmp.eq.s32.totalorder %s18, 0
      %p218 = por %p216, %p217
      %p219 = scmp.ne.s32.totalorder %s211, %s213
      %p220 = scmp.eq.s32.totalorder %s23, 7
      %p221 = por %p219, %p220
      %p222 = scmp.ne.s32.totalorder %s213, %s214
      %p223 = scmp.eq.s32.totalorder %s23, 0
      %p224 = por %p222, %p223
      %p225 = scmp.ne.s32.totalorder %s213, %s214
      %p226 = scmp.eq.s32.totalorder %s24, 7
      %p227 = por %p225, %p226
      %p229 = scmp.ne.s32.totalorder %s214, %s228
      %p230 = scmp.eq.s32.totalorder %s24, 0
      %p231 = por %p229, %p230
      %s232 = ssub.s32 %s25, %s37
      %s233 = ssub.s32 %s26, %s33
      %s234 = sor.u32 %s232, %s233
      %p235 = scmp.eq.s32.totalorder %s234, 0
      %s237 = sadd.s32 %s236, 1
      %s238 = scalar_select %p235, %s236, %s237
      %p241 = pneg %p235
      %p242 = scmp.eq.s32.totalorder %s18, 7
      %p243 = por %p241, %p242
      %p244 = scmp.ne.s32.totalorder %s236, %s239
      %p245 = scmp.eq.s32.totalorder %s18, 0
      %p246 = por %p244, %p245
      %p247 = scmp.ne.s32.totalorder %s236, %s239
      %p248 = scmp.eq.s32.totalorder %s23, 7
      %p249 = por %p247, %p248
      %p250 = scmp.ne.s32.totalorder %s239, %s240
      %p251 = scmp.eq.s32.totalorder %s23, 0
      %p252 = por %p250, %p251
      %p253 = scmp.ne.s32.totalorder %s239, %s240
      %p254 = scmp.eq.s32.totalorder %s24, 7
      %p255 = por %p253, %p254
      %p257 = scmp.ne.s32.totalorder %s240, %s256
      %p258 = scmp.eq.s32.totalorder %s24, 0
      %p259 = por %p257, %p258
      %p260 = scmp.le.s32.totalorder 1, %s18
      %p261 = scmp.lt.s32.totalorder %s18, 9
      %p262 = pnand %p260, %p261
      %p263 = pneg %p262
      // Predicated region
      $region9: #{tpu_custom_call.1} parent=5 // pred_check
        _
      $region10: #{tpu_custom_call.1} parent=5 // pred_check_branch
        %265 = sbr.rel (%p262) target = $region12
      $region11: #{tpu_custom_call.1} parent=5 // pred_region
        %s266 = ssub.s32 %s18, 1
        // Predicated region
        $region13: #{tpu_custom_call.1} parent=11 // pred_check
          %p267 = pneg %p77
        $region14: #{tpu_custom_call.1} parent=11 // pred_check_branch
          %269 = sbr.rel (%p267) target = $region16
        $region15: #{tpu_custom_call.1} parent=11 // pred_region
          _
        $region16: #{tpu_custom_call.1} parent=11 // pred_fallthru
          _
        // Predicated region
        $region17: #{tpu_custom_call.1} parent=11 // pred_check
          %p270 = pneg %p98
        $region18: #{tpu_custom_call.1} parent=11 // pred_check_branch
          %272 = sbr.rel (%p270) target = $region20
        $region19: #{tpu_custom_call.1} parent=11 // pred_region
          _
        $region20: #{tpu_custom_call.1} parent=11 // pred_fallthru
          _
        // Predicated region
        $region21: #{tpu_custom_call.1} parent=11 // pred_check
          %p273 = pneg %p119
        $region22: #{tpu_custom_call.1} parent=11 // pred_check_branch
          %275 = sbr.rel (%p273) target = $region24
        $region23: #{tpu_custom_call.1} parent=11 // pred_region
          _
        $region24: #{tpu_custom_call.1} parent=11 // pred_fallthru
          _
        // Predicated region
        $region25: #{tpu_custom_call.1} parent=11 // pred_check
          %p276 = pneg %p140
        $region26: #{tpu_custom_call.1} parent=11 // pred_check_branch
          %278 = sbr.rel (%p276) target = $region28
        $region27: #{tpu_custom_call.1} parent=11 // pred_region
          _
        $region28: #{tpu_custom_call.1} parent=11 // pred_fallthru
          _
        // Predicated region
        $region29: #{tpu_custom_call.1} parent=11 // pred_check
          %p279 = pneg %p161
        $region30: #{tpu_custom_call.1} parent=11 // pred_check_branch
          %281 = sbr.rel (%p279) target = $region32
        $region31: #{tpu_custom_call.1} parent=11 // pred_region
          _
        $region32: #{tpu_custom_call.1} parent=11 // pred_fallthru
          _
        // Predicated region
        $region33: #{tpu_custom_call.1} parent=11 // pred_check
          %p282 = pneg %p182
        $region34: #{tpu_custom_call.1} parent=11 // pred_check_branch
          %284 = sbr.rel (%p282) target = $region36
        $region35: #{tpu_custom_call.1} parent=11 // pred_region
          _
        $region36: #{tpu_custom_call.1} parent=11 // pred_fallthru
          _
        // Predicated region
        $region37: #{tpu_custom_call.1} parent=11 // pred_check
          %p285 = pneg %p203
        $region38: #{tpu_custom_call.1} parent=11 // pred_check_branch
          %287 = sbr.rel (%p285) target = $region40
        $region39: #{tpu_custom_call.1} parent=11 // pred_region
          _
        $region40: #{tpu_custom_call.1} parent=11 // pred_fallthru
          _
        // Predicated region
        $region41: #{tpu_custom_call.1} parent=11 // pred_check
          %p288 = pneg %p224
        $region42: #{tpu_custom_call.1} parent=11 // pred_check_branch
          %290 = sbr.rel (%p288) target = $region44
        $region43: #{tpu_custom_call.1} parent=11 // pred_region
          _
        $region44: #{tpu_custom_call.1} parent=11 // pred_fallthru
          _
      $region12: #{tpu_custom_call.1} parent=5 // pred_fallthru
        _
      %p291 = scmp.lt.s32.totalorder %s18, 8
      // Predicated region
      $region45: #{tpu_custom_call.1} parent=5 // pred_check
        %p292 = pneg %p291
      $region46: #{tpu_custom_call.1} parent=5 // pred_check_branch
        %294 = sbr.rel (%p292) target = $region48
      $region47: #{tpu_custom_call.1} parent=5 // pred_region
        // Predicated region
        $region49: #{tpu_custom_call.1} parent=47 // pred_check
          %p295 = pneg %p50
        $region50: #{tpu_custom_call.1} parent=47 // pred_check_branch
          %297 = sbr.rel (%p295) target = $region52
        $region51: #{tpu_custom_call.1} parent=47 // pred_region
          %p298 = scmp.lt.s32.totalorder %s25, 1
          %s299 = scalar_select %p298, %s25, 1
          %s300 = smul.addr %s299, 32
          %s301 = smul.addr %s300, 8
          %s302 = scalar_lea.vmem %s0, %s301
        $region52: #{tpu_custom_call.1} parent=47 // pred_fallthru
          _
      $region48: #{tpu_custom_call.1} parent=5 // pred_fallthru
        _
      %p303 = scmp.le.s32.totalorder 1, %s18
      %p304 = scmp.lt.s32.totalorder %s18, 9
      %p305 = pnand %p303, %p304
      %p306 = pneg %p305
      // Predicated region
      $region53: #{tpu_custom_call.1} parent=5 // pred_check
        _
      $region54: #{tpu_custom_call.1} parent=5 // pred_check_branch
        %308 = sbr.rel (%p305) target = $region56
      $region55: #{tpu_custom_call.1} parent=5 // pred_region
        %s309 = ssub.s32 %s18, 1
        %p310 = scmp.lt.s32.totalorder %s27, 1
        %s311 = scalar_select %p310, %s27, 1
        %s312 = smul.addr %s311, 32
        %s313 = smul.addr %s312, 8
        %s314 = scalar_lea.vmem %s0, %s313
        %p315 = pneg %p56
        %p316 = pneg %p53
        %p317 = pneg %p77
        %p318 = pneg %p74
        %p319 = pneg %p98
        %p320 = pneg %p95
        %p321 = pneg %p119
        %p322 = pneg %p116
        %p323 = pneg %p140
        %p324 = pneg %p137
        %p325 = pneg %p161
        %p326 = pneg %p158
        %p327 = pneg %p182
        %p328 = pneg %p179
        %p329 = pneg %p203
        %p330 = pneg %p200
        %p331 = pneg %p224
        %p332 = pneg %p221
        %p333 = pneg %p252
        %p334 = pneg %p249
        %s335 = sand.u32 %s239, 1
        %s336 = scalar_lea.sflag [#allocation4], %s335
        %s337 = sand.u32 %s239, 1
        %s338 = smul.addr %s337, 64
        %s339 = scalar_lea.vmem [#allocation3], %s338
        %p340 = scmp.lt.s32.totalorder %s27, 1
        %s341 = scalar_select %p340, %s27, 1
        %s342 = smul.addr %s341, 32
        %s343 = smul.addr %s342, 8
        %s344 = scalar_lea.vmem %s0, %s343
        %s345 = smul.u32 4, %s28
        %p346 = scmp.eq.s32.totalorder %s28, 0
        // Predicated region
        $region57: #{tpu_custom_call.1} parent=55 // pred_check
          %p347 = pneg %p346
        $region58: #{tpu_custom_call.1} parent=55 // pred_check_branch
          %349 = sbr.rel (%p347) target = $region60
        $region59: #{tpu_custom_call.1} parent=55 // pred_region
          %vm350 = vcmask 31744
          %351 = vst.msk [vmem:[#allocation2] sm:$0xff] %vm350, 0.0
          %352 = vst.msk [vmem:[#allocation2 + $0x8] sm:$0xff] %vm350, 0.0
          %vm353 = vcmask 25600
          %354 = vst.msk [vmem:[#allocation2 + $0x10] sm:$0x3] %vm353, 0.0
          %s355 = scalar_lea.vmem [#allocation2], 408
          %356 = vst.msk [vmem:[%s355] sm:$0xff] %vm350, 0.0
          %357 = vst.msk [vmem:[%s355 + $0x8] sm:$0xff] %vm350, 0.0
          %358 = vst.msk [vmem:[%s355 + $0x10] sm:$0x3] %vm353, 0.0
          %vm359 = vcmask 24576
          %360 = vst.msk [vmem:[#allocation2] sm:$0x1] %vm359, 0.0
          %361 = vst.msk [vmem:[#allocation2 + $0x18] sm:$0x1] %vm359, 0.0
          %362 = vst.msk [vmem:[#allocation2 + $0x30] sm:$0x1] %vm359, 0.0
          %363 = vst.msk [vmem:[#allocation2 + $0x48] sm:$0x1] %vm359, 0.0
          %364 = vst.msk [vmem:[#allocation2 + $0x60] sm:$0x1] %vm359, 0.0
          %365 = vst.msk [vmem:[#allocation2 + $0x78] sm:$0x1] %vm359, 0.0
          %366 = vst.msk [vmem:[#allocation2 + $0x90] sm:$0x1] %vm359, 0.0
          %367 = vst.msk [vmem:[#allocation2 + $0xa8] sm:$0x1] %vm359, 0.0
          %368 = vst.msk [vmem:[#allocation2 + $0xc0] sm:$0x1] %vm359, 0.0
          %369 = vst.msk [vmem:[#allocation2 + $0xd8] sm:$0x1] %vm359, 0.0
          %370 = vst.msk [vmem:[#allocation2 + $0xf0] sm:$0x1] %vm359, 0.0
          %371 = vst.msk [vmem:[#allocation2 + $0x108] sm:$0x1] %vm359, 0.0
          %372 = vst.msk [vmem:[#allocation2 + $0x120] sm:$0x1] %vm359, 0.0
          %373 = vst.msk [vmem:[#allocation2 + $0x138] sm:$0x1] %vm359, 0.0
          %374 = vst.msk [vmem:[#allocation2 + $0x150] sm:$0x1] %vm359, 0.0
          %375 = vst.msk [vmem:[#allocation2 + $0x168] sm:$0x1] %vm359, 0.0
          %376 = vst.msk [vmem:[#allocation2 + $0x180] sm:$0x1] %vm359, 0.0
          %377 = vst.msk [vmem:[#allocation2 + $0x198] sm:$0x1] %vm359, 0.0
          %378 = vst.msk [vmem:[#allocation2 + $0x11] sm:$0x1] %vm359, 0.0
          %379 = vst.msk [vmem:[#allocation2 + $0x29] sm:$0x1] %vm359, 0.0
          %380 = vst.msk [vmem:[#allocation2 + $0x41] sm:$0x1] %vm359, 0.0
          %381 = vst.msk [vmem:[#allocation2 + $0x59] sm:$0x1] %vm359, 0.0
          %382 = vst.msk [vmem:[#allocation2 + $0x71] sm:$0x1] %vm359, 0.0
          %383 = vst.msk [vmem:[#allocation2 + $0x89] sm:$0x1] %vm359, 0.0
          %384 = vst.msk [vmem:[#allocation2 + $0xa1] sm:$0x1] %vm359, 0.0
          %385 = vst.msk [vmem:[#allocation2 + $0xb9] sm:$0x1] %vm359, 0.0
          %386 = vst.msk [vmem:[#allocation2 + $0xd1] sm:$0x1] %vm359, 0.0
          %387 = vst.msk [vmem:[#allocation2 + $0xe9] sm:$0x1] %vm359, 0.0
          %388 = vst.msk [vmem:[#allocation2 + $0x101] sm:$0x1] %vm359, 0.0
          %389 = vst.msk [vmem:[#allocation2 + $0x119] sm:$0x1] %vm359, 0.0
          %390 = vst.msk [vmem:[#allocation2 + $0x131] sm:$0x1] %vm359, 0.0
          %391 = vst.msk [vmem:[#allocation2 + $0x149] sm:$0x1] %vm359, 0.0
          %392 = vst.msk [vmem:[#allocation2 + $0x161] sm:$0x1] %vm359, 0.0
          %393 = vst.msk [vmem:[#allocation2 + $0x179] sm:$0x1] %vm359, 0.0
          %394 = vst.msk [vmem:[#allocation2 + $0x191] sm:$0x1] %vm359, 0.0
          %395 = vst.msk [vmem:[#allocation2 + $0x1a9] sm:$0x1] %vm359, 0.0
          %v396 = vld [vmem:[%s344] sm:$0xff]
          %v397 = vld [vmem:[%s344 + $0x8] sm:$0xff]
          %v398 = vld [vmem:[%s344 + $0x10] sm:$0xff]
          %v399 = vld [vmem:[%s344 + $0x18] sm:$0xff]
          %v400 = vld [vmem:[%s344 + $0x20] sm:$0xff]
          %v401 = vld [vmem:[%s344 + $0x28] sm:$0xff]
          %v402 = vld [vmem:[%s344 + $0x30] sm:$0xff]
          %v403 = vld [vmem:[%s344 + $0x38] sm:$0xff]
          %v404 = vld [vmem:[%s344 + $0x40] sm:$0xff]
          %v405 = vld [vmem:[%s344 + $0x48] sm:$0xff]
          %v406 = vld [vmem:[%s344 + $0x50] sm:$0xff]
          %v407 = vld [vmem:[%s344 + $0x58] sm:$0xff]
          %v408 = vld [vmem:[%s344 + $0x60] sm:$0xff]
          %v409 = vld [vmem:[%s344 + $0x68] sm:$0xff]
          %v410 = vld [vmem:[%s344 + $0x70] sm:$0xff]
          %v411 = vld [vmem:[%s344 + $0x78] sm:$0xff]
          %v412 = vld [vmem:[%s344 + $0x80] sm:$0xff]
          %v413 = vld [vmem:[%s344 + $0x88] sm:$0xff]
          %v414 = vld [vmem:[%s344 + $0x90] sm:$0xff]
          %v415 = vld [vmem:[%s344 + $0x98] sm:$0xff]
          %v416 = vld [vmem:[%s344 + $0xa0] sm:$0xff]
          %v417 = vld [vmem:[%s344 + $0xa8] sm:$0xff]
          %v418 = vld [vmem:[%s344 + $0xb0] sm:$0xff]
          %v419 = vld [vmem:[%s344 + $0xb8] sm:$0xff]
          %v420 = vld [vmem:[%s344 + $0xc0] sm:$0xff]
          %v421 = vld [vmem:[%s344 + $0xc8] sm:$0xff]
          %v422 = vld [vmem:[%s344 + $0xd0] sm:$0xff]
          %v423 = vld [vmem:[%s344 + $0xd8] sm:$0xff]
          %v424 = vld [vmem:[%s344 + $0xe0] sm:$0xff]
          %v425 = vld [vmem:[%s344 + $0xe8] sm:$0xff]
          %v426 = vld [vmem:[%s344 + $0xf0] sm:$0xff]
          %v427 = vld [vmem:[%s344 + $0xf8] sm:$0xff]
          %v428 = vld [vmem:[%s1] sm:$0xf]
          %v429 = vld [vmem:[%s2] sm:$0x1]
          %v431 = vlaneseq
          %v432 = vshrl.u32 %v431, 7
          %v433 = vsub.s32 0, %v432
          %v434 = vrot.slane %v429, %v433
          %v437 = vsel %vm350, %v396, 0
          %v440 = vsel %vm350, %v397, 0
          %v443 = vsel %vm350, %v398, 0
          %v446 = vsel %vm350, %v399, 0
          %v449 = vsel %vm350, %v400, 0
          %v452 = vsel %vm350, %v401, 0
          %v455 = vsel %vm350, %v402, 0
          %v458 = vsel %vm350, %v403, 0
          %v461 = vsel %vm350, %v404, 0
          %v464 = vsel %vm350, %v405, 0
          %v467 = vsel %vm350, %v406, 0
          %v470 = vsel %vm350, %v407, 0
          %v473 = vsel %vm350, %v408, 0
          %v476 = vsel %vm350, %v409, 0
          %v479 = vsel %vm350, %v410, 0
          %v482 = vsel %vm350, %v411, 0
          %v485 = vsel %vm350, %v412, 0
          %v488 = vsel %vm350, %v413, 0
          %v491 = vsel %vm350, %v414, 0
          %v494 = vsel %vm350, %v415, 0
          %v497 = vsel %vm350, %v416, 0
          %v500 = vsel %vm350, %v417, 0
          %v503 = vsel %vm350, %v418, 0
          %v506 = vsel %vm350, %v419, 0
          %v509 = vsel %vm350, %v420, 0
          %v512 = vsel %vm350, %v421, 0
          %v515 = vsel %vm350, %v422, 0
          %v518 = vsel %vm350, %v423, 0
          %v521 = vsel %vm350, %v424, 0
          %v524 = vsel %vm350, %v425, 0
          %v527 = vsel %vm350, %v426, 0
          %v530 = vsel %vm350, %v427, 0
          %vm532 = vcmask 1043456
          %v534 = vsel %vm532, %v428, 0
          %536 = vmatprep.subr.mxu0 0.0
          %537 = vmatpush1.msra.mxu0 %v534
          %538 = vmatprep.subr.mxu0 0.0
          %539 = vmatpush1.msra.mxu0 0.0
          %540 = vmatprep.subr.mxu0 0.0
          %541 = vmatpush1.msra.mxu0 0.0
          %542 = vmatprep.subr.mxu0 0.0
          %543 = vmatpush1.msra.mxu0 0.0
          %544 = vmatprep.subr.mxu0 0.0
          %545 = vmatpush1.msra.mxu0 0.0
          %546 = vmatprep.subr.mxu0 0.0
          %547 = vmatpush1.msra.mxu0 0.0
          %548 = vmatprep.subr.mxu0 0.0
          %549 = vmatpush1.msra.mxu0 0.0
          %550 = vmatprep.subr.mxu0 0.0
          %551 = vmatpush1.msra.mxu0 0.0
          %552 = vmatprep.subr.mxu0 0.0
          %553 = vmatpush1.msra.mxu0 0.0
          %554 = vmatprep.subr.mxu0 0.0
          %555 = vmatpush1.msra.mxu0 0.0
          %556 = vmatprep.subr.mxu0 0.0
          %557 = vmatpush1.msra.mxu0 0.0
          %558 = vmatprep.subr.mxu0 0.0
          %559 = vmatpush1.msra.mxu0 0.0
          %560 = vmatprep.subr.mxu0 0.0
          %561 = vmatpush1.msra.mxu0 0.0
          %562 = vmatprep.subr.mxu0 0.0
          %563 = vmatpush1.msra.mxu0 0.0
          %564 = vmatprep.subr.mxu0 0.0
          %565 = vmatpush1.msra.mxu0 0.0
          %566 = vmatprep.subr.mxu0 0.0
          %567 = vmatpush1.msra.mxu0 0.0
          %568 = vmatprep.subr.mxu0 0.0
          %569 = vmatpush1.msra.mxu0 0.0
          %570 = vmatprep.subr.mxu0 0.0
          %571 = vmatpush1.msra.mxu0 0.0
          %572 = vmatprep.subr.mxu0 0.0
          %573 = vmatpush1.msra.mxu0 0.0
          %574 = vmatprep.subr.mxu0 0.0
          %575 = vmatpush1.msra.mxu0 0.0
          %576 = vmatprep.subr.mxu0 0.0
          %577 = vmatpush1.msra.mxu0 0.0
          %578 = vmatprep.subr.mxu0 0.0
          %579 = vmatpush1.msra.mxu0 0.0
          %580 = vmatprep.subr.mxu0 0.0
          %581 = vmatpush1.msra.mxu0 0.0
          %582 = vmatprep.subr.mxu0 0.0
          %583 = vmatpush1.msra.mxu0 0.0
          %584 = vmatprep.subr.mxu0 0.0
          %585 = vmatpush1.msra.mxu0 0.0
          %586 = vmatprep.subr.mxu0 0.0
          %587 = vmatpush1.msra.mxu0 0.0
          %588 = vmatprep.subr.mxu0 0.0
          %589 = vmatpush1.msra.mxu0 0.0
          %590 = vmatprep.subr.mxu0 0.0
          %591 = vmatpush1.msra.mxu0 0.0
          %592 = vmatprep.subr.mxu0 0.0
          %593 = vmatpush1.msra.mxu0 0.0
          %594 = vmatprep.subr.mxu0 0.0
          %595 = vmatpush1.msra.mxu0 0.0
          %596 = vmatprep.subr.mxu0 0.0
          %597 = vmatpush1.msra.mxu0 0.0
          %598 = vmatprep.subr.mxu0 0.0
          %599 = vmatpush1.msra.mxu0 0.0
          %600 = vmatprep.mubr.f32.mxu0 0.0
          %601 = vmatmul.mubr.f32.gmra.mrb[0].mxu0 %v437
          %v602 = vpop.f32.mrb[0].mxu0
          %v603 = vadd.f32 %v434, %v602
          %v604 = vpop.f32.mrb[0].mxu0
          %605 = vmatprep.mubr.f32.mxu0 0.0
          %606 = vmatmul.mubr.f32.gmra.mrb[0].mxu0 %v440
          %v607 = vpop.f32.mrb[0].mxu0
          %v608 = vadd.f32 %v434, %v607
          %v609 = vpop.f32.mrb[0].mxu0
          %610 = vmatprep.mubr.f32.mxu0 0.0
          %611 = vmatmul.mubr.f32.gmra.mrb[0].mxu0 %v443
          %v612 = vpop.f32.mrb[0].mxu0
          %v613 = vadd.f32 %v434, %v612
          %v614 = vpop.f32.mrb[0].mxu0
          %615 = vmatprep.mubr.f32.mxu0 0.0
          %616 = vmatmul.mubr.f32.gmra.mrb[0].mxu0 %v446
          %v617 = vpop.f32.mrb[0].mxu0
          %v618 = vadd.f32 %v434, %v617
          %v619 = vpop.f32.mrb[0].mxu0
          %620 = vmatprep.mubr.f32.mxu0 0.0
          %621 = vmatmul.mubr.f32.gmra.mrb[0].mxu0 %v449
          %v622 = vpop.f32.mrb[0].mxu0
          %v623 = vadd.f32 %v434, %v622
          %v624 = vpop.f32.mrb[0].mxu0
          %625 = vmatprep.mubr.f32.mxu0 0.0
          %626 = vmatmul.mubr.f32.gmra.mrb[0].mxu0 %v452
          %v627 = vpop.f32.mrb[0].mxu0
          %v628 = vadd.f32 %v434, %v627
          %v629 = vpop.f32.mrb[0].mxu0
          %630 = vmatprep.mubr.f32.mxu0 0.0
          %631 = vmatmul.mubr.f32.gmra.mrb[0].mxu0 %v455
          %v632 = vpop.f32.mrb[0].mxu0
          %v633 = vadd.f32 %v434, %v632
          %v634 = vpop.f32.mrb[0].mxu0
          %635 = vmatprep.mubr.f32.mxu0 0.0
          %636 = vmatmul.mubr.f32.gmra.mrb[0].mxu0 %v458
          %v637 = vpop.f32.mrb[0].mxu0
          %v638 = vadd.f32 %v434, %v637
          %v639 = vpop.f32.mrb[0].mxu0
          %640 = vmatprep.mubr.f32.mxu0 0.0
          %641 = vmatmul.mubr.f32.gmra.mrb[0].mxu0 %v461
          %v642 = vpop.f32.mrb[0].mxu0
          %v643 = vadd.f32 %v434, %v642
          %v644 = vpop.f32.mrb[0].mxu0
          %645 = vmatprep.mubr.f32.mxu0 0.0
          %646 = vmatmul.mubr.f32.gmra.mrb[0].mxu0 %v464
          %v647 = vpop.f32.mrb[0].mxu0
          %v648 = vadd.f32 %v434, %v647
          %v649 = vpop.f32.mrb[0].mxu0
          %650 = vmatprep.mubr.f32.mxu0 0.0
          %651 = vmatmul.mubr.f32.gmra.mrb[0].mxu0 %v467
          %v652 = vpop.f32.mrb[0].mxu0
          %v653 = vadd.f32 %v434, %v652
          %v654 = vpop.f32.mrb[0].mxu0
          %655 = vmatprep.mubr.f32.mxu0 0.0
          %656 = vmatmul.mubr.f32.gmra.mrb[0].mxu0 %v470
          %v657 = vpop.f32.mrb[0].mxu0
          %v658 = vadd.f32 %v434, %v657
          %v659 = vpop.f32.mrb[0].mxu0
          %660 = vmatprep.mubr.f32.mxu0 0.0
          %661 = vmatmul.mubr.f32.gmra.mrb[0].mxu0 %v473
          %v662 = vpop.f32.mrb[0].mxu0
          %v663 = vadd.f32 %v434, %v662
          %v664 = vpop.f32.mrb[0].mxu0
          %665 = vmatprep.mubr.f32.mxu0 0.0
          %666 = vmatmul.mubr.f32.gmra.mrb[0].mxu0 %v476
          %v667 = vpop.f32.mrb[0].mxu0
          %v668 = vadd.f32 %v434, %v667
          %v669 = vpop.f32.mrb[0].mxu0
          %670 = vmatprep.mubr.f32.mxu0 0.0
          %671 = vmatmul.mubr.f32.gmra.mrb[0].mxu0 %v479
          %v672 = vpop.f32.mrb[0].mxu0
          %v673 = vadd.f32 %v434, %v672
          %v674 = vpop.f32.mrb[0].mxu0
          %675 = vmatprep.mubr.f32.mxu0 0.0
          %676 = vmatmul.mubr.f32.gmra.mrb[0].mxu0 %v482
          %v677 = vpop.f32.mrb[0].mxu0
          %v678 = vadd.f32 %v434, %v677
          %v679 = vpop.f32.mrb[0].mxu0
          %680 = vmatprep.mubr.f32.mxu0 0.0
          %681 = vmatmul.mubr.f32.gmra.mrb[0].mxu0 %v485
          %v682 = vpop.f32.mrb[0].mxu0
          %v683 = vadd.f32 %v434, %v682
          %v684 = vpop.f32.mrb[0].mxu0
          %685 = vmatprep.mubr.f32.mxu0 0.0
          %686 = vmatmul.mubr.f32.gmra.mrb[0].mxu0 %v488
          %v687 = vpop.f32.mrb[0].mxu0
          %v688 = vadd.f32 %v434, %v687
          %v689 = vpop.f32.mrb[0].mxu0
          %690 = vmatprep.mubr.f32.mxu0 0.0
          %691 = vmatmul.mubr.f32.gmra.mrb[0].mxu0 %v491
          %v692 = vpop.f32.mrb[0].mxu0
          %v693 = vadd.f32 %v434, %v692
          %v694 = vpop.f32.mrb[0].mxu0
          %695 = vmatprep.mubr.f32.mxu0 0.0
          %696 = vmatmul.mubr.f32.gmra.mrb[0].mxu0 %v494
          %v697 = vpop.f32.mrb[0].mxu0
          %v698 = vadd.f32 %v434, %v697
          %v699 = vpop.f32.mrb[0].mxu0
          %700 = vmatprep.mubr.f32.mxu0 0.0
          %701 = vmatmul.mubr.f32.gmra.mrb[0].mxu0 %v497
          %v702 = vpop.f32.mrb[0].mxu0
          %v703 = vadd.f32 %v434, %v702
          %v704 = vpop.f32.mrb[0].mxu0
          %705 = vmatprep.mubr.f32.mxu0 0.0
          %706 = vmatmul.mubr.f32.gmra.mrb[0].mxu0 %v500
          %v707 = vpop.f32.mrb[0].mxu0
          %v708 = vadd.f32 %v434, %v707
          %v709 = vpop.f32.mrb[0].mxu0
          %710 = vmatprep.mubr.f32.mxu0 0.0
          %711 = vmatmul.mubr.f32.gmra.mrb[0].mxu0 %v503
          %v712 = vpop.f32.mrb[0].mxu0
          %v713 = vadd.f32 %v434, %v712
          %v714 = vpop.f32.mrb[0].mxu0
          %715 = vmatprep.mubr.f32.mxu0 0.0
          %716 = vmatmul.mubr.f32.gmra.mrb[0].mxu0 %v506
          %v717 = vpop.f32.mrb[0].mxu0
          %v718 = vadd.f32 %v434, %v717
          %v719 = vpop.f32.mrb[0].mxu0
          %720 = vmatprep.mubr.f32.mxu0 0.0
          %721 = vmatmul.mubr.f32.gmra.mrb[0].mxu0 %v509
          %v722 = vpop.f32.mrb[0].mxu0
          %v723 = vadd.f32 %v434, %v722
          %v724 = vpop.f32.mrb[0].mxu0
          %725 = vmatprep.mubr.f32.mxu0 0.0
          %726 = vmatmul.mubr.f32.gmra.mrb[0].mxu0 %v512
          %v727 = vpop.f32.mrb[0].mxu0
          %v728 = vadd.f32 %v434, %v727
          %v729 = vpop.f32.mrb[0].mxu0
          %730 = vmatprep.mubr.f32.mxu0 0.0
          %731 = vmatmul.mubr.f32.gmra.mrb[0].mxu0 %v515
          %v732 = vpop.f32.mrb[0].mxu0
          %v733 = vadd.f32 %v434, %v732
          %v734 = vpop.f32.mrb[0].mxu0
          %735 = vmatprep.mubr.f32.mxu0 0.0
          %736 = vmatmul.mubr.f32.gmra.mrb[0].mxu0 %v518
          %v737 = vpop.f32.mrb[0].mxu0
          %v738 = vadd.f32 %v434, %v737
          %v739 = vpop.f32.mrb[0].mxu0
          %740 = vmatprep.mubr.f32.mxu0 0.0
          %741 = vmatmul.mubr.f32.gmra.mrb[0].mxu0 %v521
          %v742 = vpop.f32.mrb[0].mxu0
          %v743 = vadd.f32 %v434, %v742
          %v744 = vpop.f32.mrb[0].mxu0
          %745 = vmatprep.mubr.f32.mxu0 0.0
          %746 = vmatmul.mubr.f32.gmra.mrb[0].mxu0 %v524
          %v747 = vpop.f32.mrb[0].mxu0
          %v748 = vadd.f32 %v434, %v747
          %v749 = vpop.f32.mrb[0].mxu0
          %750 = vmatprep.mubr.f32.mxu0 0.0
          %751 = vmatmul.mubr.f32.gmra.mrb[0].mxu0 %v527
          %v752 = vpop.f32.mrb[0].mxu0
          %v753 = vadd.f32 %v434, %v752
          %v754 = vpop.f32.mrb[0].mxu0
          %755 = vmatprep.mubr.f32.mxu0 0.0
          %756 = vmatmul.mubr.f32.gmra.mrb[0].mxu0 %v530
          %v757 = vpop.f32.mrb[0].mxu0
          %v758 = vadd.f32 %v434, %v757
          %v759 = vpop.f32.mrb[0].mxu0
          %760 = vdwg.mxu0
          %v761 = vmax.f32 %v603, 0.0
          %v762 = vmax.f32 %v608, 0.0
          %v763 = vmax.f32 %v613, 0.0
          %v764 = vmax.f32 %v618, 0.0
          %v765 = vmax.f32 %v623, 0.0
          %v766 = vmax.f32 %v628, 0.0
          %v767 = vmax.f32 %v633, 0.0
          %v768 = vmax.f32 %v638, 0.0
          %v769 = vmax.f32 %v643, 0.0
          %v770 = vmax.f32 %v648, 0.0
          %v771 = vmax.f32 %v653, 0.0
          %v772 = vmax.f32 %v658, 0.0
          %v773 = vmax.f32 %v663, 0.0
          %v774 = vmax.f32 %v668, 0.0
          %v775 = vmax.f32 %v673, 0.0
          %v776 = vmax.f32 %v678, 0.0
          %v777 = vmax.f32 %v683, 0.0
          %v778 = vmax.f32 %v688, 0.0
          %v779 = vmax.f32 %v693, 0.0
          %v780 = vmax.f32 %v698, 0.0
          %v781 = vmax.f32 %v703, 0.0
          %v782 = vmax.f32 %v708, 0.0
          %v783 = vmax.f32 %v713, 0.0
          %v784 = vmax.f32 %v718, 0.0
          %v785 = vmax.f32 %v723, 0.0
          %v786 = vmax.f32 %v728, 0.0
          %v787 = vmax.f32 %v733, 0.0
          %v788 = vmax.f32 %v738, 0.0
          %v789 = vmax.f32 %v743, 0.0
          %v790 = vmax.f32 %v748, 0.0
          %v791 = vmax.f32 %v753, 0.0
          %v792 = vmax.f32 %v758, 0.0
          %s793 = scalar_lea.vmem [#allocation2], 24
          %794 = vst.msk [vmem:[%s793 + $0x1] sm:$0xff] %vm350, %v761
          %795 = vst.msk [vmem:[%s793 + $0x9] sm:$0xff] %vm350, %v762
          %796 = vst.msk [vmem:[%s793 + $0x19] sm:$0xff] %vm350, %v763
          %797 = vst.msk [vmem:[%s793 + $0x21] sm:$0xff] %vm350, %v764
          %798 = vst.msk [vmem:[%s793 + $0x31] sm:$0xff] %vm350, %v765
          %799 = vst.msk [vmem:[%s793 + $0x39] sm:$0xff] %vm350, %v766
          %800 = vst.msk [vmem:[%s793 + $0x49] sm:$0xff] %vm350, %v767
          %801 = vst.msk [vmem:[%s793 + $0x51] sm:$0xff] %vm350, %v768
          %802 = vst.msk [vmem:[%s793 + $0x61] sm:$0xff] %vm350, %v769
          %803 = vst.msk [vmem:[%s793 + $0x69] sm:$0xff] %vm350, %v770
          %804 = vst.msk [vmem:[%s793 + $0x79] sm:$0xff] %vm350, %v771
          %805 = vst.msk [vmem:[%s793 + $0x81] sm:$0xff] %vm350, %v772
          %806 = vst.msk [vmem:[%s793 + $0x91] sm:$0xff] %vm350, %v773
          %807 = vst.msk [vmem:[%s793 + $0x99] sm:$0xff] %vm350, %v774
          %808 = vst.msk [vmem:[%s793 + $0xa9] sm:$0xff] %vm350, %v775
          %809 = vst.msk [vmem:[%s793 + $0xb1] sm:$0xff] %vm350, %v776
          %810 = vst.msk [vmem:[%s793 + $0xc1] sm:$0xff] %vm350, %v777
          %811 = vst.msk [vmem:[%s793 + $0xc9] sm:$0xff] %vm350, %v778
          %812 = vst.msk [vmem:[%s793 + $0xd9] sm:$0xff] %vm350, %v779
          %813 = vst.msk [vmem:[%s793 + $0xe1] sm:$0xff] %vm350, %v780
          %814 = vst.msk [vmem:[%s793 + $0xf1] sm:$0xff] %vm350, %v781
          %815 = vst.msk [vmem:[%s793 + $0xf9] sm:$0xff] %vm350, %v782
          %816 = vst.msk [vmem:[%s793 + $0x109] sm:$0xff] %vm350, %v783
          %817 = vst.msk [vmem:[%s793 + $0x111] sm:$0xff] %vm350, %v784
          %818 = vst.msk [vmem:[%s793 + $0x121] sm:$0xff] %vm350, %v785
          %819 = vst.msk [vmem:[%s793 + $0x129] sm:$0xff] %vm350, %v786
          %820 = vst.msk [vmem:[%s793 + $0x139] sm:$0xff] %vm350, %v787
          %821 = vst.msk [vmem:[%s793 + $0x141] sm:$0xff] %vm350, %v788
          %822 = vst.msk [vmem:[%s793 + $0x151] sm:$0xff] %vm350, %v789
          %823 = vst.msk [vmem:[%s793 + $0x159] sm:$0xff] %vm350, %v790
          %824 = vst.msk [vmem:[%s793 + $0x169] sm:$0xff] %vm350, %v791
          %825 = vst.msk [vmem:[%s793 + $0x171] sm:$0xff] %vm350, %v792
        $region60: #{tpu_custom_call.1} parent=55 // pred_fallthru
          _
        %s826 = smul.u32 %s28, 4
        %s827 = smul.u32 %s826, 24
        %s828 = scalar_lea.vmem [#allocation2], %s827
        %v829 = vld [vmem:[%s828] sm:$0xff]
        %v830 = vld [vmem:[%s828 + $0x8] sm:$0xff]
        %v831 = vld [vmem:[%s828 + $0x10] sm:$0x3]
        %v832 = vld [vmem:[%s828 + $0x18] sm:$0xff]
        %v833 = vld [vmem:[%s828 + $0x20] sm:$0xff]
        %v834 = vld [vmem:[%s828 + $0x28] sm:$0x3]
        %v835 = vld [vmem:[%s828 + $0x30] sm:$0xff]
        %v836 = vld [vmem:[%s828 + $0x38] sm:$0xff]
        %v837 = vld [vmem:[%s828 + $0x40] sm:$0x3]
        %v838 = vld [vmem:[%s828 + $0x48] sm:$0xff]
        %v839 = vld [vmem:[%s828 + $0x50] sm:$0xff]
        %v840 = vld [vmem:[%s828 + $0x58] sm:$0x3]
        %v841 = vld [vmem:[%s828 + $0x60] sm:$0xff]
        %v842 = vld [vmem:[%s828 + $0x68] sm:$0xff]
        %v843 = vld [vmem:[%s828 + $0x70] sm:$0x3]
        %v844 = vld [vmem:[%s828 + $0x78] sm:$0xff]
        %v845 = vld [vmem:[%s828 + $0x80] sm:$0xff]
        %v846 = vld [vmem:[%s828 + $0x88] sm:$0x3]
        %vm859 = vcmask 1046528
        %v860 = vrot.slane %v829, 1
        %v861 = vrot.slane %v830, 1
        %v862 = vsel %vm859, %v860, %v861
        %v863 = vrot.slane %v831, 1
        %v864 = vsel %vm859, %v861, %v863
        %v865 = vrot.slane %v832, 1
        %v866 = vrot.slane %v833, 1
        %v867 = vsel %vm859, %v865, %v866
        %v868 = vrot.slane %v834, 1
        %v869 = vsel %vm859, %v866, %v868
        %v870 = vrot.slane %v835, 1
        %v871 = vrot.slane %v836, 1
        %v872 = vsel %vm859, %v870, %v871
        %v873 = vrot.slane %v837, 1
        %v874 = vsel %vm859, %v871, %v873
        %v875 = vrot.slane %v838, 1
        %v876 = vrot.slane %v839, 1
        %v877 = vsel %vm859, %v875, %v876
        %v878 = vrot.slane %v840, 1
        %v879 = vsel %vm859, %v876, %v878
        %880 = vrot.lane.b32.xlu0 %v862, 4
        %v881 = vpop.permute.xlu0 %880
        %882 = vrot.lane.b32.xlu0 %v864, 4
        %v883 = vpop.permute.xlu0 %882
        %884 = vrot.lane.b32.xlu0 %v867, 4
        %v885 = vpop.permute.xlu0 %884
        %886 = vrot.lane.b32.xlu0 %v869, 4
        %v887 = vpop.permute.xlu0 %886
        %888 = vrot.lane.b32.xlu0 %v872, 4
        %v889 = vpop.permute.xlu0 %888
        %890 = vrot.lane.b32.xlu0 %v874, 4
        %v891 = vpop.permute.xlu0 %890
        %892 = vrot.lane.b32.xlu0 %v877, 4
        %v893 = vpop.permute.xlu0 %892
        %894 = vrot.lane.b32.xlu0 %v879, 4
        %v895 = vpop.permute.xlu0 %894
        %vm904 = vcmask 1045504
        %v905 = vrot.slane %v829, 2
        %v906 = vrot.slane %v830, 2
        %v907 = vsel %vm904, %v905, %v906
        %v908 = vrot.slane %v831, 2
        %v909 = vsel %vm904, %v906, %v908
        %v910 = vrot.slane %v832, 2
        %v911 = vrot.slane %v833, 2
        %v912 = vsel %vm904, %v910, %v911
        %v913 = vrot.slane %v834, 2
        %v914 = vsel %vm904, %v911, %v913
        %v915 = vrot.slane %v835, 2
        %v916 = vrot.slane %v836, 2
        %v917 = vsel %vm904, %v915, %v916
        %v918 = vrot.slane %v837, 2
        %v919 = vsel %vm904, %v916, %v918
        %v920 = vrot.slane %v838, 2
        %v921 = vrot.slane %v839, 2
        %v922 = vsel %vm904, %v920, %v921
        %v923 = vrot.slane %v840, 2
        %v924 = vsel %vm904, %v921, %v923
        %925 = vrot.lane.b32.xlu0 %v907, 8
        %v926 = vpop.permute.xlu0 %925
        %927 = vrot.lane.b32.xlu0 %v909, 8
        %v928 = vpop.permute.xlu0 %927
        %929 = vrot.lane.b32.xlu0 %v912, 8
        %v930 = vpop.permute.xlu0 %929
        %931 = vrot.lane.b32.xlu0 %v914, 8
        %v932 = vpop.permute.xlu0 %931
        %933 = vrot.lane.b32.xlu0 %v917, 8
        %v934 = vpop.permute.xlu0 %933
        %935 = vrot.lane.b32.xlu0 %v919, 8
        %v936 = vpop.permute.xlu0 %935
        %937 = vrot.lane.b32.xlu0 %v922, 8
        %v938 = vpop.permute.xlu0 %937
        %939 = vrot.lane.b32.xlu0 %v924, 8
        %v940 = vpop.permute.xlu0 %939
        %vm949 = vcmask 31744
        %v950 = vsel %vm949, %v829, %v881
        %v951 = vsel %vm949, %v830, %v883
        %v952 = vsel %vm949, %v832, %v885
        %v953 = vsel %vm949, %v833, %v887
        %v954 = vsel %vm949, %v835, %v889
        %v955 = vsel %vm949, %v836, %v891
        %v956 = vsel %vm949, %v838, %v893
        %v957 = vsel %vm949, %v839, %v895
        %vm958 = vcmask 64512
        %v959 = vsel %vm958, %v950, %v926
        %v960 = vsel %vm958, %v951, %v928
        %v961 = vsel %vm958, %v952, %v930
        %v962 = vsel %vm958, %v953, %v932
        %v963 = vsel %vm958, %v954, %v934
        %v964 = vsel %vm958, %v955, %v936
        %v965 = vsel %vm958, %v956, %v938
        %v966 = vsel %vm958, %v957, %v940
        %v967 = vld [vmem:[%s3] sm:$0xff]
        %v968 = vld [vmem:[%s3 + $0x8] sm:$0xf]
        %v972 = vrot.slane %v841, 1
        %v973 = vrot.slane %v842, 1
        %v974 = vsel %vm859, %v972, %v973
        %v975 = vrot.slane %v843, 1
        %v976 = vsel %vm859, %v973, %v975
        %977 = vrot.lane.b32.xlu0 %v974, 4
        %v978 = vpop.permute.xlu0 %977
        %979 = vrot.lane.b32.xlu0 %v976, 4
        %v980 = vpop.permute.xlu0 %979
        %v983 = vrot.slane %v841, 2
        %v984 = vrot.slane %v842, 2
        %v985 = vsel %vm904, %v983, %v984
        %v986 = vrot.slane %v843, 2
        %v987 = vsel %vm904, %v984, %v986
        %988 = vrot.lane.b32.xlu0 %v985, 8
        %v989 = vpop.permute.xlu0 %988
        %990 = vrot.lane.b32.xlu0 %v987, 8
        %v991 = vpop.permute.xlu0 %990
        %v994 = vsel %vm949, %v841, %v978
        %v995 = vsel %vm949, %v842, %v980
        %v996 = vsel %vm958, %v994, %v989
        %v997 = vsel %vm958, %v995, %v991
        %s998 = scalar_lea.vmem %s3, 16
        %v999 = vld [vmem:[%s998] sm:$0xff]
        %v1000 = vld [vmem:[%s998 + $0x8] sm:$0xf]
        %vm1001 = vcmask 97280
        %v1003 = vsel %vm1001, %v961, 0
        %v1006 = vsel %vm1001, %v962, 0
        %v1009 = vsel %vm1001, %v963, 0
        %v1012 = vsel %vm1001, %v964, 0
        %v1015 = vsel %vm1001, %v965, 0
        %v1018 = vsel %vm1001, %v966, 0
        %v1021 = vsel %vm1001, %v996, 0
        %v1024 = vsel %vm1001, %v997, 0
        %vm1026 = vcmask 1043456
        %v1028 = vsel %vm1026, %v1000, 0
        %1030 = vmatprep.subr.mxu0 0.0
        %1031 = vmatpush1.msra.mxu0 %v999
        %1032 = vmatprep.subr.mxu0 0.0
        %1033 = vmatpush1.msra.mxu0 %v1028
        %1034 = vmatprep.subr.mxu0 0.0
        %1035 = vmatpush1.msra.mxu0 0.0
        %1036 = vmatprep.subr.mxu0 0.0
        %1037 = vmatpush1.msra.mxu0 0.0
        %1038 = vmatprep.subr.mxu0 0.0
        %1039 = vmatpush1.msra.mxu0 0.0
        %1040 = vmatprep.subr.mxu0 0.0
        %1041 = vmatpush1.msra.mxu0 0.0
        %1042 = vmatprep.subr.mxu0 0.0
        %1043 = vmatpush1.msra.mxu0 0.0
        %1044 = vmatprep.subr.mxu0 0.0
        %1045 = vmatpush1.msra.mxu0 0.0
        %1046 = vmatprep.subr.mxu0 0.0
        %1047 = vmatpush1.msra.mxu0 0.0
        %1048 = vmatprep.subr.mxu0 0.0
        %1049 = vmatpush1.msra.mxu0 0.0
        %1050 = vmatprep.subr.mxu0 0.0
        %1051 = vmatpush1.msra.mxu0 0.0
        %1052 = vmatprep.subr.mxu0 0.0
        %1053 = vmatpush1.msra.mxu0 0.0
        %1054 = vmatprep.subr.mxu0 0.0
        %1055 = vmatpush1.msra.mxu0 0.0
        %1056 = vmatprep.subr.mxu0 0.0
        %1057 = vmatpush1.msra.mxu0 0.0
        %1058 = vmatprep.subr.mxu0 0.0
        %1059 = vmatpush1.msra.mxu0 0.0
        %1060 = vmatprep.subr.mxu0 0.0
        %1061 = vmatpush1.msra.mxu0 0.0
        %1062 = vmatprep.subr.mxu0 0.0
        %1063 = vmatpush1.msra.mxu0 0.0
        %1064 = vmatprep.subr.mxu0 0.0
        %1065 = vmatpush1.msra.mxu0 0.0
        %1066 = vmatprep.subr.mxu0 0.0
        %1067 = vmatpush1.msra.mxu0 0.0
        %1068 = vmatprep.subr.mxu0 0.0
        %1069 = vmatpush1.msra.mxu0 0.0
        %1070 = vmatprep.subr.mxu0 0.0
        %1071 = vmatpush1.msra.mxu0 0.0
        %1072 = vmatprep.subr.mxu0 0.0
        %1073 = vmatpush1.msra.mxu0 0.0
        %1074 = vmatprep.subr.mxu0 0.0
        %1075 = vmatpush1.msra.mxu0 0.0
        %1076 = vmatprep.subr.mxu0 0.0
        %1077 = vmatpush1.msra.mxu0 0.0
        %1078 = vmatprep.subr.mxu0 0.0
        %1079 = vmatpush1.msra.mxu0 0.0
        %1080 = vmatprep.subr.mxu0 0.0
        %1081 = vmatpush1.msra.mxu0 0.0
        %1082 = vmatprep.subr.mxu0 0.0
        %1083 = vmatpush1.msra.mxu0 0.0
        %1084 = vmatprep.subr.mxu0 0.0
        %1085 = vmatpush1.msra.mxu0 0.0
        %1086 = vmatprep.subr.mxu0 0.0
        %1087 = vmatpush1.msra.mxu0 0.0
        %1088 = vmatprep.subr.mxu0 0.0
        %1089 = vmatpush1.msra.mxu0 0.0
        %1090 = vmatprep.subr.mxu0 0.0
        %1091 = vmatpush1.msra.mxu0 0.0
        %1092 = vmatprep.subr.mxu0 0.0
        %1093 = vmatpush1.msra.mxu0 0.0
        %1094 = vmatprep.mubr.f32.mxu0 0.0
        %1095 = vmatmul.mubr.f32.gmra.mrb[0].mxu0 %v1003
        %v1096 = vpop.f32.mrb[0].mxu0
        %v1097 = vadd.f32 0.0, %v1096
        %v1098 = vpop.f32.mrb[0].mxu0
        %1099 = vmatprep.mubr.f32.mxu0 0.0
        %1100 = vmatmul.mubr.f32.gmra.mrb[0].mxu0 %v1006
        %v1101 = vpop.f32.mrb[0].mxu0
        %v1102 = vadd.f32 0.0, %v1101
        %v1103 = vpop.f32.mrb[0].mxu0
        %1104 = vmatprep.mubr.f32.mxu0 0.0
        %1105 = vmatmul.mubr.f32.gmra.mrb[0].mxu0 %v1009
        %v1106 = vpop.f32.mrb[0].mxu0
        %v1107 = vadd.f32 0.0, %v1106
        %v1108 = vpop.f32.mrb[0].mxu0
        %1109 = vmatprep.mubr.f32.mxu0 0.0
        %1110 = vmatmul.mubr.f32.gmra.mrb[0].mxu0 %v1012
        %v1111 = vpop.f32.mrb[0].mxu0
        %v1112 = vadd.f32 0.0, %v1111
        %v1113 = vpop.f32.mrb[0].mxu0
        %1114 = vmatprep.mubr.f32.mxu0 0.0
        %1115 = vmatmul.mubr.f32.gmra.mrb[0].mxu0 %v1015
        %v1116 = vpop.f32.mrb[0].mxu0
        %v1117 = vadd.f32 0.0, %v1116
        %v1118 = vpop.f32.mrb[0].mxu0
        %1119 = vmatprep.mubr.f32.mxu0 0.0
        %1120 = vmatmul.mubr.f32.gmra.mrb[0].mxu0 %v1018
        %v1121 = vpop.f32.mrb[0].mxu0
        %v1122 = vadd.f32 0.0, %v1121
        %v1123 = vpop.f32.mrb[0].mxu0
        %1124 = vmatprep.mubr.f32.mxu0 0.0
        %1125 = vmatmul.mubr.f32.gmra.mrb[0].mxu0 %v1021
        %v1126 = vpop.f32.mrb[0].mxu0
        %v1127 = vadd.f32 0.0, %v1126
        %v1128 = vpop.f32.mrb[0].mxu0
        %1129 = vmatprep.mubr.f32.mxu0 0.0
        %1130 = vmatmul.mubr.f32.gmra.mrb[0].mxu0 %v1024
        %v1131 = vpop.f32.mrb[0].mxu0
        %v1132 = vadd.f32 0.0, %v1131
        %v1133 = vpop.f32.mrb[0].mxu0
        %1134 = vdwg.mxu0
        %v1136 = vsel %vm1001, %v959, 0
        %v1139 = vsel %vm1001, %v960, 0
        %v1142 = vsel %vm1026, %v968, 0
        %1144 = vmatprep.subr.mxu0 0.0
        %1145 = vmatpush1.msra.mxu0 %v967
        %1146 = vmatprep.subr.mxu0 0.0
        %1147 = vmatpush1.msra.mxu0 %v1142
        %1148 = vmatprep.subr.mxu0 0.0
        %1149 = vmatpush1.msra.mxu0 0.0
        %1150 = vmatprep.subr.mxu0 0.0
        %1151 = vmatpush1.msra.mxu0 0.0
        %1152 = vmatprep.subr.mxu0 0.0
        %1153 = vmatpush1.msra.mxu0 0.0
        %1154 = vmatprep.subr.mxu0 0.0
        %1155 = vmatpush1.msra.mxu0 0.0
        %1156 = vmatprep.subr.mxu0 0.0
        %1157 = vmatpush1.msra.mxu0 0.0
        %1158 = vmatprep.subr.mxu0 0.0
        %1159 = vmatpush1.msra.mxu0 0.0
        %1160 = vmatprep.subr.mxu0 0.0
        %1161 = vmatpush1.msra.mxu0 0.0
        %1162 = vmatprep.subr.mxu0 0.0
        %1163 = vmatpush1.msra.mxu0 0.0
        %1164 = vmatprep.subr.mxu0 0.0
        %1165 = vmatpush1.msra.mxu0 0.0
        %1166 = vmatprep.subr.mxu0 0.0
        %1167 = vmatpush1.msra.mxu0 0.0
        %1168 = vmatprep.subr.mxu0 0.0
        %1169 = vmatpush1.msra.mxu0 0.0
        %1170 = vmatprep.subr.mxu0 0.0
        %1171 = vmatpush1.msra.mxu0 0.0
        %1172 = vmatprep.subr.mxu0 0.0
        %1173 = vmatpush1.msra.mxu0 0.0
        %1174 = vmatprep.subr.mxu0 0.0
        %1175 = vmatpush1.msra.mxu0 0.0
        %1176 = vmatprep.subr.mxu0 0.0
        %1177 = vmatpush1.msra.mxu0 0.0
        %1178 = vmatprep.subr.mxu0 0.0
        %1179 = vmatpush1.msra.mxu0 0.0
        %1180 = vmatprep.subr.mxu0 0.0
        %1181 = vmatpush1.msra.mxu0 0.0
        %1182 = vmatprep.subr.mxu0 0.0
        %1183 = vmatpush1.msra.mxu0 0.0
        %1184 = vmatprep.subr.mxu0 0.0
        %1185 = vmatpush1.msra.mxu0 0.0
        %1186 = vmatprep.subr.mxu0 0.0
        %1187 = vmatpush1.msra.mxu0 0.0
        %1188 = vmatprep.subr.mxu0 0.0
        %1189 = vmatpush1.msra.mxu0 0.0
        %1190 = vmatprep.subr.mxu0 0.0
        %1191 = vmatpush1.msra.mxu0 0.0
        %1192 = vmatprep.subr.mxu0 0.0
        %1193 = vmatpush1.msra.mxu0 0.0
        %1194 = vmatprep.subr.mxu0 0.0
        %1195 = vmatpush1.msra.mxu0 0.0
        %1196 = vmatprep.subr.mxu0 0.0
        %1197 = vmatpush1.msra.mxu0 0.0
        %1198 = vmatprep.subr.mxu0 0.0
        %1199 = vmatpush1.msra.mxu0 0.0
        %1200 = vmatprep.subr.mxu0 0.0
        %1201 = vmatpush1.msra.mxu0 0.0
        %1202 = vmatprep.subr.mxu0 0.0
        %1203 = vmatpush1.msra.mxu0 0.0
        %1204 = vmatprep.subr.mxu0 0.0
        %1205 = vmatpush1.msra.mxu0 0.0
        %1206 = vmatprep.subr.mxu0 0.0
        %1207 = vmatpush1.msra.mxu0 0.0
        %1208 = vmatprep.mubr.f32.mxu0 0.0
        %1209 = vmatmul.mubr.f32.gmra.mrb[0].mxu0 %v1136
        %v1210 = vpop.f32.mrb[0].mxu0
        %v1211 = vadd.f32 %v1097, %v1210
        %v1212 = vpop.f32.mrb[0].mxu0
        %1213 = vmatprep.mubr.f32.mxu0 0.0
        %1214 = vmatmul.mubr.f32.gmra.mrb[0].mxu0 %v1139
        %v1215 = vpop.f32.mrb[0].mxu0
        %v1216 = vadd.f32 %v1102, %v1215
        %v1217 = vpop.f32.mrb[0].mxu0
        %1218 = vmatprep.mubr.f32.mxu0 0.0
        %1219 = vmatmul.mubr.f32.gmra.mrb[0].mxu0 %v1003
        %v1220 = vpop.f32.mrb[0].mxu0
        %v1221 = vadd.f32 %v1107, %v1220
        %v1222 = vpop.f32.mrb[0].mxu0
        %1223 = vmatprep.mubr.f32.mxu0 0.0
        %1224 = vmatmul.mubr.f32.gmra.mrb[0].mxu0 %v1006
        %v1225 = vpop.f32.mrb[0].mxu0
        %v1226 = vadd.f32 %v1112, %v1225
        %v1227 = vpop.f32.mrb[0].mxu0
        %1228 = vmatprep.mubr.f32.mxu0 0.0
        %1229 = vmatmul.mubr.f32.gmra.mrb[0].mxu0 %v1009
        %v1230 = vpop.f32.mrb[0].mxu0
        %v1231 = vadd.f32 %v1117, %v1230
        %v1232 = vpop.f32.mrb[0].mxu0
        %1233 = vmatprep.mubr.f32.mxu0 0.0
        %1234 = vmatmul.mubr.f32.gmra.mrb[0].mxu0 %v1012
        %v1235 = vpop.f32.mrb[0].mxu0
        %v1236 = vadd.f32 %v1122, %v1235
        %v1237 = vpop.f32.mrb[0].mxu0
        %1238 = vmatprep.mubr.f32.mxu0 0.0
        %1239 = vmatmul.mubr.f32.gmra.mrb[0].mxu0 %v1015
        %v1240 = vpop.f32.mrb[0].mxu0
        %v1241 = vadd.f32 %v1127, %v1240
        %v1242 = vpop.f32.mrb[0].mxu0
        %1243 = vmatprep.mubr.f32.mxu0 0.0
        %1244 = vmatmul.mubr.f32.gmra.mrb[0].mxu0 %v1018
        %v1245 = vpop.f32.mrb[0].mxu0
        %v1246 = vadd.f32 %v1132, %v1245
        %v1247 = vpop.f32.mrb[0].mxu0
        %1248 = vdwg.mxu0
        %v1252 = vrot.slane %v844, 1
        %v1253 = vrot.slane %v845, 1
        %v1254 = vsel %vm859, %v1252, %v1253
        %v1255 = vrot.slane %v846, 1
        %v1256 = vsel %vm859, %v1253, %v1255
        %1257 = vrot.lane.b32.xlu0 %v1254, 4
        %v1258 = vpop.permute.xlu0 %1257
        %1259 = vrot.lane.b32.xlu0 %v1256, 4
        %v1260 = vpop.permute.xlu0 %1259
        %v1263 = vrot.slane %v844, 2
        %v1264 = vrot.slane %v845, 2
        %v1265 = vsel %vm904, %v1263, %v1264
        %v1266 = vrot.slane %v846, 2
        %v1267 = vsel %vm904, %v1264, %v1266
        %1268 = vrot.lane.b32.xlu0 %v1265, 8
        %v1269 = vpop.permute.xlu0 %1268
        %1270 = vrot.lane.b32.xlu0 %v1267, 8
        %v1271 = vpop.permute.xlu0 %1270
        %v1274 = vsel %vm949, %v844, %v1258
        %v1275 = vsel %vm949, %v845, %v1260
        %v1276 = vsel %vm958, %v1274, %v1269
        %v1277 = vsel %vm958, %v1275, %v1271
        %s1278 = scalar_lea.vmem %s3, 32
        %v1279 = vld [vmem:[%s1278] sm:$0xff]
        %v1280 = vld [vmem:[%s1278 + $0x8] sm:$0xf]
        %v1282 = vsel %vm1001, %v1276, 0
        %v1285 = vsel %vm1001, %v1277, 0
        %v1288 = vsel %vm1026, %v1280, 0
        %1290 = vmatprep.subr.mxu0 0.0
        %1291 = vmatpush1.msra.mxu0 %v1279
        %1292 = vmatprep.subr.mxu0 0.0
        %1293 = vmatpush1.msra.mxu0 %v1288
        %1294 = vmatprep.subr.mxu0 0.0
        %1295 = vmatpush1.msra.mxu0 0.0
        %1296 = vmatprep.subr.mxu0 0.0
        %1297 = vmatpush1.msra.mxu0 0.0
        %1298 = vmatprep.subr.mxu0 0.0
        %1299 = vmatpush1.msra.mxu0 0.0
        %1300 = vmatprep.subr.mxu0 0.0
        %1301 = vmatpush1.msra.mxu0 0.0
        %1302 = vmatprep.subr.mxu0 0.0
        %1303 = vmatpush1.msra.mxu0 0.0
        %1304 = vmatprep.subr.mxu0 0.0
        %1305 = vmatpush1.msra.mxu0 0.0
        %1306 = vmatprep.subr.mxu0 0.0
        %1307 = vmatpush1.msra.mxu0 0.0
        %1308 = vmatprep.subr.mxu0 0.0
        %1309 = vmatpush1.msra.mxu0 0.0
        %1310 = vmatprep.subr.mxu0 0.0
        %1311 = vmatpush1.msra.mxu0 0.0
        %1312 = vmatprep.subr.mxu0 0.0
        %1313 = vmatpush1.msra.mxu0 0.0
        %1314 = vmatprep.subr.mxu0 0.0
        %1315 = vmatpush1.msra.mxu0 0.0
        %1316 = vmatprep.subr.mxu0 0.0
        %1317 = vmatpush1.msra.mxu0 0.0
        %1318 = vmatprep.subr.mxu0 0.0
        %1319 = vmatpush1.msra.mxu0 0.0
        %1320 = vmatprep.subr.mxu0 0.0
        %1321 = vmatpush1.msra.mxu0 0.0
        %1322 = vmatprep.subr.mxu0 0.0
        %1323 = vmatpush1.msra.mxu0 0.0
        %1324 = vmatprep.subr.mxu0 0.0
        %1325 = vmatpush1.msra.mxu0 0.0
        %1326 = vmatprep.subr.mxu0 0.0
        %1327 = vmatpush1.msra.mxu0 0.0
        %1328 = vmatprep.subr.mxu0 0.0
        %1329 = vmatpush1.msra.mxu0 0.0
        %1330 = vmatprep.subr.mxu0 0.0
        %1331 = vmatpush1.msra.mxu0 0.0
        %1332 = vmatprep.subr.mxu0 0.0
        %1333 = vmatpush1.msra.mxu0 0.0
        %1334 = vmatprep.subr.mxu0 0.0
        %1335 = vmatpush1.msra.mxu0 0.0
        %1336 = vmatprep.subr.mxu0 0.0
        %1337 = vmatpush1.msra.mxu0 0.0
        %1338 = vmatprep.subr.mxu0 0.0
        %1339 = vmatpush1.msra.mxu0 0.0
        %1340 = vmatprep.subr.mxu0 0.0
        %1341 = vmatpush1.msra.mxu0 0.0
        %1342 = vmatprep.subr.mxu0 0.0
        %1343 = vmatpush1.msra.mxu0 0.0
        %1344 = vmatprep.subr.mxu0 0.0
        %1345 = vmatpush1.msra.mxu0 0.0
        %1346 = vmatprep.subr.mxu0 0.0
        %1347 = vmatpush1.msra.mxu0 0.0
        %1348 = vmatprep.subr.mxu0 0.0
        %1349 = vmatpush1.msra.mxu0 0.0
        %1350 = vmatprep.subr.mxu0 0.0
        %1351 = vmatpush1.msra.mxu0 0.0
        %1352 = vmatprep.subr.mxu0 0.0
        %1353 = vmatpush1.msra.mxu0 0.0
        %1354 = vmatprep.mubr.f32.mxu0 0.0
        %1355 = vmatmul.mubr.f32.gmra.mrb[0].mxu0 %v1009
        %v1356 = vpop.f32.mrb[0].mxu0
        %v1357 = vadd.f32 0.0, %v1356
        %v1358 = vpop.f32.mrb[0].mxu0
        %1359 = vmatprep.mubr.f32.mxu0 0.0
        %1360 = vmatmul.mubr.f32.gmra.mrb[0].mxu0 %v1012
        %v1361 = vpop.f32.mrb[0].mxu0
        %v1362 = vadd.f32 0.0, %v1361
        %v1363 = vpop.f32.mrb[0].mxu0
        %1364 = vmatprep.mubr.f32.mxu0 0.0
        %1365 = vmatmul.mubr.f32.gmra.mrb[0].mxu0 %v1015
        %v1366 = vpop.f32.mrb[0].mxu0
        %v1367 = vadd.f32 0.0, %v1366
        %v1368 = vpop.f32.mrb[0].mxu0
        %1369 = vmatprep.mubr.f32.mxu0 0.0
        %1370 = vmatmul.mubr.f32.gmra.mrb[0].mxu0 %v1018
        %v1371 = vpop.f32.mrb[0].mxu0
        %v1372 = vadd.f32 0.0, %v1371
        %v1373 = vpop.f32.mrb[0].mxu0
        %1374 = vmatprep.mubr.f32.mxu0 0.0
        %1375 = vmatmul.mubr.f32.gmra.mrb[0].mxu0 %v1021
        %v1376 = vpop.f32.mrb[0].mxu0
        %v1377 = vadd.f32 0.0, %v1376
        %v1378 = vpop.f32.mrb[0].mxu0
        %1379 = vmatprep.mubr.f32.mxu0 0.0
        %1380 = vmatmul.mubr.f32.gmra.mrb[0].mxu0 %v1024
        %v1381 = vpop.f32.mrb[0].mxu0
        %v1382 = vadd.f32 0.0, %v1381
        %v1383 = vpop.f32.mrb[0].mxu0
        %1384 = vmatprep.mubr.f32.mxu0 0.0
        %1385 = vmatmul.mubr.f32.gmra.mrb[0].mxu0 %v1282
        %v1386 = vpop.f32.mrb[0].mxu0
        %v1387 = vadd.f32 0.0, %v1386
        %v1388 = vpop.f32.mrb[0].mxu0
        %1389 = vmatprep.mubr.f32.mxu0 0.0
        %1390 = vmatmul.mubr.f32.gmra.mrb[0].mxu0 %v1285
        %v1391 = vpop.f32.mrb[0].mxu0
        %v1392 = vadd.f32 0.0, %v1391
        %v1393 = vpop.f32.mrb[0].mxu0
        %1394 = vdwg.mxu0
        %v1395 = vadd.f32 %v1211, %v1357
        %v1396 = vadd.f32 %v1216, %v1362
        %v1397 = vadd.f32 %v1221, %v1367
        %v1398 = vadd.f32 %v1226, %v1372
        %v1399 = vadd.f32 %v1231, %v1377
        %v1400 = vadd.f32 %v1236, %v1382
        %v1401 = vadd.f32 %v1241, %v1387
        %v1402 = vadd.f32 %v1246, %v1392
        %v1403 = vld [vmem:[%s4] sm:$0x1]
        %v1405 = vlaneseq
        %v1406 = vshrl.u32 %v1405, 7
        %v1407 = vsub.s32 0, %v1406
        %v1408 = vrot.slane %v1403, %v1407
        %v1410 = vadd.f32 %v1395, %v1408
        %v1411 = vadd.f32 %v1396, %v1408
        %v1412 = vadd.f32 %v1397, %v1408
        %v1413 = vadd.f32 %v1398, %v1408
        %v1414 = vadd.f32 %v1399, %v1408
        %v1415 = vadd.f32 %v1400, %v1408
        %v1416 = vadd.f32 %v1401, %v1408
        %v1417 = vadd.f32 %v1402, %v1408
        %v1418 = vmax.f32 %v1410, 0.0
        %v1419 = vmax.f32 %v1411, 0.0
        %v1420 = vmax.f32 %v1412, 0.0
        %v1421 = vmax.f32 %v1413, 0.0
        %v1422 = vmax.f32 %v1414, 0.0
        %v1423 = vmax.f32 %v1415, 0.0
        %v1424 = vmax.f32 %v1416, 0.0
        %v1425 = vmax.f32 %v1417, 0.0
        %v1426 = vld [vmem:[%s5] sm:$0xf]
        %v1427 = vld [vmem:[%s6] sm:$0x1]
        %v1429 = vlaneseq
        %v1430 = vshrl.u32 %v1429, 7
        %v1431 = vsub.s32 0, %v1430
        %v1432 = vrot.slane %v1427, %v1431
        %v1435 = vsel %vm949, %v1418, 0
        %v1438 = vsel %vm949, %v1419, 0
        %v1441 = vsel %vm949, %v1420, 0
        %v1444 = vsel %vm949, %v1421, 0
        %v1447 = vsel %vm949, %v1422, 0
        %v1450 = vsel %vm949, %v1423, 0
        %v1453 = vsel %vm949, %v1424, 0
        %v1456 = vsel %vm949, %v1425, 0
        %v1459 = vsel %vm1026, %v1426, 0
        %1461 = vmatprep.subr.mxu0 0.0
        %1462 = vmatpush1.msra.mxu0 %v1459
        %1463 = vmatprep.subr.mxu0 0.0
        %1464 = vmatpush1.msra.mxu0 0.0
        %1465 = vmatprep.subr.mxu0 0.0
        %1466 = vmatpush1.msra.mxu0 0.0
        %1467 = vmatprep.subr.mxu0 0.0
        %1468 = vmatpush1.msra.mxu0 0.0
        %1469 = vmatprep.subr.mxu0 0.0
        %1470 = vmatpush1.msra.mxu0 0.0
        %1471 = vmatprep.subr.mxu0 0.0
        %1472 = vmatpush1.msra.mxu0 0.0
        %1473 = vmatprep.subr.mxu0 0.0
        %1474 = vmatpush1.msra.mxu0 0.0
        %1475 = vmatprep.subr.mxu0 0.0
        %1476 = vmatpush1.msra.mxu0 0.0
        %1477 = vmatprep.subr.mxu0 0.0
        %1478 = vmatpush1.msra.mxu0 0.0
        %1479 = vmatprep.subr.mxu0 0.0
        %1480 = vmatpush1.msra.mxu0 0.0
        %1481 = vmatprep.subr.mxu0 0.0
        %1482 = vmatpush1.msra.mxu0 0.0
        %1483 = vmatprep.subr.mxu0 0.0
        %1484 = vmatpush1.msra.mxu0 0.0
        %1485 = vmatprep.subr.mxu0 0.0
        %1486 = vmatpush1.msra.mxu0 0.0
        %1487 = vmatprep.subr.mxu0 0.0
        %1488 = vmatpush1.msra.mxu0 0.0
        %1489 = vmatprep.subr.mxu0 0.0
        %1490 = vmatpush1.msra.mxu0 0.0
        %1491 = vmatprep.subr.mxu0 0.0
        %1492 = vmatpush1.msra.mxu0 0.0
        %1493 = vmatprep.subr.mxu0 0.0
        %1494 = vmatpush1.msra.mxu0 0.0
        %1495 = vmatprep.subr.mxu0 0.0
        %1496 = vmatpush1.msra.mxu0 0.0
        %1497 = vmatprep.subr.mxu0 0.0
        %1498 = vmatpush1.msra.mxu0 0.0
        %1499 = vmatprep.subr.mxu0 0.0
        %1500 = vmatpush1.msra.mxu0 0.0
        %1501 = vmatprep.subr.mxu0 0.0
        %1502 = vmatpush1.msra.mxu0 0.0
        %1503 = vmatprep.subr.mxu0 0.0
        %1504 = vmatpush1.msra.mxu0 0.0
        %1505 = vmatprep.subr.mxu0 0.0
        %1506 = vmatpush1.msra.mxu0 0.0
        %1507 = vmatprep.subr.mxu0 0.0
        %1508 = vmatpush1.msra.mxu0 0.0
        %1509 = vmatprep.subr.mxu0 0.0
        %1510 = vmatpush1.msra.mxu0 0.0
        %1511 = vmatprep.subr.mxu0 0.0
        %1512 = vmatpush1.msra.mxu0 0.0
        %1513 = vmatprep.subr.mxu0 0.0
        %1514 = vmatpush1.msra.mxu0 0.0
        %1515 = vmatprep.subr.mxu0 0.0
        %1516 = vmatpush1.msra.mxu0 0.0
        %1517 = vmatprep.subr.mxu0 0.0
        %1518 = vmatpush1.msra.mxu0 0.0
        %1519 = vmatprep.subr.mxu0 0.0
        %1520 = vmatpush1.msra.mxu0 0.0
        %1521 = vmatprep.subr.mxu0 0.0
        %1522 = vmatpush1.msra.mxu0 0.0
        %1523 = vmatprep.subr.mxu0 0.0
        %1524 = vmatpush1.msra.mxu0 0.0
        %1525 = vmatprep.mubr.f32.mxu0 0.0
        %1526 = vmatmul.mubr.f32.gmra.mrb[0].mxu0 %v1435
        %v1527 = vpop.f32.mrb[0].mxu0
        %v1528 = vadd.f32 %v1432, %v1527
        %v1529 = vpop.f32.mrb[0].mxu0
        %1530 = vmatprep.mubr.f32.mxu0 0.0
        %1531 = vmatmul.mubr.f32.gmra.mrb[0].mxu0 %v1438
        %v1532 = vpop.f32.mrb[0].mxu0
        %v1533 = vadd.f32 %v1432, %v1532
        %v1534 = vpop.f32.mrb[0].mxu0
        %1535 = vmatprep.mubr.f32.mxu0 0.0
        %1536 = vmatmul.mubr.f32.gmra.mrb[0].mxu0 %v1441
        %v1537 = vpop.f32.mrb[0].mxu0
        %v1538 = vadd.f32 %v1432, %v1537
        %v1539 = vpop.f32.mrb[0].mxu0
        %1540 = vmatprep.mubr.f32.mxu0 0.0
        %1541 = vmatmul.mubr.f32.gmra.mrb[0].mxu0 %v1444
        %v1542 = vpop.f32.mrb[0].mxu0
        %v1543 = vadd.f32 %v1432, %v1542
        %v1544 = vpop.f32.mrb[0].mxu0
        %1545 = vmatprep.mubr.f32.mxu0 0.0
        %1546 = vmatmul.mubr.f32.gmra.mrb[0].mxu0 %v1447
        %v1547 = vpop.f32.mrb[0].mxu0
        %v1548 = vadd.f32 %v1432, %v1547
        %v1549 = vpop.f32.mrb[0].mxu0
        %1550 = vmatprep.mubr.f32.mxu0 0.0
        %1551 = vmatmul.mubr.f32.gmra.mrb[0].mxu0 %v1450
        %v1552 = vpop.f32.mrb[0].mxu0
        %v1553 = vadd.f32 %v1432, %v1552
        %v1554 = vpop.f32.mrb[0].mxu0
        %1555 = vmatprep.mubr.f32.mxu0 0.0
        %1556 = vmatmul.mubr.f32.gmra.mrb[0].mxu0 %v1453
        %v1557 = vpop.f32.mrb[0].mxu0
        %v1558 = vadd.f32 %v1432, %v1557
        %v1559 = vpop.f32.mrb[0].mxu0
        %1560 = vmatprep.mubr.f32.mxu0 0.0
        %1561 = vmatmul.mubr.f32.gmra.mrb[0].mxu0 %v1456
        %v1562 = vpop.f32.mrb[0].mxu0
        %v1563 = vadd.f32 %v1432, %v1562
        %v1564 = vpop.f32.mrb[0].mxu0
        %1565 = vdwg.mxu0
        %s1566 = smul.u32 %s826, 16
        %s1567 = scalar_lea.vmem %s344, %s1566
        %v1568 = vld [vmem:[%s1567] sm:$0xff]
        %v1569 = vld [vmem:[%s1567 + $0x8] sm:$0xff]
        %v1570 = vld [vmem:[%s1567 + $0x10] sm:$0xff]
        %v1571 = vld [vmem:[%s1567 + $0x18] sm:$0xff]
        %v1572 = vld [vmem:[%s1567 + $0x20] sm:$0xff]
        %v1573 = vld [vmem:[%s1567 + $0x28] sm:$0xff]
        %v1574 = vld [vmem:[%s1567 + $0x30] sm:$0xff]
        %v1575 = vld [vmem:[%s1567 + $0x38] sm:$0xff]
        %v1576 = vld [vmem:[%s7] sm:$0xf]
        %v1577 = vld [vmem:[%s8] sm:$0x1]
        %v1579 = vlaneseq
        %v1580 = vshrl.u32 %v1579, 7
        %v1581 = vsub.s32 0, %v1580
        %v1582 = vrot.slane %v1577, %v1581
        %v1585 = vsel %vm949, %v1568, 0
        %v1588 = vsel %vm949, %v1569, 0
        %v1591 = vsel %vm949, %v1570, 0
        %v1594 = vsel %vm949, %v1571, 0
        %v1597 = vsel %vm949, %v1572, 0
        %v1600 = vsel %vm949, %v1573, 0
        %v1603 = vsel %vm949, %v1574, 0
        %v1606 = vsel %vm949, %v1575, 0
        %v1609 = vsel %vm1026, %v1576, 0
        %1611 = vmatprep.subr.mxu0 0.0
        %1612 = vmatpush1.msra.mxu0 %v1609
        %1613 = vmatprep.subr.mxu0 0.0
        %1614 = vmatpush1.msra.mxu0 0.0
        %1615 = vmatprep.subr.mxu0 0.0
        %1616 = vmatpush1.msra.mxu0 0.0
        %1617 = vmatprep.subr.mxu0 0.0
        %1618 = vmatpush1.msra.mxu0 0.0
        %1619 = vmatprep.subr.mxu0 0.0
        %1620 = vmatpush1.msra.mxu0 0.0
        %1621 = vmatprep.subr.mxu0 0.0
        %1622 = vmatpush1.msra.mxu0 0.0
        %1623 = vmatprep.subr.mxu0 0.0
        %1624 = vmatpush1.msra.mxu0 0.0
        %1625 = vmatprep.subr.mxu0 0.0
        %1626 = vmatpush1.msra.mxu0 0.0
        %1627 = vmatprep.subr.mxu0 0.0
        %1628 = vmatpush1.msra.mxu0 0.0
        %1629 = vmatprep.subr.mxu0 0.0
        %1630 = vmatpush1.msra.mxu0 0.0
        %1631 = vmatprep.subr.mxu0 0.0
        %1632 = vmatpush1.msra.mxu0 0.0
        %1633 = vmatprep.subr.mxu0 0.0
        %1634 = vmatpush1.msra.mxu0 0.0
        %1635 = vmatprep.subr.mxu0 0.0
        %1636 = vmatpush1.msra.mxu0 0.0
        %1637 = vmatprep.subr.mxu0 0.0
        %1638 = vmatpush1.msra.mxu0 0.0
        %1639 = vmatprep.subr.mxu0 0.0
        %1640 = vmatpush1.msra.mxu0 0.0
        %1641 = vmatprep.subr.mxu0 0.0
        %1642 = vmatpush1.msra.mxu0 0.0
        %1643 = vmatprep.subr.mxu0 0.0
        %1644 = vmatpush1.msra.mxu0 0.0
        %1645 = vmatprep.subr.mxu0 0.0
        %1646 = vmatpush1.msra.mxu0 0.0
        %1647 = vmatprep.subr.mxu0 0.0
        %1648 = vmatpush1.msra.mxu0 0.0
        %1649 = vmatprep.subr.mxu0 0.0
        %1650 = vmatpush1.msra.mxu0 0.0
        %1651 = vmatprep.subr.mxu0 0.0
        %1652 = vmatpush1.msra.mxu0 0.0
        %1653 = vmatprep.subr.mxu0 0.0
        %1654 = vmatpush1.msra.mxu0 0.0
        %1655 = vmatprep.subr.mxu0 0.0
        %1656 = vmatpush1.msra.mxu0 0.0
        %1657 = vmatprep.subr.mxu0 0.0
        %1658 = vmatpush1.msra.mxu0 0.0
        %1659 = vmatprep.subr.mxu0 0.0
        %1660 = vmatpush1.msra.mxu0 0.0
        %1661 = vmatprep.subr.mxu0 0.0
        %1662 = vmatpush1.msra.mxu0 0.0
        %1663 = vmatprep.subr.mxu0 0.0
        %1664 = vmatpush1.msra.mxu0 0.0
        %1665 = vmatprep.subr.mxu0 0.0
        %1666 = vmatpush1.msra.mxu0 0.0
        %1667 = vmatprep.subr.mxu0 0.0
        %1668 = vmatpush1.msra.mxu0 0.0
        %1669 = vmatprep.subr.mxu0 0.0
        %1670 = vmatpush1.msra.mxu0 0.0
        %1671 = vmatprep.subr.mxu0 0.0
        %1672 = vmatpush1.msra.mxu0 0.0
        %1673 = vmatprep.subr.mxu0 0.0
        %1674 = vmatpush1.msra.mxu0 0.0
        %1675 = vmatprep.mubr.f32.mxu0 0.0
        %1676 = vmatmul.mubr.f32.gmra.mrb[0].mxu0 %v1585
        %v1677 = vpop.f32.mrb[0].mxu0
        %v1678 = vadd.f32 %v1582, %v1677
        %v1679 = vpop.f32.mrb[0].mxu0
        %1680 = vmatprep.mubr.f32.mxu0 0.0
        %1681 = vmatmul.mubr.f32.gmra.mrb[0].mxu0 %v1588
        %v1682 = vpop.f32.mrb[0].mxu0
        %v1683 = vadd.f32 %v1582, %v1682
        %v1684 = vpop.f32.mrb[0].mxu0
        %1685 = vmatprep.mubr.f32.mxu0 0.0
        %1686 = vmatmul.mubr.f32.gmra.mrb[0].mxu0 %v1591
        %v1687 = vpop.f32.mrb[0].mxu0
        %v1688 = vadd.f32 %v1582, %v1687
        %v1689 = vpop.f32.mrb[0].mxu0
        %1690 = vmatprep.mubr.f32.mxu0 0.0
        %1691 = vmatmul.mubr.f32.gmra.mrb[0].mxu0 %v1594
        %v1692 = vpop.f32.mrb[0].mxu0
        %v1693 = vadd.f32 %v1582, %v1692
        %v1694 = vpop.f32.mrb[0].mxu0
        %1695 = vmatprep.mubr.f32.mxu0 0.0
        %1696 = vmatmul.mubr.f32.gmra.mrb[0].mxu0 %v1597
        %v1697 = vpop.f32.mrb[0].mxu0
        %v1698 = vadd.f32 %v1582, %v1697
        %v1699 = vpop.f32.mrb[0].mxu0
        %1700 = vmatprep.mubr.f32.mxu0 0.0
        %1701 = vmatmul.mubr.f32.gmra.mrb[0].mxu0 %v1600
        %v1702 = vpop.f32.mrb[0].mxu0
        %v1703 = vadd.f32 %v1582, %v1702
        %v1704 = vpop.f32.mrb[0].mxu0
        %1705 = vmatprep.mubr.f32.mxu0 0.0
        %1706 = vmatmul.mubr.f32.gmra.mrb[0].mxu0 %v1603
        %v1707 = vpop.f32.mrb[0].mxu0
        %v1708 = vadd.f32 %v1582, %v1707
        %v1709 = vpop.f32.mrb[0].mxu0
        %1710 = vmatprep.mubr.f32.mxu0 0.0
        %1711 = vmatmul.mubr.f32.gmra.mrb[0].mxu0 %v1606
        %v1712 = vpop.f32.mrb[0].mxu0
        %v1713 = vadd.f32 %v1582, %v1712
        %v1714 = vpop.f32.mrb[0].mxu0
        %1715 = vdwg.mxu0
        %v1716 = vadd.f32 %v1528, %v1678
        %v1717 = vadd.f32 %v1533, %v1683
        %v1718 = vadd.f32 %v1538, %v1688
        %v1719 = vadd.f32 %v1543, %v1693
        %v1720 = vadd.f32 %v1548, %v1698
        %v1721 = vadd.f32 %v1553, %v1703
        %v1722 = vadd.f32 %v1558, %v1708
        %v1723 = vadd.f32 %v1563, %v1713
        %v1724 = vmax.f32 %v1716, 0.0
        %v1725 = vmax.f32 %v1717, 0.0
        %v1726 = vmax.f32 %v1718, 0.0
        %v1727 = vmax.f32 %v1719, 0.0
        %v1728 = vmax.f32 %v1720, 0.0
        %v1729 = vmax.f32 %v1721, 0.0
        %v1730 = vmax.f32 %v1722, 0.0
        %v1731 = vmax.f32 %v1723, 0.0
        %vm1732 = vcmask 130048
        %1733 = vst.msk [vmem:[%s339] sm:$0xff] %vm1732, %v1724
        %1734 = vst.msk [vmem:[%s339 + $0x8] sm:$0xff] %vm1732, %v1725
        %1735 = vst.msk [vmem:[%s339 + $0x10] sm:$0xff] %vm1732, %v1726
        %1736 = vst.msk [vmem:[%s339 + $0x18] sm:$0xff] %vm1732, %v1727
        %1737 = vst.msk [vmem:[%s339 + $0x20] sm:$0xff] %vm1732, %v1728
        %1738 = vst.msk [vmem:[%s339 + $0x28] sm:$0xff] %vm1732, %v1729
        %1739 = vst.msk [vmem:[%s339 + $0x30] sm:$0xff] %vm1732, %v1730
        %1740 = vst.msk [vmem:[%s339 + $0x38] sm:$0xff] %vm1732, %v1731
        %s1741 = sand.u32 %s239, 1
        %s1742 = scalar_lea.sflag [#allocation4], %s1741
        %s1743 = sand.u32 %s239, 1
        %s1744 = smul.addr %s1743, 64
        %s1745 = scalar_lea.vmem [#allocation3], %s1744
        // Predicated region
        $region61: #{tpu_custom_call.1} parent=55 // pred_check
          %p1746 = pneg %p249
        $region62: #{tpu_custom_call.1} parent=55 // pred_check_branch
          %1748 = sbr.rel (%p1746) target = $region64
        $region63: #{tpu_custom_call.1} parent=55 // pred_region
          %s1749 = smul.u32 4, %s28
          %s1751 = ssub.s32 1024, 1024
          %1752 = vsyncadd %s1742, %s1751
          %s1753 = smul.addr %s1749, 2
          %s1754 = smul.addr %s27, 32
          %s1755 = sadd.s32 %s1753, %s1754
          %s1756 = smul.addr %s1755, 128
          %s1757 = scalar_lea.hbm %s9, %s1756
          %s1758 = sshll.u32 %s1745, 4
          %s1759 = int_to_ptr.vmem [resolvable:$true] %s1758
          %1764 = dma.vmem_to_hbm [thread:$0]  %s1759, 1024, %s1757, %s1742, 128, 128, 8
        $region64: #{tpu_custom_call.1} parent=55 // pred_fallthru
          _
      $region56: #{tpu_custom_call.1} parent=5 // pred_fallthru
        _
      %p1765 = scmp.le.s32.totalorder 2, %s18
      // Predicated region
      $region65: #{tpu_custom_call.1} parent=5 // pred_check
        %p1766 = pneg %p1765
      $region66: #{tpu_custom_call.1} parent=5 // pred_check_branch
        %1768 = sbr.rel (%p1766) target = $region68
      $region67: #{tpu_custom_call.1} parent=5 // pred_region
        %s1769 = ssub.s32 %s18, 2
        // Predicated region
        $region69: #{tpu_custom_call.1} parent=67 // pred_check
          %p1770 = pneg %p255
        $region70: #{tpu_custom_call.1} parent=67 // pred_check_branch
          %1772 = sbr.rel (%p1770) target = $region72
        $region71: #{tpu_custom_call.1} parent=67 // pred_region
          %s1773 = sand.u32 %s240, 1
          %s1774 = scalar_lea.sflag [#allocation4], %s1773
          %s1775 = sand.u32 %s240, 1
          %s1776 = smul.addr %s1775, 64
          %s1777 = scalar_lea.vmem [#allocation3], %s1776
          %1778 = dma.done %s1774, 1024
        $region72: #{tpu_custom_call.1} parent=67 // pred_fallthru
          _
      $region68: #{tpu_custom_call.1} parent=5 // pred_fallthru
        _
    $region6: #{tpu_custom_call.1} parent=1 // loop_footer
      %s22 = sadd.s32 1, %s18
    $region7: #{tpu_custom_call.1} parent=1 // loop_footer_branch
      %17 = sbr.rel target = $region3
    $region8: #{tpu_custom_call.1} parent=1 // loop_exit
      _
    %1779 = vsyncpa [#allocation4], 1
    %s1780 = scalar_lea.sflag [#allocation4], 1
    %1781 = vsyncpa %s1780, 1

// kernel: tpu_custom_call.1
$region0: #{tpu_custom_call.1}
  #allocation0 [shape = 'u32[]', space=smem, size = 0x4, offset = 0x4, fixed_abs, tag = 'smem constant byte address 0x4 - core index']
  #allocation1 [shape = 'u32[144,128]{1,0:T(1,128)}', space=vmem, size = 0x12000, scoped, tag = 'internal scratch']
  #allocation2 [shape = 'f32[18,18,4]{2,1,0:T(8,128)}', space=vmem, size = 0x36000, scoped, tag = 'scratch operand']
  %s0 = inlined_call_operand.vmem [shape: f32[2,16,16,4], index: 0, kind: input, shape index: {}]
  %s1 = inlined_call_operand.vmem [shape: f32[4,4], index: 1, kind: input, shape index: {}]
  %s2 = inlined_call_operand.vmem [shape: f32[1,4], index: 2, kind: input, shape index: {}]
  %s3 = inlined_call_operand.vmem [shape: f32[3,12,4], index: 3, kind: input, shape index: {}]
  %s4 = inlined_call_operand.vmem [shape: f32[1,4], index: 4, kind: input, shape index: {}]
  %s5 = inlined_call_operand.vmem [shape: f32[4,16], index: 5, kind: input, shape index: {}]
  %s6 = inlined_call_operand.vmem [shape: f32[1,16], index: 6, kind: input, shape index: {}]
  %s7 = inlined_call_operand.vmem [shape: f32[4,16], index: 7, kind: input, shape index: {}]
  %s8 = inlined_call_operand.vmem [shape: f32[1,16], index: 8, kind: input, shape index: {}]
  %s9 = inlined_call_operand.hbm [shape: f32[2,16,16,16], index: 9, kind: output, shape index: {}]
  %s10 = sld [smem:[#allocation0]]
  $region73: #{tpu_custom_call.1} parent=0
    _
  %s12 = ssub.s32 1, %s10
  %s13 = scalar_select 0, %s12, %s10
  $region1: #{tpu_custom_call.1} parent=0
    #allocation3 [shape = 'u8[65536]{0}', space=vmem, size = 0x10000, scoped, tag = 'output window, operand 0']
    #allocation4 [shape = 's32[2]{0}', space=sflag, size = 0x8, scoped, tag = 'scoped memory for tpu_custom_call.1']
    %14 = vsyncpa [#allocation4], 0
    %s15 = scalar_lea.sflag [#allocation4], 1
    %16 = vsyncpa %s15, 0
    loop: start=0, step=1, limit=10
    $region2: #{tpu_custom_call.1} parent=1 // loop_pre_header
      _
    $region3: #{tpu_custom_call.1} parent=1 // loop_header
      %s18 = sphi 0, %s22
      %p19 = scmp.ge.s32.totalorder %s18, 10
      %s25 = sphi 0, %s37
      %s26 = sphi 0, %s33
      %s27 = sphi 0, %s25
      %s28 = sphi 0, %s26
      %s29 = sphi 0, %s27
      %s30 = sphi 0, %s28
      %s40 = sphi 0, %s42
      %s43 = sphi 0, %s40
      %s44 = sphi 0, %s43
      %s60 = sphi 0, %s44
      %s64 = sphi 0, %s64
      %s66 = sphi 0, %s64
      %s67 = sphi 0, %s66
      %s81 = sphi 0, %s67
      %s85 = sphi 0, %s85
      %s87 = sphi 0, %s85
      %s88 = sphi 0, %s87
      %s102 = sphi 0, %s88
      %s106 = sphi 0, %s106
      %s108 = sphi 0, %s106
      %s109 = sphi 0, %s108
      %s123 = sphi 0, %s109
      %s127 = sphi 0, %s127
      %s129 = sphi 0, %s127
      %s130 = sphi 0, %s129
      %s144 = sphi 0, %s130
      %s148 = sphi 0, %s148
      %s150 = sphi 0, %s148
      %s151 = sphi 0, %s150
      %s165 = sphi 0, %s151
      %s169 = sphi 0, %s169
      %s171 = sphi 0, %s169
      %s172 = sphi 0, %s171
      %s186 = sphi 0, %s172
      %s190 = sphi 0, %s190
      %s192 = sphi 0, %s190
      %s193 = sphi 0, %s192
      %s207 = sphi 0, %s193
      %s211 = sphi 0, %s211
      %s213 = sphi 0, %s211
      %s214 = sphi 0, %s213
      %s228 = sphi 0, %s214
      %s236 = sphi 0, %s238
      %s239 = sphi 0, %s236
      %s240 = sphi 0, %s239
      %s256 = sphi 0, %s240
    $region4: #{tpu_custom_call.1} parent=1 // loop_header_branch
      %21 = sbr.rel (%p19) target = $region8
    $region5: #{tpu_custom_call.1} parent=1 // loop_body
      %s23 = ssub.s32 %s18, 1
      %s24 = ssub.s32 %s18, 2
      %s31 = sadd.s32 1, %s26
      %p32 = scmp.ge.s32.totalorder %s31, 4
      %s33 = scalar_select %p32, 0, %s31
      %s34 = sadd.s32 1, %s25
      %s35 = scalar_select %p32, %s34, %s25
      %p36 = scmp.ge.s32.totalorder %s35, 2
      %s37 = scalar_select %p36, 0, %s35
      %s38 = ssub.s32 %s25, %s37
      %p39 = scmp.eq.s32.totalorder %s38, 0
      %s41 = sadd.s32 %s40, 1
      %s42 = scalar_select %p39, %s40, %s41
      %p45 = pneg %p39
      %p46 = scmp.eq.s32.totalorder %s18, 7
      %p47 = por %p45, %p46
      %p48 = scmp.ne.s32.totalorder %s40, %s43
      %p49 = scmp.eq.s32.totalorder %s18, 0
      %p50 = por %p48, %p49
      %p51 = scmp.ne.s32.totalorder %s40, %s43
      %p52 = scmp.eq.s32.totalorder %s23, 7
      %p53 = por %p51, %p52
      %p54 = scmp.ne.s32.totalorder %s43, %s44
      %p55 = scmp.eq.s32.totalorder %s23, 0
      %p56 = por %p54, %p55
      %p57 = scmp.ne.s32.totalorder %s43, %s44
      %p58 = scmp.eq.s32.totalorder %s24, 7
      %p59 = por %p57, %p58
      %p61 = scmp.ne.s32.totalorder %s44, %s60
      %p62 = scmp.eq.s32.totalorder %s24, 0
      %p63 = por %p61, %p62
      %s65 = sadd.s32 %s64, 1
      %p68 = scmp.eq.s32.totalorder %s18, 7
      %p69 = scmp.ne.s32.totalorder %s64, %s66
      %p70 = scmp.eq.s32.totalorder %s18, 0
      %p71 = por %p69, %p70
      %p72 = scmp.ne.s32.totalorder %s64, %s66
      %p73 = scmp.eq.s32.totalorder %s23, 7
      %p74 = por %p72, %p73
      %p75 = scmp.ne.s32.totalorder %s66, %s67
      %p76 = scmp.eq.s32.totalorder %s23, 0
      %p77 = por %p75, %p76
      %p78 = scmp.ne.s32.totalorder %s66, %s67
      %p79 = scmp.eq.s32.totalorder %s24, 7
      %p80 = por %p78, %p79
      %p82 = scmp.ne.s32.totalorder %s67, %s81
      %p83 = scmp.eq.s32.totalorder %s24, 0
      %p84 = por %p82, %p83
      %s86 = sadd.s32 %s85, 1
      %p89 = scmp.eq.s32.totalorder %s18, 7
      %p90 = scmp.ne.s32.totalorder %s85, %s87
      %p91 = scmp.eq.s32.totalorder %s18, 0
      %p92 = por %p90, %p91
      %p93 = scmp.ne.s32.totalorder %s85, %s87
      %p94 = scmp.eq.s32.totalorder %s23, 7
      %p95 = por %p93, %p94
      %p96 = scmp.ne.s32.totalorder %s87, %s88
      %p97 = scmp.eq.s32.totalorder %s23, 0
      %p98 = por %p96, %p97
      %p99 = scmp.ne.s32.totalorder %s87, %s88
      %p100 = scmp.eq.s32.totalorder %s24, 7
      %p101 = por %p99, %p100
      %p103 = scmp.ne.s32.totalorder %s88, %s102
      %p104 = scmp.eq.s32.totalorder %s24, 0
      %p105 = por %p103, %p104
      %s107 = sadd.s32 %s106, 1
      %p110 = scmp.eq.s32.totalorder %s18, 7
      %p111 = scmp.ne.s32.totalorder %s106, %s108
      %p112 = scmp.eq.s32.totalorder %s18, 0
      %p113 = por %p111, %p112
      %p114 = scmp.ne.s32.totalorder %s106, %s108
      %p115 = scmp.eq.s32.totalorder %s23, 7
      %p116 = por %p114, %p115
      %p117 = scmp.ne.s32.totalorder %s108, %s109
      %p118 = scmp.eq.s32.totalorder %s23, 0
      %p119 = por %p117, %p118
      %p120 = scmp.ne.s32.totalorder %s108, %s109
      %p121 = scmp.eq.s32.totalorder %s24, 7
      %p122 = por %p120, %p121
      %p124 = scmp.ne.s32.totalorder %s109, %s123
      %p125 = scmp.eq.s32.totalorder %s24, 0
      %p126 = por %p124, %p125
      %s128 = sadd.s32 %s127, 1
      %p131 = scmp.eq.s32.totalorder %s18, 7
      %p132 = scmp.ne.s32.totalorder %s127, %s129
      %p133 = scmp.eq.s32.totalorder %s18, 0
      %p134 = por %p132, %p133
      %p135 = scmp.ne.s32.totalorder %s127, %s129
      %p136 = scmp.eq.s32.totalorder %s23, 7
      %p137 = por %p135, %p136
      %p138 = scmp.ne.s32.totalorder %s129, %s130
      %p139 = scmp.eq.s32.totalorder %s23, 0
      %p140 = por %p138, %p139
      %p141 = scmp.ne.s32.totalorder %s129, %s130
      %p142 = scmp.eq.s32.totalorder %s24, 7
      %p143 = por %p141, %p142
      %p145 = scmp.ne.s32.totalorder %s130, %s144
      %p146 = scmp.eq.s32.totalorder %s24, 0
      %p147 = por %p145, %p146
      %s149 = sadd.s32 %s148, 1
      %p152 = scmp.eq.s32.totalorder %s18, 7
      %p153 = scmp.ne.s32.totalorder %s148, %s150
      %p154 = scmp.eq.s32.totalorder %s18, 0
      %p155 = por %p153, %p154
      %p156 = scmp.ne.s32.totalorder %s148, %s150
      %p157 = scmp.eq.s32.totalorder %s23, 7
      %p158 = por %p156, %p157
      %p159 = scmp.ne.s32.totalorder %s150, %s151
      %p160 = scmp.eq.s32.totalorder %s23, 0
      %p161 = por %p159, %p160
      %p162 = scmp.ne.s32.totalorder %s150, %s151
      %p163 = scmp.eq.s32.totalorder %s24, 7
      %p164 = por %p162, %p163
      %p166 = scmp.ne.s32.totalorder %s151, %s165
      %p167 = scmp.eq.s32.totalorder %s24, 0
      %p168 = por %p166, %p167
      %s170 = sadd.s32 %s169, 1
      %p173 = scmp.eq.s32.totalorder %s18, 7
      %p174 = scmp.ne.s32.totalorder %s169, %s171
      %p175 = scmp.eq.s32.totalorder %s18, 0
      %p176 = por %p174, %p175
      %p177 = scmp.ne.s32.totalorder %s169, %s171
      %p178 = scmp.eq.s32.totalorder %s23, 7
      %p179 = por %p177, %p178
      %p180 = scmp.ne.s32.totalorder %s171, %s172
      %p181 = scmp.eq.s32.totalorder %s23, 0
      %p182 = por %p180, %p181
      %p183 = scmp.ne.s32.totalorder %s171, %s172
      %p184 = scmp.eq.s32.totalorder %s24, 7
      %p185 = por %p183, %p184
      %p187 = scmp.ne.s32.totalorder %s172, %s186
      %p188 = scmp.eq.s32.totalorder %s24, 0
      %p189 = por %p187, %p188
      %s191 = sadd.s32 %s190, 1
      %p194 = scmp.eq.s32.totalorder %s18, 7
      %p195 = scmp.ne.s32.totalorder %s190, %s192
      %p196 = scmp.eq.s32.totalorder %s18, 0
      %p197 = por %p195, %p196
      %p198 = scmp.ne.s32.totalorder %s190, %s192
      %p199 = scmp.eq.s32.totalorder %s23, 7
      %p200 = por %p198, %p199
      %p201 = scmp.ne.s32.totalorder %s192, %s193
      %p202 = scmp.eq.s32.totalorder %s23, 0
      %p203 = por %p201, %p202
      %p204 = scmp.ne.s32.totalorder %s192, %s193
      %p205 = scmp.eq.s32.totalorder %s24, 7
      %p206 = por %p204, %p205
      %p208 = scmp.ne.s32.totalorder %s193, %s207
      %p209 = scmp.eq.s32.totalorder %s24, 0
      %p210 = por %p208, %p209
      %s212 = sadd.s32 %s211, 1
      %p215 = scmp.eq.s32.totalorder %s18, 7
      %p216 = scmp.ne.s32.totalorder %s211, %s213
      %p217 = scmp.eq.s32.totalorder %s18, 0
      %p218 = por %p216, %p217
      %p219 = scmp.ne.s32.totalorder %s211, %s213
      %p220 = scmp.eq.s32.totalorder %s23, 7
      %p221 = por %p219, %p220
      %p222 = scmp.ne.s32.totalorder %s213, %s214
      %p223 = scmp.eq.s32.totalorder %s23, 0
      %p224 = por %p222, %p223
      %p225 = scmp.ne.s32.totalorder %s213, %s214
      %p226 = scmp.eq.s32.totalorder %s24, 7
      %p227 = por %p225, %p226
      %p229 = scmp.ne.s32.totalorder %s214, %s228
      %p230 = scmp.eq.s32.totalorder %s24, 0
      %p231 = por %p229, %p230
      %s232 = ssub.s32 %s25, %s37
      %s233 = ssub.s32 %s26, %s33
      %s234 = sor.u32 %s232, %s233
      %p235 = scmp.eq.s32.totalorder %s234, 0
      %s237 = sadd.s32 %s236, 1
      %s238 = scalar_select %p235, %s236, %s237
      %p241 = pneg %p235
      %p242 = scmp.eq.s32.totalorder %s18, 7
      %p243 = por %p241, %p242
      %p244 = scmp.ne.s32.totalorder %s236, %s239
      %p245 = scmp.eq.s32.totalorder %s18, 0
      %p246 = por %p244, %p245
      %p247 = scmp.ne.s32.totalorder %s236, %s239
      %p248 = scmp.eq.s32.totalorder %s23, 7
      %p249 = por %p247, %p248
      %p250 = scmp.ne.s32.totalorder %s239, %s240
      %p251 = scmp.eq.s32.totalorder %s23, 0
      %p252 = por %p250, %p251
      %p253 = scmp.ne.s32.totalorder %s239, %s240
      %p254 = scmp.eq.s32.totalorder %s24, 7
      %p255 = por %p253, %p254
      %p257 = scmp.ne.s32.totalorder %s240, %s256
      %p258 = scmp.eq.s32.totalorder %s24, 0
      %p259 = por %p257, %p258
      %p260 = scmp.le.s32.totalorder 1, %s18
      %p261 = scmp.lt.s32.totalorder %s18, 9
      %p262 = pnand %p260, %p261
      %p263 = pneg %p262
      // Predicated region
      $region9: #{tpu_custom_call.1} parent=5 // pred_check
        _
      $region10: #{tpu_custom_call.1} parent=5 // pred_check_branch
        %265 = sbr.rel (%p262) target = $region12
      $region11: #{tpu_custom_call.1} parent=5 // pred_region
        %s266 = ssub.s32 %s18, 1
        // Predicated region
        $region13: #{tpu_custom_call.1} parent=11 // pred_check
          %p267 = pneg %p77
        $region14: #{tpu_custom_call.1} parent=11 // pred_check_branch
          %269 = sbr.rel (%p267) target = $region16
        $region15: #{tpu_custom_call.1} parent=11 // pred_region
          _
        $region16: #{tpu_custom_call.1} parent=11 // pred_fallthru
          _
        // Predicated region
        $region17: #{tpu_custom_call.1} parent=11 // pred_check
          %p270 = pneg %p98
        $region18: #{tpu_custom_call.1} parent=11 // pred_check_branch
          %272 = sbr.rel (%p270) target = $region20
        $region19: #{tpu_custom_call.1} parent=11 // pred_region
          _
        $region20: #{tpu_custom_call.1} parent=11 // pred_fallthru
          _
        // Predicated region
        $region21: #{tpu_custom_call.1} parent=11 // pred_check
          %p273 = pneg %p119
        $region22: #{tpu_custom_call.1} parent=11 // pred_check_branch
          %275 = sbr.rel (%p273) target = $region24
        $region23: #{tpu_custom_call.1} parent=11 // pred_region
          _
        $region24: #{tpu_custom_call.1} parent=11 // pred_fallthru
          _
        // Predicated region
        $region25: #{tpu_custom_call.1} parent=11 // pred_check
          %p276 = pneg %p140
        $region26: #{tpu_custom_call.1} parent=11 // pred_check_branch
          %278 = sbr.rel (%p276) target = $region28
        $region27: #{tpu_custom_call.1} parent=11 // pred_region
          _
        $region28: #{tpu_custom_call.1} parent=11 // pred_fallthru
          _
        // Predicated region
        $region29: #{tpu_custom_call.1} parent=11 // pred_check
          %p279 = pneg %p161
        $region30: #{tpu_custom_call.1} parent=11 // pred_check_branch
          %281 = sbr.rel (%p279) target = $region32
        $region31: #{tpu_custom_call.1} parent=11 // pred_region
          _
        $region32: #{tpu_custom_call.1} parent=11 // pred_fallthru
          _
        // Predicated region
        $region33: #{tpu_custom_call.1} parent=11 // pred_check
          %p282 = pneg %p182
        $region34: #{tpu_custom_call.1} parent=11 // pred_check_branch
          %284 = sbr.rel (%p282) target = $region36
        $region35: #{tpu_custom_call.1} parent=11 // pred_region
          _
        $region36: #{tpu_custom_call.1} parent=11 // pred_fallthru
          _
        // Predicated region
        $region37: #{tpu_custom_call.1} parent=11 // pred_check
          %p285 = pneg %p203
        $region38: #{tpu_custom_call.1} parent=11 // pred_check_branch
          %287 = sbr.rel (%p285) target = $region40
        $region39: #{tpu_custom_call.1} parent=11 // pred_region
          _
        $region40: #{tpu_custom_call.1} parent=11 // pred_fallthru
          _
        // Predicated region
        $region41: #{tpu_custom_call.1} parent=11 // pred_check
          %p288 = pneg %p224
        $region42: #{tpu_custom_call.1} parent=11 // pred_check_branch
          %290 = sbr.rel (%p288) target = $region44
        $region43: #{tpu_custom_call.1} parent=11 // pred_region
          _
        $region44: #{tpu_custom_call.1} parent=11 // pred_fallthru
          _
      $region12: #{tpu_custom_call.1} parent=5 // pred_fallthru
        _
      %p291 = scmp.lt.s32.totalorder %s18, 8
      // Predicated region
      $region45: #{tpu_custom_call.1} parent=5 // pred_check
        %p292 = pneg %p291
      $region46: #{tpu_custom_call.1} parent=5 // pred_check_branch
        %294 = sbr.rel (%p292) target = $region48
      $region47: #{tpu_custom_call.1} parent=5 // pred_region
        // Predicated region
        $region49: #{tpu_custom_call.1} parent=47 // pred_check
          %p295 = pneg %p50
        $region50: #{tpu_custom_call.1} parent=47 // pred_check_branch
          %297 = sbr.rel (%p295) target = $region52
        $region51: #{tpu_custom_call.1} parent=47 // pred_region
          %p298 = scmp.lt.s32.totalorder %s25, 1
          %s299 = scalar_select %p298, %s25, 1
          %s300 = smul.addr %s299, 32
          %s301 = smul.addr %s300, 8
          %s302 = scalar_lea.vmem %s0, %s301
        $region52: #{tpu_custom_call.1} parent=47 // pred_fallthru
          _
      $region48: #{tpu_custom_call.1} parent=5 // pred_fallthru
        _
      %p303 = scmp.le.s32.totalorder 1, %s18
      %p304 = scmp.lt.s32.totalorder %s18, 9
      %p305 = pnand %p303, %p304
      %p306 = pneg %p305
      // Predicated region
      $region53: #{tpu_custom_call.1} parent=5 // pred_check
        _
      $region54: #{tpu_custom_call.1} parent=5 // pred_check_branch
        %308 = sbr.rel (%p305) target = $region56
      $region55: #{tpu_custom_call.1} parent=5 // pred_region
        %s309 = ssub.s32 %s18, 1
        %p310 = scmp.lt.s32.totalorder %s27, 1
        %s311 = scalar_select %p310, %s27, 1
        %s312 = smul.addr %s311, 32
        %s313 = smul.addr %s312, 8
        %s314 = scalar_lea.vmem %s0, %s313
        %p315 = pneg %p56
        %p316 = pneg %p53
        %p317 = pneg %p77
        %p318 = pneg %p74
        %p319 = pneg %p98
        %p320 = pneg %p95
        %p321 = pneg %p119
        %p322 = pneg %p116
        %p323 = pneg %p140
        %p324 = pneg %p137
        %p325 = pneg %p161
        %p326 = pneg %p158
        %p327 = pneg %p182
        %p328 = pneg %p179
        %p329 = pneg %p203
        %p330 = pneg %p200
        %p331 = pneg %p224
        %p332 = pneg %p221
        %p333 = pneg %p252
        %p334 = pneg %p249
        %s335 = sand.u32 %s239, 1
        %s336 = scalar_lea.sflag [#allocation4], %s335
        %s337 = sand.u32 %s239, 1
        %s338 = smul.addr %s337, 64
        %s339 = scalar_lea.vmem [#allocation3], %s338
        %p340 = scmp.lt.s32.totalorder %s27, 1
        %s341 = scalar_select %p340, %s27, 1
        %s342 = smul.addr %s341, 32
        %s343 = smul.addr %s342, 8
        %s344 = scalar_lea.vmem %s0, %s343
        %s345 = smul.u32 4, %s28
        %p346 = scmp.eq.s32.totalorder %s28, 0
        // Predicated region
        $region57: #{tpu_custom_call.1} parent=55 // pred_check
          %p347 = pneg %p346
        $region58: #{tpu_custom_call.1} parent=55 // pred_check_branch
          %349 = sbr.rel (%p347) target = $region60
        $region59: #{tpu_custom_call.1} parent=55 // pred_region
          %vm350 = vcmask 31744
          %351 = vst.msk [vmem:[#allocation2] sm:$0xff] %vm350, 0.0
          %352 = vst.msk [vmem:[#allocation2 + $0x8] sm:$0xff] %vm350, 0.0
          %vm353 = vcmask 25600
          %354 = vst.msk [vmem:[#allocation2 + $0x10] sm:$0x3] %vm353, 0.0
          %s355 = scalar_lea.vmem [#allocation2], 408
          %356 = vst.msk [vmem:[%s355] sm:$0xff] %vm350, 0.0
          %357 = vst.msk [vmem:[%s355 + $0x8] sm:$0xff] %vm350, 0.0
          %358 = vst.msk [vmem:[%s355 + $0x10] sm:$0x3] %vm353, 0.0
          %vm359 = vcmask 24576
          %360 = vst.msk [vmem:[#allocation2] sm:$0x1] %vm359, 0.0
          %361 = vst.msk [vmem:[#allocation2 + $0x18] sm:$0x1] %vm359, 0.0
          %362 = vst.msk [vmem:[#allocation2 + $0x30] sm:$0x1] %vm359, 0.0
          %363 = vst.msk [vmem:[#allocation2 + $0x48] sm:$0x1] %vm359, 0.0
          %364 = vst.msk [vmem:[#allocation2 + $0x60] sm:$0x1] %vm359, 0.0
          %365 = vst.msk [vmem:[#allocation2 + $0x78] sm:$0x1] %vm359, 0.0
          %366 = vst.msk [vmem:[#allocation2 + $0x90] sm:$0x1] %vm359, 0.0
          %367 = vst.msk [vmem:[#allocation2 + $0xa8] sm:$0x1] %vm359, 0.0
          %368 = vst.msk [vmem:[#allocation2 + $0xc0] sm:$0x1] %vm359, 0.0
          %369 = vst.msk [vmem:[#allocation2 + $0xd8] sm:$0x1] %vm359, 0.0
          %370 = vst.msk [vmem:[#allocation2 + $0xf0] sm:$0x1] %vm359, 0.0
          %371 = vst.msk [vmem:[#allocation2 + $0x108] sm:$0x1] %vm359, 0.0
          %372 = vst.msk [vmem:[#allocation2 + $0x120] sm:$0x1] %vm359, 0.0
          %373 = vst.msk [vmem:[#allocation2 + $0x138] sm:$0x1] %vm359, 0.0
          %374 = vst.msk [vmem:[#allocation2 + $0x150] sm:$0x1] %vm359, 0.0
          %375 = vst.msk [vmem:[#allocation2 + $0x168] sm:$0x1] %vm359, 0.0
          %376 = vst.msk [vmem:[#allocation2 + $0x180] sm:$0x1] %vm359, 0.0
          %377 = vst.msk [vmem:[#allocation2 + $0x198] sm:$0x1] %vm359, 0.0
          %378 = vst.msk [vmem:[#allocation2 + $0x11] sm:$0x1] %vm359, 0.0
          %379 = vst.msk [vmem:[#allocation2 + $0x29] sm:$0x1] %vm359, 0.0
          %380 = vst.msk [vmem:[#allocation2 + $0x41] sm:$0x1] %vm359, 0.0
          %381 = vst.msk [vmem:[#allocation2 + $0x59] sm:$0x1] %vm359, 0.0
          %382 = vst.msk [vmem:[#allocation2 + $0x71] sm:$0x1] %vm359, 0.0
          %383 = vst.msk [vmem:[#allocation2 + $0x89] sm:$0x1] %vm359, 0.0
          %384 = vst.msk [vmem:[#allocation2 + $0xa1] sm:$0x1] %vm359, 0.0
          %385 = vst.msk [vmem:[#allocation2 + $0xb9] sm:$0x1] %vm359, 0.0
          %386 = vst.msk [vmem:[#allocation2 + $0xd1] sm:$0x1] %vm359, 0.0
          %387 = vst.msk [vmem:[#allocation2 + $0xe9] sm:$0x1] %vm359, 0.0
          %388 = vst.msk [vmem:[#allocation2 + $0x101] sm:$0x1] %vm359, 0.0
          %389 = vst.msk [vmem:[#allocation2 + $0x119] sm:$0x1] %vm359, 0.0
          %390 = vst.msk [vmem:[#allocation2 + $0x131] sm:$0x1] %vm359, 0.0
          %391 = vst.msk [vmem:[#allocation2 + $0x149] sm:$0x1] %vm359, 0.0
          %392 = vst.msk [vmem:[#allocation2 + $0x161] sm:$0x1] %vm359, 0.0
          %393 = vst.msk [vmem:[#allocation2 + $0x179] sm:$0x1] %vm359, 0.0
          %394 = vst.msk [vmem:[#allocation2 + $0x191] sm:$0x1] %vm359, 0.0
          %395 = vst.msk [vmem:[#allocation2 + $0x1a9] sm:$0x1] %vm359, 0.0
          %v396 = vld [vmem:[%s344] sm:$0xff]
          %v397 = vld [vmem:[%s344 + $0x8] sm:$0xff]
          %v398 = vld [vmem:[%s344 + $0x10] sm:$0xff]
          %v399 = vld [vmem:[%s344 + $0x18] sm:$0xff]
          %v400 = vld [vmem:[%s344 + $0x20] sm:$0xff]
          %v401 = vld [vmem:[%s344 + $0x28] sm:$0xff]
          %v402 = vld [vmem:[%s344 + $0x30] sm:$0xff]
          %v403 = vld [vmem:[%s344 + $0x38] sm:$0xff]
          %v404 = vld [vmem:[%s344 + $0x40] sm:$0xff]
          %v405 = vld [vmem:[%s344 + $0x48] sm:$0xff]
          %v406 = vld [vmem:[%s344 + $0x50] sm:$0xff]
          %v407 = vld [vmem:[%s344 + $0x58] sm:$0xff]
          %v408 = vld [vmem:[%s344 + $0x60] sm:$0xff]
          %v409 = vld [vmem:[%s344 + $0x68] sm:$0xff]
          %v410 = vld [vmem:[%s344 + $0x70] sm:$0xff]
          %v411 = vld [vmem:[%s344 + $0x78] sm:$0xff]
          %v412 = vld [vmem:[%s344 + $0x80] sm:$0xff]
          %v413 = vld [vmem:[%s344 + $0x88] sm:$0xff]
          %v414 = vld [vmem:[%s344 + $0x90] sm:$0xff]
          %v415 = vld [vmem:[%s344 + $0x98] sm:$0xff]
          %v416 = vld [vmem:[%s344 + $0xa0] sm:$0xff]
          %v417 = vld [vmem:[%s344 + $0xa8] sm:$0xff]
          %v418 = vld [vmem:[%s344 + $0xb0] sm:$0xff]
          %v419 = vld [vmem:[%s344 + $0xb8] sm:$0xff]
          %v420 = vld [vmem:[%s344 + $0xc0] sm:$0xff]
          %v421 = vld [vmem:[%s344 + $0xc8] sm:$0xff]
          %v422 = vld [vmem:[%s344 + $0xd0] sm:$0xff]
          %v423 = vld [vmem:[%s344 + $0xd8] sm:$0xff]
          %v424 = vld [vmem:[%s344 + $0xe0] sm:$0xff]
          %v425 = vld [vmem:[%s344 + $0xe8] sm:$0xff]
          %v426 = vld [vmem:[%s344 + $0xf0] sm:$0xff]
          %v427 = vld [vmem:[%s344 + $0xf8] sm:$0xff]
          %v428 = vld [vmem:[%s1] sm:$0xf]
          %v429 = vld [vmem:[%s2] sm:$0x1]
          %v431 = vlaneseq
          %v432 = vshrl.u32 %v431, 7
          %v433 = vsub.s32 0, %v432
          %v434 = vrot.slane %v429, %v433
          %v437 = vsel %vm350, %v396, 0
          %v440 = vsel %vm350, %v397, 0
          %v443 = vsel %vm350, %v398, 0
          %v446 = vsel %vm350, %v399, 0
          %v449 = vsel %vm350, %v400, 0
          %v452 = vsel %vm350, %v401, 0
          %v455 = vsel %vm350, %v402, 0
          %v458 = vsel %vm350, %v403, 0
          %v461 = vsel %vm350, %v404, 0
          %v464 = vsel %vm350, %v405, 0
          %v467 = vsel %vm350, %v406, 0
          %v470 = vsel %vm350, %v407, 0
          %v473 = vsel %vm350, %v408, 0
          %v476 = vsel %vm350, %v409, 0
          %v479 = vsel %vm350, %v410, 0
          %v482 = vsel %vm350, %v411, 0
          %v485 = vsel %vm350, %v412, 0
          %v488 = vsel %vm350, %v413, 0
          %v491 = vsel %vm350, %v414, 0
          %v494 = vsel %vm350, %v415, 0
          %v497 = vsel %vm350, %v416, 0
          %v500 = vsel %vm350, %v417, 0
          %v503 = vsel %vm350, %v418, 0
          %v506 = vsel %vm350, %v419, 0
          %v509 = vsel %vm350, %v420, 0
          %v512 = vsel %vm350, %v421, 0
          %v515 = vsel %vm350, %v422, 0
          %v518 = vsel %vm350, %v423, 0
          %v521 = vsel %vm350, %v424, 0
          %v524 = vsel %vm350, %v425, 0
          %v527 = vsel %vm350, %v426, 0
          %v530 = vsel %vm350, %v427, 0
          %vm532 = vcmask 1043456
          %v534 = vsel %vm532, %v428, 0
          %536 = vmatprep.subr.mxu0 0.0
          %537 = vmatpush1.msra.mxu0 %v534
          %538 = vmatprep.subr.mxu0 0.0
          %539 = vmatpush1.msra.mxu0 0.0
          %540 = vmatprep.subr.mxu0 0.0
          %541 = vmatpush1.msra.mxu0 0.0
          %542 = vmatprep.subr.mxu0 0.0
          %543 = vmatpush1.msra.mxu0 0.0
          %544 = vmatprep.subr.mxu0 0.0
          %545 = vmatpush1.msra.mxu0 0.0
          %546 = vmatprep.subr.mxu0 0.0
          %547 = vmatpush1.msra.mxu0 0.0
          %548 = vmatprep.subr.mxu0 0.0
          %549 = vmatpush1.msra.mxu0 0.0
          %550 = vmatprep.subr.mxu0 0.0
          %551 = vmatpush1.msra.mxu0 0.0
          %552 = vmatprep.subr.mxu0 0.0
          %553 = vmatpush1.msra.mxu0 0.0
          %554 = vmatprep.subr.mxu0 0.0
          %555 = vmatpush1.msra.mxu0 0.0
          %556 = vmatprep.subr.mxu0 0.0
          %557 = vmatpush1.msra.mxu0 0.0
          %558 = vmatprep.subr.mxu0 0.0
          %559 = vmatpush1.msra.mxu0 0.0
          %560 = vmatprep.subr.mxu0 0.0
          %561 = vmatpush1.msra.mxu0 0.0
          %562 = vmatprep.subr.mxu0 0.0
          %563 = vmatpush1.msra.mxu0 0.0
          %564 = vmatprep.subr.mxu0 0.0
          %565 = vmatpush1.msra.mxu0 0.0
          %566 = vmatprep.subr.mxu0 0.0
          %567 = vmatpush1.msra.mxu0 0.0
          %568 = vmatprep.subr.mxu0 0.0
          %569 = vmatpush1.msra.mxu0 0.0
          %570 = vmatprep.subr.mxu0 0.0
          %571 = vmatpush1.msra.mxu0 0.0
          %572 = vmatprep.subr.mxu0 0.0
          %573 = vmatpush1.msra.mxu0 0.0
          %574 = vmatprep.subr.mxu0 0.0
          %575 = vmatpush1.msra.mxu0 0.0
          %576 = vmatprep.subr.mxu0 0.0
          %577 = vmatpush1.msra.mxu0 0.0
          %578 = vmatprep.subr.mxu0 0.0
          %579 = vmatpush1.msra.mxu0 0.0
          %580 = vmatprep.subr.mxu0 0.0
          %581 = vmatpush1.msra.mxu0 0.0
          %582 = vmatprep.subr.mxu0 0.0
          %583 = vmatpush1.msra.mxu0 0.0
          %584 = vmatprep.subr.mxu0 0.0
          %585 = vmatpush1.msra.mxu0 0.0
          %586 = vmatprep.subr.mxu0 0.0
          %587 = vmatpush1.msra.mxu0 0.0
          %588 = vmatprep.subr.mxu0 0.0
          %589 = vmatpush1.msra.mxu0 0.0
          %590 = vmatprep.subr.mxu0 0.0
          %591 = vmatpush1.msra.mxu0 0.0
          %592 = vmatprep.subr.mxu0 0.0
          %593 = vmatpush1.msra.mxu0 0.0
          %594 = vmatprep.subr.mxu0 0.0
          %595 = vmatpush1.msra.mxu0 0.0
          %596 = vmatprep.subr.mxu0 0.0
          %597 = vmatpush1.msra.mxu0 0.0
          %598 = vmatprep.subr.mxu0 0.0
          %599 = vmatpush1.msra.mxu0 0.0
          %600 = vmatprep.mubr.f32.mxu0 0.0
          %601 = vmatmul.mubr.f32.gmra.mrb[0].mxu0 %v437
          %v602 = vpop.f32.mrb[0].mxu0
          %v603 = vadd.f32 %v434, %v602
          %v604 = vpop.f32.mrb[0].mxu0
          %605 = vmatprep.mubr.f32.mxu0 0.0
          %606 = vmatmul.mubr.f32.gmra.mrb[0].mxu0 %v440
          %v607 = vpop.f32.mrb[0].mxu0
          %v608 = vadd.f32 %v434, %v607
          %v609 = vpop.f32.mrb[0].mxu0
          %610 = vmatprep.mubr.f32.mxu0 0.0
          %611 = vmatmul.mubr.f32.gmra.mrb[0].mxu0 %v443
          %v612 = vpop.f32.mrb[0].mxu0
          %v613 = vadd.f32 %v434, %v612
          %v614 = vpop.f32.mrb[0].mxu0
          %615 = vmatprep.mubr.f32.mxu0 0.0
          %616 = vmatmul.mubr.f32.gmra.mrb[0].mxu0 %v446
          %v617 = vpop.f32.mrb[0].mxu0
          %v618 = vadd.f32 %v434, %v617
          %v619 = vpop.f32.mrb[0].mxu0
          %620 = vmatprep.mubr.f32.mxu0 0.0
          %621 = vmatmul.mubr.f32.gmra.mrb[0].mxu0 %v449
          %v622 = vpop.f32.mrb[0].mxu0
          %v623 = vadd.f32 %v434, %v622
          %v624 = vpop.f32.mrb[0].mxu0
          %625 = vmatprep.mubr.f32.mxu0 0.0
          %626 = vmatmul.mubr.f32.gmra.mrb[0].mxu0 %v452
          %v627 = vpop.f32.mrb[0].mxu0
          %v628 = vadd.f32 %v434, %v627
          %v629 = vpop.f32.mrb[0].mxu0
          %630 = vmatprep.mubr.f32.mxu0 0.0
          %631 = vmatmul.mubr.f32.gmra.mrb[0].mxu0 %v455
          %v632 = vpop.f32.mrb[0].mxu0
          %v633 = vadd.f32 %v434, %v632
          %v634 = vpop.f32.mrb[0].mxu0
          %635 = vmatprep.mubr.f32.mxu0 0.0
          %636 = vmatmul.mubr.f32.gmra.mrb[0].mxu0 %v458
          %v637 = vpop.f32.mrb[0].mxu0
          %v638 = vadd.f32 %v434, %v637
          %v639 = vpop.f32.mrb[0].mxu0
          %640 = vmatprep.mubr.f32.mxu0 0.0
          %641 = vmatmul.mubr.f32.gmra.mrb[0].mxu0 %v461
          %v642 = vpop.f32.mrb[0].mxu0
          %v643 = vadd.f32 %v434, %v642
          %v644 = vpop.f32.mrb[0].mxu0
          %645 = vmatprep.mubr.f32.mxu0 0.0
          %646 = vmatmul.mubr.f32.gmra.mrb[0].mxu0 %v464
          %v647 = vpop.f32.mrb[0].mxu0
          %v648 = vadd.f32 %v434, %v647
          %v649 = vpop.f32.mrb[0].mxu0
          %650 = vmatprep.mubr.f32.mxu0 0.0
          %651 = vmatmul.mubr.f32.gmra.mrb[0].mxu0 %v467
          %v652 = vpop.f32.mrb[0].mxu0
          %v653 = vadd.f32 %v434, %v652
          %v654 = vpop.f32.mrb[0].mxu0
          %655 = vmatprep.mubr.f32.mxu0 0.0
          %656 = vmatmul.mubr.f32.gmra.mrb[0].mxu0 %v470
          %v657 = vpop.f32.mrb[0].mxu0
          %v658 = vadd.f32 %v434, %v657
          %v659 = vpop.f32.mrb[0].mxu0
          %660 = vmatprep.mubr.f32.mxu0 0.0
          %661 = vmatmul.mubr.f32.gmra.mrb[0].mxu0 %v473
          %v662 = vpop.f32.mrb[0].mxu0
          %v663 = vadd.f32 %v434, %v662
          %v664 = vpop.f32.mrb[0].mxu0
          %665 = vmatprep.mubr.f32.mxu0 0.0
          %666 = vmatmul.mubr.f32.gmra.mrb[0].mxu0 %v476
          %v667 = vpop.f32.mrb[0].mxu0
          %v668 = vadd.f32 %v434, %v667
          %v669 = vpop.f32.mrb[0].mxu0
          %670 = vmatprep.mubr.f32.mxu0 0.0
          %671 = vmatmul.mubr.f32.gmra.mrb[0].mxu0 %v479
          %v672 = vpop.f32.mrb[0].mxu0
          %v673 = vadd.f32 %v434, %v672
          %v674 = vpop.f32.mrb[0].mxu0
          %675 = vmatprep.mubr.f32.mxu0 0.0
          %676 = vmatmul.mubr.f32.gmra.mrb[0].mxu0 %v482
          %v677 = vpop.f32.mrb[0].mxu0
          %v678 = vadd.f32 %v434, %v677
          %v679 = vpop.f32.mrb[0].mxu0
          %680 = vmatprep.mubr.f32.mxu0 0.0
          %681 = vmatmul.mubr.f32.gmra.mrb[0].mxu0 %v485
          %v682 = vpop.f32.mrb[0].mxu0
          %v683 = vadd.f32 %v434, %v682
          %v684 = vpop.f32.mrb[0].mxu0
          %685 = vmatprep.mubr.f32.mxu0 0.0
          %686 = vmatmul.mubr.f32.gmra.mrb[0].mxu0 %v488
          %v687 = vpop.f32.mrb[0].mxu0
          %v688 = vadd.f32 %v434, %v687
          %v689 = vpop.f32.mrb[0].mxu0
          %690 = vmatprep.mubr.f32.mxu0 0.0
          %691 = vmatmul.mubr.f32.gmra.mrb[0].mxu0 %v491
          %v692 = vpop.f32.mrb[0].mxu0
          %v693 = vadd.f32 %v434, %v692
          %v694 = vpop.f32.mrb[0].mxu0
          %695 = vmatprep.mubr.f32.mxu0 0.0
          %696 = vmatmul.mubr.f32.gmra.mrb[0].mxu0 %v494
          %v697 = vpop.f32.mrb[0].mxu0
          %v698 = vadd.f32 %v434, %v697
          %v699 = vpop.f32.mrb[0].mxu0
          %700 = vmatprep.mubr.f32.mxu0 0.0
          %701 = vmatmul.mubr.f32.gmra.mrb[0].mxu0 %v497
          %v702 = vpop.f32.mrb[0].mxu0
          %v703 = vadd.f32 %v434, %v702
          %v704 = vpop.f32.mrb[0].mxu0
          %705 = vmatprep.mubr.f32.mxu0 0.0
          %706 = vmatmul.mubr.f32.gmra.mrb[0].mxu0 %v500
          %v707 = vpop.f32.mrb[0].mxu0
          %v708 = vadd.f32 %v434, %v707
          %v709 = vpop.f32.mrb[0].mxu0
          %710 = vmatprep.mubr.f32.mxu0 0.0
          %711 = vmatmul.mubr.f32.gmra.mrb[0].mxu0 %v503
          %v712 = vpop.f32.mrb[0].mxu0
          %v713 = vadd.f32 %v434, %v712
          %v714 = vpop.f32.mrb[0].mxu0
          %715 = vmatprep.mubr.f32.mxu0 0.0
          %716 = vmatmul.mubr.f32.gmra.mrb[0].mxu0 %v506
          %v717 = vpop.f32.mrb[0].mxu0
          %v718 = vadd.f32 %v434, %v717
          %v719 = vpop.f32.mrb[0].mxu0
          %720 = vmatprep.mubr.f32.mxu0 0.0
          %721 = vmatmul.mubr.f32.gmra.mrb[0].mxu0 %v509
          %v722 = vpop.f32.mrb[0].mxu0
          %v723 = vadd.f32 %v434, %v722
          %v724 = vpop.f32.mrb[0].mxu0
          %725 = vmatprep.mubr.f32.mxu0 0.0
          %726 = vmatmul.mubr.f32.gmra.mrb[0].mxu0 %v512
          %v727 = vpop.f32.mrb[0].mxu0
          %v728 = vadd.f32 %v434, %v727
          %v729 = vpop.f32.mrb[0].mxu0
          %730 = vmatprep.mubr.f32.mxu0 0.0
          %731 = vmatmul.mubr.f32.gmra.mrb[0].mxu0 %v515
          %v732 = vpop.f32.mrb[0].mxu0
          %v733 = vadd.f32 %v434, %v732
          %v734 = vpop.f32.mrb[0].mxu0
          %735 = vmatprep.mubr.f32.mxu0 0.0
          %736 = vmatmul.mubr.f32.gmra.mrb[0].mxu0 %v518
          %v737 = vpop.f32.mrb[0].mxu0
          %v738 = vadd.f32 %v434, %v737
          %v739 = vpop.f32.mrb[0].mxu0
          %740 = vmatprep.mubr.f32.mxu0 0.0
          %741 = vmatmul.mubr.f32.gmra.mrb[0].mxu0 %v521
          %v742 = vpop.f32.mrb[0].mxu0
          %v743 = vadd.f32 %v434, %v742
          %v744 = vpop.f32.mrb[0].mxu0
          %745 = vmatprep.mubr.f32.mxu0 0.0
          %746 = vmatmul.mubr.f32.gmra.mrb[0].mxu0 %v524
          %v747 = vpop.f32.mrb[0].mxu0
          %v748 = vadd.f32 %v434, %v747
          %v749 = vpop.f32.mrb[0].mxu0
          %750 = vmatprep.mubr.f32.mxu0 0.0
          %751 = vmatmul.mubr.f32.gmra.mrb[0].mxu0 %v527
          %v752 = vpop.f32.mrb[0].mxu0
          %v753 = vadd.f32 %v434, %v752
          %v754 = vpop.f32.mrb[0].mxu0
          %755 = vmatprep.mubr.f32.mxu0 0.0
          %756 = vmatmul.mubr.f32.gmra.mrb[0].mxu0 %v530
          %v757 = vpop.f32.mrb[0].mxu0
          %v758 = vadd.f32 %v434, %v757
          %v759 = vpop.f32.mrb[0].mxu0
          %760 = vdwg.mxu0
          %v761 = vmax.f32 %v603, 0.0
          %v762 = vmax.f32 %v608, 0.0
          %v763 = vmax.f32 %v613, 0.0
          %v764 = vmax.f32 %v618, 0.0
          %v765 = vmax.f32 %v623, 0.0
          %v766 = vmax.f32 %v628, 0.0
          %v767 = vmax.f32 %v633, 0.0
          %v768 = vmax.f32 %v638, 0.0
          %v769 = vmax.f32 %v643, 0.0
          %v770 = vmax.f32 %v648, 0.0
          %v771 = vmax.f32 %v653, 0.0
          %v772 = vmax.f32 %v658, 0.0
          %v773 = vmax.f32 %v663, 0.0
          %v774 = vmax.f32 %v668, 0.0
          %v775 = vmax.f32 %v673, 0.0
          %v776 = vmax.f32 %v678, 0.0
          %v777 = vmax.f32 %v683, 0.0
          %v778 = vmax.f32 %v688, 0.0
          %v779 = vmax.f32 %v693, 0.0
          %v780 = vmax.f32 %v698, 0.0
          %v781 = vmax.f32 %v703, 0.0
          %v782 = vmax.f32 %v708, 0.0
          %v783 = vmax.f32 %v713, 0.0
          %v784 = vmax.f32 %v718, 0.0
          %v785 = vmax.f32 %v723, 0.0
          %v786 = vmax.f32 %v728, 0.0
          %v787 = vmax.f32 %v733, 0.0
          %v788 = vmax.f32 %v738, 0.0
          %v789 = vmax.f32 %v743, 0.0
          %v790 = vmax.f32 %v748, 0.0
          %v791 = vmax.f32 %v753, 0.0
          %v792 = vmax.f32 %v758, 0.0
          %s793 = scalar_lea.vmem [#allocation2], 24
          %794 = vst.msk [vmem:[%s793 + $0x1] sm:$0xff] %vm350, %v761
          %795 = vst.msk [vmem:[%s793 + $0x9] sm:$0xff] %vm350, %v762
          %796 = vst.msk [vmem:[%s793 + $0x19] sm:$0xff] %vm350, %v763
          %797 = vst.msk [vmem:[%s793 + $0x21] sm:$0xff] %vm350, %v764
          %798 = vst.msk [vmem:[%s793 + $0x31] sm:$0xff] %vm350, %v765
          %799 = vst.msk [vmem:[%s793 + $0x39] sm:$0xff] %vm350, %v766
          %800 = vst.msk [vmem:[%s793 + $0x49] sm:$0xff] %vm350, %v767
          %801 = vst.msk [vmem:[%s793 + $0x51] sm:$0xff] %vm350, %v768
          %802 = vst.msk [vmem:[%s793 + $0x61] sm:$0xff] %vm350, %v769
          %803 = vst.msk [vmem:[%s793 + $0x69] sm:$0xff] %vm350, %v770
          %804 = vst.msk [vmem:[%s793 + $0x79] sm:$0xff] %vm350, %v771
          %805 = vst.msk [vmem:[%s793 + $0x81] sm:$0xff] %vm350, %v772
          %806 = vst.msk [vmem:[%s793 + $0x91] sm:$0xff] %vm350, %v773
          %807 = vst.msk [vmem:[%s793 + $0x99] sm:$0xff] %vm350, %v774
          %808 = vst.msk [vmem:[%s793 + $0xa9] sm:$0xff] %vm350, %v775
          %809 = vst.msk [vmem:[%s793 + $0xb1] sm:$0xff] %vm350, %v776
          %810 = vst.msk [vmem:[%s793 + $0xc1] sm:$0xff] %vm350, %v777
          %811 = vst.msk [vmem:[%s793 + $0xc9] sm:$0xff] %vm350, %v778
          %812 = vst.msk [vmem:[%s793 + $0xd9] sm:$0xff] %vm350, %v779
          %813 = vst.msk [vmem:[%s793 + $0xe1] sm:$0xff] %vm350, %v780
          %814 = vst.msk [vmem:[%s793 + $0xf1] sm:$0xff] %vm350, %v781
          %815 = vst.msk [vmem:[%s793 + $0xf9] sm:$0xff] %vm350, %v782
          %816 = vst.msk [vmem:[%s793 + $0x109] sm:$0xff] %vm350, %v783
          %817 = vst.msk [vmem:[%s793 + $0x111] sm:$0xff] %vm350, %v784
          %818 = vst.msk [vmem:[%s793 + $0x121] sm:$0xff] %vm350, %v785
          %819 = vst.msk [vmem:[%s793 + $0x129] sm:$0xff] %vm350, %v786
          %820 = vst.msk [vmem:[%s793 + $0x139] sm:$0xff] %vm350, %v787
          %821 = vst.msk [vmem:[%s793 + $0x141] sm:$0xff] %vm350, %v788
          %822 = vst.msk [vmem:[%s793 + $0x151] sm:$0xff] %vm350, %v789
          %823 = vst.msk [vmem:[%s793 + $0x159] sm:$0xff] %vm350, %v790
          %824 = vst.msk [vmem:[%s793 + $0x169] sm:$0xff] %vm350, %v791
          %825 = vst.msk [vmem:[%s793 + $0x171] sm:$0xff] %vm350, %v792
        $region60: #{tpu_custom_call.1} parent=55 // pred_fallthru
          _
        %s826 = smul.u32 %s28, 4
        %s827 = smul.u32 %s826, 24
        %s828 = scalar_lea.vmem [#allocation2], %s827
        %v829 = vld [vmem:[%s828] sm:$0xff]
        %v830 = vld [vmem:[%s828 + $0x8] sm:$0xff]
        %v831 = vld [vmem:[%s828 + $0x10] sm:$0x3]
        %v832 = vld [vmem:[%s828 + $0x18] sm:$0xff]
        %v833 = vld [vmem:[%s828 + $0x20] sm:$0xff]
        %v834 = vld [vmem:[%s828 + $0x28] sm:$0x3]
        %v835 = vld [vmem:[%s828 + $0x30] sm:$0xff]
        %v836 = vld [vmem:[%s828 + $0x38] sm:$0xff]
        %v837 = vld [vmem:[%s828 + $0x40] sm:$0x3]
        %v838 = vld [vmem:[%s828 + $0x48] sm:$0xff]
        %v839 = vld [vmem:[%s828 + $0x50] sm:$0xff]
        %v840 = vld [vmem:[%s828 + $0x58] sm:$0x3]
        %v841 = vld [vmem:[%s828 + $0x60] sm:$0xff]
        %v842 = vld [vmem:[%s828 + $0x68] sm:$0xff]
        %v843 = vld [vmem:[%s828 + $0x70] sm:$0x3]
        %v844 = vld [vmem:[%s828 + $0x78] sm:$0xff]
        %v845 = vld [vmem:[%s828 + $0x80] sm:$0xff]
        %v846 = vld [vmem:[%s828 + $0x88] sm:$0x3]
        %vm859 = vcmask 1046528
        %v860 = vrot.slane %v829, 1
        %v861 = vrot.slane %v830, 1
        %v862 = vsel %vm859, %v860, %v861
        %v863 = vrot.slane %v831, 1
        %v864 = vsel %vm859, %v861, %v863
        %v865 = vrot.slane %v832, 1
        %v866 = vrot.slane %v833, 1
        %v867 = vsel %vm859, %v865, %v866
        %v868 = vrot.slane %v834, 1
        %v869 = vsel %vm859, %v866, %v868
        %v870 = vrot.slane %v835, 1
        %v871 = vrot.slane %v836, 1
        %v872 = vsel %vm859, %v870, %v871
        %v873 = vrot.slane %v837, 1
        %v874 = vsel %vm859, %v871, %v873
        %v875 = vrot.slane %v838, 1
        %v876 = vrot.slane %v839, 1
        %v877 = vsel %vm859, %v875, %v876
        %v878 = vrot.slane %v840, 1
        %v879 = vsel %vm859, %v876, %v878
        %880 = vrot.lane.b32.xlu0 %v862, 4
        %v881 = vpop.permute.xlu0 %880
        %882 = vrot.lane.b32.xlu0 %v864, 4
        %v883 = vpop.permute.xlu0 %882
        %884 = vrot.lane.b32.xlu0 %v867, 4
        %v885 = vpop.permute.xlu0 %884
        %886 = vrot.lane.b32.xlu0 %v869, 4
        %v887 = vpop.permute.xlu0 %886
        %888 = vrot.lane.b32.xlu0 %v872, 4
        %v889 = vpop.permute.xlu0 %888
        %890 = vrot.lane.b32.xlu0 %v874, 4
        %v891 = vpop.permute.xlu0 %890
        %892 = vrot.lane.b32.xlu0 %v877, 4
        %v893 = vpop.permute.xlu0 %892
        %894 = vrot.lane.b32.xlu0 %v879, 4
        %v895 = vpop.permute.xlu0 %894
        %vm904 = vcmask 1045504
        %v905 = vrot.slane %v829, 2
        %v906 = vrot.slane %v830, 2
        %v907 = vsel %vm904, %v905, %v906
        %v908 = vrot.slane %v831, 2
        %v909 = vsel %vm904, %v906, %v908
        %v910 = vrot.slane %v832, 2
        %v911 = vrot.slane %v833, 2
        %v912 = vsel %vm904, %v910, %v911
        %v913 = vrot.slane %v834, 2
        %v914 = vsel %vm904, %v911, %v913
        %v915 = vrot.slane %v835, 2
        %v916 = vrot.slane %v836, 2
        %v917 = vsel %vm904, %v915, %v916
        %v918 = vrot.slane %v837, 2
        %v919 = vsel %vm904, %v916, %v918
        %v920 = vrot.slane %v838, 2
        %v921 = vrot.slane %v839, 2
        %v922 = vsel %vm904, %v920, %v921
        %v923 = vrot.slane %v840, 2
        %v924 = vsel %vm904, %v921, %v923
        %925 = vrot.lane.b32.xlu0 %v907, 8
        %v926 = vpop.permute.xlu0 %925
        %927 = vrot.lane.b32.xlu0 %v909, 8
        %v928 = vpop.permute.xlu0 %927
        %929 = vrot.lane.b32.xlu0 %v912, 8
        %v930 = vpop.permute.xlu0 %929
        %931 = vrot.lane.b32.xlu0 %v914, 8
        %v932 = vpop.permute.xlu0 %931
        %933 = vrot.lane.b32.xlu0 %v917, 8
        %v934 = vpop.permute.xlu0 %933
        %935 = vrot.lane.b32.xlu0 %v919, 8
        %v936 = vpop.permute.xlu0 %935
        %937 = vrot.lane.b32.xlu0 %v922, 8
        %v938 = vpop.permute.xlu0 %937
        %939 = vrot.lane.b32.xlu0 %v924, 8
        %v940 = vpop.permute.xlu0 %939
        %vm949 = vcmask 31744
        %v950 = vsel %vm949, %v829, %v881
        %v951 = vsel %vm949, %v830, %v883
        %v952 = vsel %vm949, %v832, %v885
        %v953 = vsel %vm949, %v833, %v887
        %v954 = vsel %vm949, %v835, %v889
        %v955 = vsel %vm949, %v836, %v891
        %v956 = vsel %vm949, %v838, %v893
        %v957 = vsel %vm949, %v839, %v895
        %vm958 = vcmask 64512
        %v959 = vsel %vm958, %v950, %v926
        %v960 = vsel %vm958, %v951, %v928
        %v961 = vsel %vm958, %v952, %v930
        %v962 = vsel %vm958, %v953, %v932
        %v963 = vsel %vm958, %v954, %v934
        %v964 = vsel %vm958, %v955, %v936
        %v965 = vsel %vm958, %v956, %v938
        %v966 = vsel %vm958, %v957, %v940
        %v967 = vld [vmem:[%s3] sm:$0xff]
        %v968 = vld [vmem:[%s3 + $0x8] sm:$0xf]
        %v972 = vrot.slane %v841, 1
        %v973 = vrot.slane %v842, 1
        %v974 = vsel %vm859, %v972, %v973
        %v975 = vrot.slane %v843, 1
        %v976 = vsel %vm859, %v973, %v975
        %977 = vrot.lane.b32.xlu0 %v974, 4
        %v978 = vpop.permute.xlu0 %977
        %979 = vrot.lane.b32.xlu0 %v976, 4
        %v980 = vpop.permute.xlu0 %979
        %v983 = vrot.slane %v841, 2
        %v984 = vrot.slane %v842, 2
        %v985 = vsel %vm904, %v983, %v984
        %v986 = vrot.slane %v843, 2
        %v987 = vsel %vm904, %v984, %v986
        %988 = vrot.lane.b32.xlu0 %v985, 8
        %v989 = vpop.permute.xlu0 %988
        %990 = vrot.lane.b32.xlu0 %v987, 8
        %v991 = vpop.permute.xlu0 %990
        %v994 = vsel %vm949, %v841, %v978
        %v995 = vsel %vm949, %v842, %v980
        %v996 = vsel %vm958, %v994, %v989
        %v997 = vsel %vm958, %v995, %v991
        %s998 = scalar_lea.vmem %s3, 16
        %v999 = vld [vmem:[%s998] sm:$0xff]
        %v1000 = vld [vmem:[%s998 + $0x8] sm:$0xf]
        %vm1001 = vcmask 97280
        %v1003 = vsel %vm1001, %v961, 0
        %v1006 = vsel %vm1001, %v962, 0
        %v1009 = vsel %vm1001, %v963, 0
        %v1012 = vsel %vm1001, %v964, 0
        %v1015 = vsel %vm1001, %v965, 0
        %v1018 = vsel %vm1001, %v966, 0
        %v1021 = vsel %vm1001, %v996, 0
        %v1024 = vsel %vm1001, %v997, 0
        %vm1026 = vcmask 1043456
        %v1028 = vsel %vm1026, %v1000, 0
        %1030 = vmatprep.subr.mxu0 0.0
        %1031 = vmatpush1.msra.mxu0 %v999
        %1032 = vmatprep.subr.mxu0 0.0
        %1033 = vmatpush1.msra.mxu0 %v1028
        %1034 = vmatprep.subr.mxu0 0.0
        %1035 = vmatpush1.msra.mxu0 0.0
        %1036 = vmatprep.subr.mxu0 0.0
        %1037 = vmatpush1.msra.mxu0 0.0
        %1038 = vmatprep.subr.mxu0 0.0
        %1039 = vmatpush1.msra.mxu0 0.0
        %1040 = vmatprep.subr.mxu0 0.0
        %1041 = vmatpush1.msra.mxu0 0.0
        %1042 = vmatprep.subr.mxu0 0.0
        %1043 = vmatpush1.msra.mxu0 0.0
        %1044 = vmatprep.subr.mxu0 0.0
        %1045 = vmatpush1.msra.mxu0 0.0
        %1046 = vmatprep.subr.mxu0 0.0
        %1047 = vmatpush1.msra.mxu0 0.0
        %1048 = vmatprep.subr.mxu0 0.0
        %1049 = vmatpush1.msra.mxu0 0.0
        %1050 = vmatprep.subr.mxu0 0.0
        %1051 = vmatpush1.msra.mxu0 0.0
        %1052 = vmatprep.subr.mxu0 0.0
        %1053 = vmatpush1.msra.mxu0 0.0
        %1054 = vmatprep.subr.mxu0 0.0
        %1055 = vmatpush1.msra.mxu0 0.0
        %1056 = vmatprep.subr.mxu0 0.0
        %1057 = vmatpush1.msra.mxu0 0.0
        %1058 = vmatprep.subr.mxu0 0.0
        %1059 = vmatpush1.msra.mxu0 0.0
        %1060 = vmatprep.subr.mxu0 0.0
        %1061 = vmatpush1.msra.mxu0 0.0
        %1062 = vmatprep.subr.mxu0 0.0
        %1063 = vmatpush1.msra.mxu0 0.0
        %1064 = vmatprep.subr.mxu0 0.0
        %1065 = vmatpush1.msra.mxu0 0.0
        %1066 = vmatprep.subr.mxu0 0.0
        %1067 = vmatpush1.msra.mxu0 0.0
        %1068 = vmatprep.subr.mxu0 0.0
        %1069 = vmatpush1.msra.mxu0 0.0
        %1070 = vmatprep.subr.mxu0 0.0
        %1071 = vmatpush1.msra.mxu0 0.0
        %1072 = vmatprep.subr.mxu0 0.0
        %1073 = vmatpush1.msra.mxu0 0.0
        %1074 = vmatprep.subr.mxu0 0.0
        %1075 = vmatpush1.msra.mxu0 0.0
        %1076 = vmatprep.subr.mxu0 0.0
        %1077 = vmatpush1.msra.mxu0 0.0
        %1078 = vmatprep.subr.mxu0 0.0
        %1079 = vmatpush1.msra.mxu0 0.0
        %1080 = vmatprep.subr.mxu0 0.0
        %1081 = vmatpush1.msra.mxu0 0.0
        %1082 = vmatprep.subr.mxu0 0.0
        %1083 = vmatpush1.msra.mxu0 0.0
        %1084 = vmatprep.subr.mxu0 0.0
        %1085 = vmatpush1.msra.mxu0 0.0
        %1086 = vmatprep.subr.mxu0 0.0
        %1087 = vmatpush1.msra.mxu0 0.0
        %1088 = vmatprep.subr.mxu0 0.0
        %1089 = vmatpush1.msra.mxu0 0.0
        %1090 = vmatprep.subr.mxu0 0.0
        %1091 = vmatpush1.msra.mxu0 0.0
        %1092 = vmatprep.subr.mxu0 0.0
        %1093 = vmatpush1.msra.mxu0 0.0
        %1094 = vmatprep.mubr.f32.mxu0 0.0
        %1095 = vmatmul.mubr.f32.gmra.mrb[0].mxu0 %v1003
        %v1096 = vpop.f32.mrb[0].mxu0
        %v1097 = vadd.f32 0.0, %v1096
        %v1098 = vpop.f32.mrb[0].mxu0
        %1099 = vmatprep.mubr.f32.mxu0 0.0
        %1100 = vmatmul.mubr.f32.gmra.mrb[0].mxu0 %v1006
        %v1101 = vpop.f32.mrb[0].mxu0
        %v1102 = vadd.f32 0.0, %v1101
        %v1103 = vpop.f32.mrb[0].mxu0
        %1104 = vmatprep.mubr.f32.mxu0 0.0
        %1105 = vmatmul.mubr.f32.gmra.mrb[0].mxu0 %v1009
        %v1106 = vpop.f32.mrb[0].mxu0
        %v1107 = vadd.f32 0.0, %v1106
        %v1108 = vpop.f32.mrb[0].mxu0
        %1109 = vmatprep.mubr.f32.mxu0 0.0
        %1110 = vmatmul.mubr.f32.gmra.mrb[0].mxu0 %v1012
        %v1111 = vpop.f32.mrb[0].mxu0
        %v1112 = vadd.f32 0.0, %v1111
        %v1113 = vpop.f32.mrb[0].mxu0
        %1114 = vmatprep.mubr.f32.mxu0 0.0
        %1115 = vmatmul.mubr.f32.gmra.mrb[0].mxu0 %v1015
        %v1116 = vpop.f32.mrb[0].mxu0
        %v1117 = vadd.f32 0.0, %v1116
        %v1118 = vpop.f32.mrb[0].mxu0
        %1119 = vmatprep.mubr.f32.mxu0 0.0
        %1120 = vmatmul.mubr.f32.gmra.mrb[0].mxu0 %v1018
        %v1121 = vpop.f32.mrb[0].mxu0
        %v1122 = vadd.f32 0.0, %v1121
        %v1123 = vpop.f32.mrb[0].mxu0
        %1124 = vmatprep.mubr.f32.mxu0 0.0
        %1125 = vmatmul.mubr.f32.gmra.mrb[0].mxu0 %v1021
        %v1126 = vpop.f32.mrb[0].mxu0
        %v1127 = vadd.f32 0.0, %v1126
        %v1128 = vpop.f32.mrb[0].mxu0
        %1129 = vmatprep.mubr.f32.mxu0 0.0
        %1130 = vmatmul.mubr.f32.gmra.mrb[0].mxu0 %v1024
        %v1131 = vpop.f32.mrb[0].mxu0
        %v1132 = vadd.f32 0.0, %v1131
        %v1133 = vpop.f32.mrb[0].mxu0
        %1134 = vdwg.mxu0
        %v1136 = vsel %vm1001, %v959, 0
        %v1139 = vsel %vm1001, %v960, 0
        %v1142 = vsel %vm1026, %v968, 0
        %1144 = vmatprep.subr.mxu0 0.0
        %1145 = vmatpush1.msra.mxu0 %v967
        %1146 = vmatprep.subr.mxu0 0.0
        %1147 = vmatpush1.msra.mxu0 %v1142
        %1148 = vmatprep.subr.mxu0 0.0
        %1149 = vmatpush1.msra.mxu0 0.0
        %1150 = vmatprep.subr.mxu0 0.0
        %1151 = vmatpush1.msra.mxu0 0.0
        %1152 = vmatprep.subr.mxu0 0.0
        %1153 = vmatpush1.msra.mxu0 0.0
        %1154 = vmatprep.subr.mxu0 0.0
        %1155 = vmatpush1.msra.mxu0 0.0
        %1156 = vmatprep.subr.mxu0 0.0
        %1157 = vmatpush1.msra.mxu0 0.0
        %1158 = vmatprep.subr.mxu0 0.0
        %1159 = vmatpush1.msra.mxu0 0.0
        %1160 = vmatprep.subr.mxu0 0.0
        %1161 = vmatpush1.msra.mxu0 0.0
        %1162 = vmatprep.subr.mxu0 0.0
        %1163 = vmatpush1.msra.mxu0 0.0
        %1164 = vmatprep.subr.mxu0 0.0
        %1165 = vmatpush1.msra.mxu0 0.0
        %1166 = vmatprep.subr.mxu0 0.0
        %1167 = vmatpush1.msra.mxu0 0.0
        %1168 = vmatprep.subr.mxu0 0.0
        %1169 = vmatpush1.msra.mxu0 0.0
        %1170 = vmatprep.subr.mxu0 0.0
        %1171 = vmatpush1.msra.mxu0 0.0
        %1172 = vmatprep.subr.mxu0 0.0
        %1173 = vmatpush1.msra.mxu0 0.0
        %1174 = vmatprep.subr.mxu0 0.0
        %1175 = vmatpush1.msra.mxu0 0.0
        %1176 = vmatprep.subr.mxu0 0.0
        %1177 = vmatpush1.msra.mxu0 0.0
        %1178 = vmatprep.subr.mxu0 0.0
        %1179 = vmatpush1.msra.mxu0 0.0
        %1180 = vmatprep.subr.mxu0 0.0
        %1181 = vmatpush1.msra.mxu0 0.0
        %1182 = vmatprep.subr.mxu0 0.0
        %1183 = vmatpush1.msra.mxu0 0.0
        %1184 = vmatprep.subr.mxu0 0.0
        %1185 = vmatpush1.msra.mxu0 0.0
        %1186 = vmatprep.subr.mxu0 0.0
        %1187 = vmatpush1.msra.mxu0 0.0
        %1188 = vmatprep.subr.mxu0 0.0
        %1189 = vmatpush1.msra.mxu0 0.0
        %1190 = vmatprep.subr.mxu0 0.0
        %1191 = vmatpush1.msra.mxu0 0.0
        %1192 = vmatprep.subr.mxu0 0.0
        %1193 = vmatpush1.msra.mxu0 0.0
        %1194 = vmatprep.subr.mxu0 0.0
        %1195 = vmatpush1.msra.mxu0 0.0
        %1196 = vmatprep.subr.mxu0 0.0
        %1197 = vmatpush1.msra.mxu0 0.0
        %1198 = vmatprep.subr.mxu0 0.0
        %1199 = vmatpush1.msra.mxu0 0.0
        %1200 = vmatprep.subr.mxu0 0.0
        %1201 = vmatpush1.msra.mxu0 0.0
        %1202 = vmatprep.subr.mxu0 0.0
        %1203 = vmatpush1.msra.mxu0 0.0
        %1204 = vmatprep.subr.mxu0 0.0
        %1205 = vmatpush1.msra.mxu0 0.0
        %1206 = vmatprep.subr.mxu0 0.0
        %1207 = vmatpush1.msra.mxu0 0.0
        %1208 = vmatprep.mubr.f32.mxu0 0.0
        %1209 = vmatmul.mubr.f32.gmra.mrb[0].mxu0 %v1136
        %v1210 = vpop.f32.mrb[0].mxu0
        %v1211 = vadd.f32 %v1097, %v1210
        %v1212 = vpop.f32.mrb[0].mxu0
        %1213 = vmatprep.mubr.f32.mxu0 0.0
        %1214 = vmatmul.mubr.f32.gmra.mrb[0].mxu0 %v1139
        %v1215 = vpop.f32.mrb[0].mxu0
        %v1216 = vadd.f32 %v1102, %v1215
        %v1217 = vpop.f32.mrb[0].mxu0
        %1218 = vmatprep.mubr.f32.mxu0 0.0
        %1219 = vmatmul.mubr.f32.gmra.mrb[0].mxu0 %v1003
        %v1220 = vpop.f32.mrb[0].mxu0
        %v1221 = vadd.f32 %v1107, %v1220
        %v1222 = vpop.f32.mrb[0].mxu0
        %1223 = vmatprep.mubr.f32.mxu0 0.0
        %1224 = vmatmul.mubr.f32.gmra.mrb[0].mxu0 %v1006
        %v1225 = vpop.f32.mrb[0].mxu0
        %v1226 = vadd.f32 %v1112, %v1225
        %v1227 = vpop.f32.mrb[0].mxu0
        %1228 = vmatprep.mubr.f32.mxu0 0.0
        %1229 = vmatmul.mubr.f32.gmra.mrb[0].mxu0 %v1009
        %v1230 = vpop.f32.mrb[0].mxu0
        %v1231 = vadd.f32 %v1117, %v1230
        %v1232 = vpop.f32.mrb[0].mxu0
        %1233 = vmatprep.mubr.f32.mxu0 0.0
        %1234 = vmatmul.mubr.f32.gmra.mrb[0].mxu0 %v1012
        %v1235 = vpop.f32.mrb[0].mxu0
        %v1236 = vadd.f32 %v1122, %v1235
        %v1237 = vpop.f32.mrb[0].mxu0
        %1238 = vmatprep.mubr.f32.mxu0 0.0
        %1239 = vmatmul.mubr.f32.gmra.mrb[0].mxu0 %v1015
        %v1240 = vpop.f32.mrb[0].mxu0
        %v1241 = vadd.f32 %v1127, %v1240
        %v1242 = vpop.f32.mrb[0].mxu0
        %1243 = vmatprep.mubr.f32.mxu0 0.0
        %1244 = vmatmul.mubr.f32.gmra.mrb[0].mxu0 %v1018
        %v1245 = vpop.f32.mrb[0].mxu0
        %v1246 = vadd.f32 %v1132, %v1245
        %v1247 = vpop.f32.mrb[0].mxu0
        %1248 = vdwg.mxu0
        %v1252 = vrot.slane %v844, 1
        %v1253 = vrot.slane %v845, 1
        %v1254 = vsel %vm859, %v1252, %v1253
        %v1255 = vrot.slane %v846, 1
        %v1256 = vsel %vm859, %v1253, %v1255
        %1257 = vrot.lane.b32.xlu0 %v1254, 4
        %v1258 = vpop.permute.xlu0 %1257
        %1259 = vrot.lane.b32.xlu0 %v1256, 4
        %v1260 = vpop.permute.xlu0 %1259
        %v1263 = vrot.slane %v844, 2
        %v1264 = vrot.slane %v845, 2
        %v1265 = vsel %vm904, %v1263, %v1264
        %v1266 = vrot.slane %v846, 2
        %v1267 = vsel %vm904, %v1264, %v1266
        %1268 = vrot.lane.b32.xlu0 %v1265, 8
        %v1269 = vpop.permute.xlu0 %1268
        %1270 = vrot.lane.b32.xlu0 %v1267, 8
        %v1271 = vpop.permute.xlu0 %1270
        %v1274 = vsel %vm949, %v844, %v1258
        %v1275 = vsel %vm949, %v845, %v1260
        %v1276 = vsel %vm958, %v1274, %v1269
        %v1277 = vsel %vm958, %v1275, %v1271
        %s1278 = scalar_lea.vmem %s3, 32
        %v1279 = vld [vmem:[%s1278] sm:$0xff]
        %v1280 = vld [vmem:[%s1278 + $0x8] sm:$0xf]
        %v1282 = vsel %vm1001, %v1276, 0
        %v1285 = vsel %vm1001, %v1277, 0
        %v1288 = vsel %vm1026, %v1280, 0
        %1290 = vmatprep.subr.mxu0 0.0
        %1291 = vmatpush1.msra.mxu0 %v1279
        %1292 = vmatprep.subr.mxu0 0.0
        %1293 = vmatpush1.msra.mxu0 %v1288
        %1294 = vmatprep.subr.mxu0 0.0
        %1295 = vmatpush1.msra.mxu0 0.0
        %1296 = vmatprep.subr.mxu0 0.0
        %1297 = vmatpush1.msra.mxu0 0.0
        %1298 = vmatprep.subr.mxu0 0.0
        %1299 = vmatpush1.msra.mxu0 0.0
        %1300 = vmatprep.subr.mxu0 0.0
        %1301 = vmatpush1.msra.mxu0 0.0
        %1302 = vmatprep.subr.mxu0 0.0
        %1303 = vmatpush1.msra.mxu0 0.0
        %1304 = vmatprep.subr.mxu0 0.0
        %1305 = vmatpush1.msra.mxu0 0.0
        %1306 = vmatprep.subr.mxu0 0.0
        %1307 = vmatpush1.msra.mxu0 0.0
        %1308 = vmatprep.subr.mxu0 0.0
        %1309 = vmatpush1.msra.mxu0 0.0
        %1310 = vmatprep.subr.mxu0 0.0
        %1311 = vmatpush1.msra.mxu0 0.0
        %1312 = vmatprep.subr.mxu0 0.0
        %1313 = vmatpush1.msra.mxu0 0.0
        %1314 = vmatprep.subr.mxu0 0.0
        %1315 = vmatpush1.msra.mxu0 0.0
        %1316 = vmatprep.subr.mxu0 0.0
        %1317 = vmatpush1.msra.mxu0 0.0
        %1318 = vmatprep.subr.mxu0 0.0
        %1319 = vmatpush1.msra.mxu0 0.0
        %1320 = vmatprep.subr.mxu0 0.0
        %1321 = vmatpush1.msra.mxu0 0.0
        %1322 = vmatprep.subr.mxu0 0.0
        %1323 = vmatpush1.msra.mxu0 0.0
        %1324 = vmatprep.subr.mxu0 0.0
        %1325 = vmatpush1.msra.mxu0 0.0
        %1326 = vmatprep.subr.mxu0 0.0
        %1327 = vmatpush1.msra.mxu0 0.0
        %1328 = vmatprep.subr.mxu0 0.0
        %1329 = vmatpush1.msra.mxu0 0.0
        %1330 = vmatprep.subr.mxu0 0.0
        %1331 = vmatpush1.msra.mxu0 0.0
        %1332 = vmatprep.subr.mxu0 0.0
        %1333 = vmatpush1.msra.mxu0 0.0
        %1334 = vmatprep.subr.mxu0 0.0
        %1335 = vmatpush1.msra.mxu0 0.0
        %1336 = vmatprep.subr.mxu0 0.0
        %1337 = vmatpush1.msra.mxu0 0.0
        %1338 = vmatprep.subr.mxu0 0.0
        %1339 = vmatpush1.msra.mxu0 0.0
        %1340 = vmatprep.subr.mxu0 0.0
        %1341 = vmatpush1.msra.mxu0 0.0
        %1342 = vmatprep.subr.mxu0 0.0
        %1343 = vmatpush1.msra.mxu0 0.0
        %1344 = vmatprep.subr.mxu0 0.0
        %1345 = vmatpush1.msra.mxu0 0.0
        %1346 = vmatprep.subr.mxu0 0.0
        %1347 = vmatpush1.msra.mxu0 0.0
        %1348 = vmatprep.subr.mxu0 0.0
        %1349 = vmatpush1.msra.mxu0 0.0
        %1350 = vmatprep.subr.mxu0 0.0
        %1351 = vmatpush1.msra.mxu0 0.0
        %1352 = vmatprep.subr.mxu0 0.0
        %1353 = vmatpush1.msra.mxu0 0.0
        %1354 = vmatprep.mubr.f32.mxu0 0.0
        %1355 = vmatmul.mubr.f32.gmra.mrb[0].mxu0 %v1009
        %v1356 = vpop.f32.mrb[0].mxu0
        %v1357 = vadd.f32 0.0, %v1356
        %v1358 = vpop.f32.mrb[0].mxu0
        %1359 = vmatprep.mubr.f32.mxu0 0.0
        %1360 = vmatmul.mubr.f32.gmra.mrb[0].mxu0 %v1012
        %v1361 = vpop.f32.mrb[0].mxu0
        %v1362 = vadd.f32 0.0, %v1361
        %v1363 = vpop.f32.mrb[0].mxu0
        %1364 = vmatprep.mubr.f32.mxu0 0.0
        %1365 = vmatmul.mubr.f32.gmra.mrb[0].mxu0 %v1015
        %v1366 = vpop.f32.mrb[0].mxu0
        %v1367 = vadd.f32 0.0, %v1366
        %v1368 = vpop.f32.mrb[0].mxu0
        %1369 = vmatprep.mubr.f32.mxu0 0.0
        %1370 = vmatmul.mubr.f32.gmra.mrb[0].mxu0 %v1018
        %v1371 = vpop.f32.mrb[0].mxu0
        %v1372 = vadd.f32 0.0, %v1371
        %v1373 = vpop.f32.mrb[0].mxu0
        %1374 = vmatprep.mubr.f32.mxu0 0.0
        %1375 = vmatmul.mubr.f32.gmra.mrb[0].mxu0 %v1021
        %v1376 = vpop.f32.mrb[0].mxu0
        %v1377 = vadd.f32 0.0, %v1376
        %v1378 = vpop.f32.mrb[0].mxu0
        %1379 = vmatprep.mubr.f32.mxu0 0.0
        %1380 = vmatmul.mubr.f32.gmra.mrb[0].mxu0 %v1024
        %v1381 = vpop.f32.mrb[0].mxu0
        %v1382 = vadd.f32 0.0, %v1381
        %v1383 = vpop.f32.mrb[0].mxu0
        %1384 = vmatprep.mubr.f32.mxu0 0.0
        %1385 = vmatmul.mubr.f32.gmra.mrb[0].mxu0 %v1282
        %v1386 = vpop.f32.mrb[0].mxu0
        %v1387 = vadd.f32 0.0, %v1386
        %v1388 = vpop.f32.mrb[0].mxu0
        %1389 = vmatprep.mubr.f32.mxu0 0.0
        %1390 = vmatmul.mubr.f32.gmra.mrb[0].mxu0 %v1285
        %v1391 = vpop.f32.mrb[0].mxu0
        %v1392 = vadd.f32 0.0, %v1391
        %v1393 = vpop.f32.mrb[0].mxu0
        %1394 = vdwg.mxu0
        %v1395 = vadd.f32 %v1211, %v1357
        %v1396 = vadd.f32 %v1216, %v1362
        %v1397 = vadd.f32 %v1221, %v1367
        %v1398 = vadd.f32 %v1226, %v1372
        %v1399 = vadd.f32 %v1231, %v1377
        %v1400 = vadd.f32 %v1236, %v1382
        %v1401 = vadd.f32 %v1241, %v1387
        %v1402 = vadd.f32 %v1246, %v1392
        %v1403 = vld [vmem:[%s4] sm:$0x1]
        %v1405 = vlaneseq
        %v1406 = vshrl.u32 %v1405, 7
        %v1407 = vsub.s32 0, %v1406
        %v1408 = vrot.slane %v1403, %v1407
        %v1410 = vadd.f32 %v1395, %v1408
        %v1411 = vadd.f32 %v1396, %v1408
        %v1412 = vadd.f32 %v1397, %v1408
        %v1413 = vadd.f32 %v1398, %v1408
        %v1414 = vadd.f32 %v1399, %v1408
        %v1415 = vadd.f32 %v1400, %v1408
        %v1416 = vadd.f32 %v1401, %v1408
        %v1417 = vadd.f32 %v1402, %v1408
        %v1418 = vmax.f32 %v1410, 0.0
        %v1419 = vmax.f32 %v1411, 0.0
        %v1420 = vmax.f32 %v1412, 0.0
        %v1421 = vmax.f32 %v1413, 0.0
        %v1422 = vmax.f32 %v1414, 0.0
        %v1423 = vmax.f32 %v1415, 0.0
        %v1424 = vmax.f32 %v1416, 0.0
        %v1425 = vmax.f32 %v1417, 0.0
        %v1426 = vld [vmem:[%s5] sm:$0xf]
        %v1427 = vld [vmem:[%s6] sm:$0x1]
        %v1429 = vlaneseq
        %v1430 = vshrl.u32 %v1429, 7
        %v1431 = vsub.s32 0, %v1430
        %v1432 = vrot.slane %v1427, %v1431
        %v1435 = vsel %vm949, %v1418, 0
        %v1438 = vsel %vm949, %v1419, 0
        %v1441 = vsel %vm949, %v1420, 0
        %v1444 = vsel %vm949, %v1421, 0
        %v1447 = vsel %vm949, %v1422, 0
        %v1450 = vsel %vm949, %v1423, 0
        %v1453 = vsel %vm949, %v1424, 0
        %v1456 = vsel %vm949, %v1425, 0
        %v1459 = vsel %vm1026, %v1426, 0
        %1461 = vmatprep.subr.mxu0 0.0
        %1462 = vmatpush1.msra.mxu0 %v1459
        %1463 = vmatprep.subr.mxu0 0.0
        %1464 = vmatpush1.msra.mxu0 0.0
        %1465 = vmatprep.subr.mxu0 0.0
        %1466 = vmatpush1.msra.mxu0 0.0
        %1467 = vmatprep.subr.mxu0 0.0
        %1468 = vmatpush1.msra.mxu0 0.0
        %1469 = vmatprep.subr.mxu0 0.0
        %1470 = vmatpush1.msra.mxu0 0.0
        %1471 = vmatprep.subr.mxu0 0.0
        %1472 = vmatpush1.msra.mxu0 0.0
        %1473 = vmatprep.subr.mxu0 0.0
        %1474 = vmatpush1.msra.mxu0 0.0
        %1475 = vmatprep.subr.mxu0 0.0
        %1476 = vmatpush1.msra.mxu0 0.0
        %1477 = vmatprep.subr.mxu0 0.0
        %1478 = vmatpush1.msra.mxu0 0.0
        %1479 = vmatprep.subr.mxu0 0.0
        %1480 = vmatpush1.msra.mxu0 0.0
        %1481 = vmatprep.subr.mxu0 0.0
        %1482 = vmatpush1.msra.mxu0 0.0
        %1483 = vmatprep.subr.mxu0 0.0
        %1484 = vmatpush1.msra.mxu0 0.0
        %1485 = vmatprep.subr.mxu0 0.0
        %1486 = vmatpush1.msra.mxu0 0.0
        %1487 = vmatprep.subr.mxu0 0.0
        %1488 = vmatpush1.msra.mxu0 0.0
        %1489 = vmatprep.subr.mxu0 0.0
        %1490 = vmatpush1.msra.mxu0 0.0
        %1491 = vmatprep.subr.mxu0 0.0
        %1492 = vmatpush1.msra.mxu0 0.0
        %1493 = vmatprep.subr.mxu0 0.0
        %1494 = vmatpush1.msra.mxu0 0.0
        %1495 = vmatprep.subr.mxu0 0.0
        %1496 = vmatpush1.msra.mxu0 0.0
        %1497 = vmatprep.subr.mxu0 0.0
        %1498 = vmatpush1.msra.mxu0 0.0
        %1499 = vmatprep.subr.mxu0 0.0
        %1500 = vmatpush1.msra.mxu0 0.0
        %1501 = vmatprep.subr.mxu0 0.0
        %1502 = vmatpush1.msra.mxu0 0.0
        %1503 = vmatprep.subr.mxu0 0.0
        %1504 = vmatpush1.msra.mxu0 0.0
        %1505 = vmatprep.subr.mxu0 0.0
        %1506 = vmatpush1.msra.mxu0 0.0
        %1507 = vmatprep.subr.mxu0 0.0
        %1508 = vmatpush1.msra.mxu0 0.0
        %1509 = vmatprep.subr.mxu0 0.0
        %1510 = vmatpush1.msra.mxu0 0.0
        %1511 = vmatprep.subr.mxu0 0.0
        %1512 = vmatpush1.msra.mxu0 0.0
        %1513 = vmatprep.subr.mxu0 0.0
        %1514 = vmatpush1.msra.mxu0 0.0
        %1515 = vmatprep.subr.mxu0 0.0
        %1516 = vmatpush1.msra.mxu0 0.0
        %1517 = vmatprep.subr.mxu0 0.0
        %1518 = vmatpush1.msra.mxu0 0.0
        %1519 = vmatprep.subr.mxu0 0.0
        %1520 = vmatpush1.msra.mxu0 0.0
        %1521 = vmatprep.subr.mxu0 0.0
        %1522 = vmatpush1.msra.mxu0 0.0
        %1523 = vmatprep.subr.mxu0 0.0
        %1524 = vmatpush1.msra.mxu0 0.0
        %1525 = vmatprep.mubr.f32.mxu0 0.0
        %1526 = vmatmul.mubr.f32.gmra.mrb[0].mxu0 %v1435
        %v1527 = vpop.f32.mrb[0].mxu0
        %v1528 = vadd.f32 %v1432, %v1527
        %v1529 = vpop.f32.mrb[0].mxu0
        %1530 = vmatprep.mubr.f32.mxu0 0.0
        %1531 = vmatmul.mubr.f32.gmra.mrb[0].mxu0 %v1438
        %v1532 = vpop.f32.mrb[0].mxu0
        %v1533 = vadd.f32 %v1432, %v1532
        %v1534 = vpop.f32.mrb[0].mxu0
        %1535 = vmatprep.mubr.f32.mxu0 0.0
        %1536 = vmatmul.mubr.f32.gmra.mrb[0].mxu0 %v1441
        %v1537 = vpop.f32.mrb[0].mxu0
        %v1538 = vadd.f32 %v1432, %v1537
        %v1539 = vpop.f32.mrb[0].mxu0
        %1540 = vmatprep.mubr.f32.mxu0 0.0
        %1541 = vmatmul.mubr.f32.gmra.mrb[0].mxu0 %v1444
        %v1542 = vpop.f32.mrb[0].mxu0
        %v1543 = vadd.f32 %v1432, %v1542
        %v1544 = vpop.f32.mrb[0].mxu0
        %1545 = vmatprep.mubr.f32.mxu0 0.0
        %1546 = vmatmul.mubr.f32.gmra.mrb[0].mxu0 %v1447
        %v1547 = vpop.f32.mrb[0].mxu0
        %v1548 = vadd.f32 %v1432, %v1547
        %v1549 = vpop.f32.mrb[0].mxu0
        %1550 = vmatprep.mubr.f32.mxu0 0.0
        %1551 = vmatmul.mubr.f32.gmra.mrb[0].mxu0 %v1450
        %v1552 = vpop.f32.mrb[0].mxu0
        %v1553 = vadd.f32 %v1432, %v1552
        %v1554 = vpop.f32.mrb[0].mxu0
        %1555 = vmatprep.mubr.f32.mxu0 0.0
        %1556 = vmatmul.mubr.f32.gmra.mrb[0].mxu0 %v1453
        %v1557 = vpop.f32.mrb[0].mxu0
        %v1558 = vadd.f32 %v1432, %v1557
        %v1559 = vpop.f32.mrb[0].mxu0
        %1560 = vmatprep.mubr.f32.mxu0 0.0
        %1561 = vmatmul.mubr.f32.gmra.mrb[0].mxu0 %v1456
        %v1562 = vpop.f32.mrb[0].mxu0
        %v1563 = vadd.f32 %v1432, %v1562
        %v1564 = vpop.f32.mrb[0].mxu0
        %1565 = vdwg.mxu0
        %s1566 = smul.u32 %s826, 16
        %s1567 = scalar_lea.vmem %s344, %s1566
        %v1568 = vld [vmem:[%s1567] sm:$0xff]
        %v1569 = vld [vmem:[%s1567 + $0x8] sm:$0xff]
        %v1570 = vld [vmem:[%s1567 + $0x10] sm:$0xff]
        %v1571 = vld [vmem:[%s1567 + $0x18] sm:$0xff]
        %v1572 = vld [vmem:[%s1567 + $0x20] sm:$0xff]
        %v1573 = vld [vmem:[%s1567 + $0x28] sm:$0xff]
        %v1574 = vld [vmem:[%s1567 + $0x30] sm:$0xff]
        %v1575 = vld [vmem:[%s1567 + $0x38] sm:$0xff]
        %v1576 = vld [vmem:[%s7] sm:$0xf]
        %v1577 = vld [vmem:[%s8] sm:$0x1]
        %v1579 = vlaneseq
        %v1580 = vshrl.u32 %v1579, 7
        %v1581 = vsub.s32 0, %v1580
        %v1582 = vrot.slane %v1577, %v1581
        %v1585 = vsel %vm949, %v1568, 0
        %v1588 = vsel %vm949, %v1569, 0
        %v1591 = vsel %vm949, %v1570, 0
        %v1594 = vsel %vm949, %v1571, 0
        %v1597 = vsel %vm949, %v1572, 0
        %v1600 = vsel %vm949, %v1573, 0
        %v1603 = vsel %vm949, %v1574, 0
        %v1606 = vsel %vm949, %v1575, 0
        %v1609 = vsel %vm1026, %v1576, 0
        %1611 = vmatprep.subr.mxu0 0.0
        %1612 = vmatpush1.msra.mxu0 %v1609
        %1613 = vmatprep.subr.mxu0 0.0
        %1614 = vmatpush1.msra.mxu0 0.0
        %1615 = vmatprep.subr.mxu0 0.0
        %1616 = vmatpush1.msra.mxu0 0.0
        %1617 = vmatprep.subr.mxu0 0.0
        %1618 = vmatpush1.msra.mxu0 0.0
        %1619 = vmatprep.subr.mxu0 0.0
        %1620 = vmatpush1.msra.mxu0 0.0
        %1621 = vmatprep.subr.mxu0 0.0
        %1622 = vmatpush1.msra.mxu0 0.0
        %1623 = vmatprep.subr.mxu0 0.0
        %1624 = vmatpush1.msra.mxu0 0.0
        %1625 = vmatprep.subr.mxu0 0.0
        %1626 = vmatpush1.msra.mxu0 0.0
        %1627 = vmatprep.subr.mxu0 0.0
        %1628 = vmatpush1.msra.mxu0 0.0
        %1629 = vmatprep.subr.mxu0 0.0
        %1630 = vmatpush1.msra.mxu0 0.0
        %1631 = vmatprep.subr.mxu0 0.0
        %1632 = vmatpush1.msra.mxu0 0.0
        %1633 = vmatprep.subr.mxu0 0.0
        %1634 = vmatpush1.msra.mxu0 0.0
        %1635 = vmatprep.subr.mxu0 0.0
        %1636 = vmatpush1.msra.mxu0 0.0
        %1637 = vmatprep.subr.mxu0 0.0
        %1638 = vmatpush1.msra.mxu0 0.0
        %1639 = vmatprep.subr.mxu0 0.0
        %1640 = vmatpush1.msra.mxu0 0.0
        %1641 = vmatprep.subr.mxu0 0.0
        %1642 = vmatpush1.msra.mxu0 0.0
        %1643 = vmatprep.subr.mxu0 0.0
        %1644 = vmatpush1.msra.mxu0 0.0
        %1645 = vmatprep.subr.mxu0 0.0
        %1646 = vmatpush1.msra.mxu0 0.0
        %1647 = vmatprep.subr.mxu0 0.0
        %1648 = vmatpush1.msra.mxu0 0.0
        %1649 = vmatprep.subr.mxu0 0.0
        %1650 = vmatpush1.msra.mxu0 0.0
        %1651 = vmatprep.subr.mxu0 0.0
        %1652 = vmatpush1.msra.mxu0 0.0
        %1653 = vmatprep.subr.mxu0 0.0
        %1654 = vmatpush1.msra.mxu0 0.0
        %1655 = vmatprep.subr.mxu0 0.0
        %1656 = vmatpush1.msra.mxu0 0.0
        %1657 = vmatprep.subr.mxu0 0.0
        %1658 = vmatpush1.msra.mxu0 0.0
        %1659 = vmatprep.subr.mxu0 0.0
        %1660 = vmatpush1.msra.mxu0 0.0
        %1661 = vmatprep.subr.mxu0 0.0
        %1662 = vmatpush1.msra.mxu0 0.0
        %1663 = vmatprep.subr.mxu0 0.0
        %1664 = vmatpush1.msra.mxu0 0.0
        %1665 = vmatprep.subr.mxu0 0.0
        %1666 = vmatpush1.msra.mxu0 0.0
        %1667 = vmatprep.subr.mxu0 0.0
        %1668 = vmatpush1.msra.mxu0 0.0
        %1669 = vmatprep.subr.mxu0 0.0
        %1670 = vmatpush1.msra.mxu0 0.0
        %1671 = vmatprep.subr.mxu0 0.0
        %1672 = vmatpush1.msra.mxu0 0.0
        %1673 = vmatprep.subr.mxu0 0.0
        %1674 = vmatpush1.msra.mxu0 0.0
        %1675 = vmatprep.mubr.f32.mxu0 0.0
        %1676 = vmatmul.mubr.f32.gmra.mrb[0].mxu0 %v1585
        %v1677 = vpop.f32.mrb[0].mxu0
        %v1678 = vadd.f32 %v1582, %v1677
        %v1679 = vpop.f32.mrb[0].mxu0
        %1680 = vmatprep.mubr.f32.mxu0 0.0
        %1681 = vmatmul.mubr.f32.gmra.mrb[0].mxu0 %v1588
        %v1682 = vpop.f32.mrb[0].mxu0
        %v1683 = vadd.f32 %v1582, %v1682
        %v1684 = vpop.f32.mrb[0].mxu0
        %1685 = vmatprep.mubr.f32.mxu0 0.0
        %1686 = vmatmul.mubr.f32.gmra.mrb[0].mxu0 %v1591
        %v1687 = vpop.f32.mrb[0].mxu0
        %v1688 = vadd.f32 %v1582, %v1687
        %v1689 = vpop.f32.mrb[0].mxu0
        %1690 = vmatprep.mubr.f32.mxu0 0.0
        %1691 = vmatmul.mubr.f32.gmra.mrb[0].mxu0 %v1594
        %v1692 = vpop.f32.mrb[0].mxu0
        %v1693 = vadd.f32 %v1582, %v1692
        %v1694 = vpop.f32.mrb[0].mxu0
        %1695 = vmatprep.mubr.f32.mxu0 0.0
        %1696 = vmatmul.mubr.f32.gmra.mrb[0].mxu0 %v1597
        %v1697 = vpop.f32.mrb[0].mxu0
        %v1698 = vadd.f32 %v1582, %v1697
        %v1699 = vpop.f32.mrb[0].mxu0
        %1700 = vmatprep.mubr.f32.mxu0 0.0
        %1701 = vmatmul.mubr.f32.gmra.mrb[0].mxu0 %v1600
        %v1702 = vpop.f32.mrb[0].mxu0
        %v1703 = vadd.f32 %v1582, %v1702
        %v1704 = vpop.f32.mrb[0].mxu0
        %1705 = vmatprep.mubr.f32.mxu0 0.0
        %1706 = vmatmul.mubr.f32.gmra.mrb[0].mxu0 %v1603
        %v1707 = vpop.f32.mrb[0].mxu0
        %v1708 = vadd.f32 %v1582, %v1707
        %v1709 = vpop.f32.mrb[0].mxu0
        %1710 = vmatprep.mubr.f32.mxu0 0.0
        %1711 = vmatmul.mubr.f32.gmra.mrb[0].mxu0 %v1606
        %v1712 = vpop.f32.mrb[0].mxu0
        %v1713 = vadd.f32 %v1582, %v1712
        %v1714 = vpop.f32.mrb[0].mxu0
        %1715 = vdwg.mxu0
        %v1716 = vadd.f32 %v1528, %v1678
        %v1717 = vadd.f32 %v1533, %v1683
        %v1718 = vadd.f32 %v1538, %v1688
        %v1719 = vadd.f32 %v1543, %v1693
        %v1720 = vadd.f32 %v1548, %v1698
        %v1721 = vadd.f32 %v1553, %v1703
        %v1722 = vadd.f32 %v1558, %v1708
        %v1723 = vadd.f32 %v1563, %v1713
        %v1724 = vmax.f32 %v1716, 0.0
        %v1725 = vmax.f32 %v1717, 0.0
        %v1726 = vmax.f32 %v1718, 0.0
        %v1727 = vmax.f32 %v1719, 0.0
        %v1728 = vmax.f32 %v1720, 0.0
        %v1729 = vmax.f32 %v1721, 0.0
        %v1730 = vmax.f32 %v1722, 0.0
        %v1731 = vmax.f32 %v1723, 0.0
        %vm1732 = vcmask 130048
        %1733 = vst.msk [vmem:[%s339] sm:$0xff] %vm1732, %v1724
        %1734 = vst.msk [vmem:[%s339 + $0x8] sm:$0xff] %vm1732, %v1725
        %1735 = vst.msk [vmem:[%s339 + $0x10] sm:$0xff] %vm1732, %v1726
        %1736 = vst.msk [vmem:[%s339 + $0x18] sm:$0xff] %vm1732, %v1727
        %1737 = vst.msk [vmem:[%s339 + $0x20] sm:$0xff] %vm1732, %v1728
        %1738 = vst.msk [vmem:[%s339 + $0x28] sm:$0xff] %vm1732, %v1729
        %1739 = vst.msk [vmem:[%s339 + $0x30] sm:$0xff] %vm1732, %v1730
        %1740 = vst.msk [vmem:[%s339 + $0x38] sm:$0xff] %vm1732, %v1731
        %s1741 = sand.u32 %s239, 1
        %s1742 = scalar_lea.sflag [#allocation4], %s1741
        %s1743 = sand.u32 %s239, 1
        %s1744 = smul.addr %s1743, 64
        %s1745 = scalar_lea.vmem [#allocation3], %s1744
        // Predicated region
        $region61: #{tpu_custom_call.1} parent=55 // pred_check
          %p1746 = pneg %p249
        $region62: #{tpu_custom_call.1} parent=55 // pred_check_branch
          %1748 = sbr.rel (%p1746) target = $region64
        $region63: #{tpu_custom_call.1} parent=55 // pred_region
          %s1749 = smul.u32 4, %s28
          %s1751 = ssub.s32 1024, 1024
          %1752 = vsyncadd %s1742, %s1751
          %s1753 = smul.addr %s1749, 2
          %s1754 = smul.addr %s27, 32
          %s1755 = sadd.s32 %s1753, %s1754
          %s1756 = smul.addr %s1755, 128
          %s1757 = scalar_lea.hbm %s9, %s1756
          %s1758 = sshll.u32 %s1745, 4
          %s1759 = int_to_ptr.vmem [resolvable:$true] %s1758
          %1764 = dma.vmem_to_hbm [thread:$0]  %s1759, 1024, %s1757, %s1742, 128, 128, 8
        $region64: #{tpu_custom_call.1} parent=55 // pred_fallthru
          _
      $region56: #{tpu_custom_call.1} parent=5 // pred_fallthru
        _
      %p1765 = scmp.le.s32.totalorder 2, %s18
      // Predicated region
      $region65: #{tpu_custom_call.1} parent=5 // pred_check
        %p1766 = pneg %p1765
      $region66: #{tpu_custom_call.1} parent=5 // pred_check_branch
        %1768 = sbr.rel (%p1766) target = $region68
      $region67: #{tpu_custom_call.1} parent=5 // pred_region
        %s1769 = ssub.s32 %s18, 2
        // Predicated region
        $region69: #{tpu_custom_call.1} parent=67 // pred_check
          %p1770 = pneg %p255
        $region70: #{tpu_custom_call.1} parent=67 // pred_check_branch
          %1772 = sbr.rel (%p1770) target = $region72
        $region71: #{tpu_custom_call.1} parent=67 // pred_region
          %s1773 = sand.u32 %s240, 1
          %s1774 = scalar_lea.sflag [#allocation4], %s1773
          %s1775 = sand.u32 %s240, 1
          %s1776 = smul.addr %s1775, 64
          %s1777 = scalar_lea.vmem [#allocation3], %s1776
          %1778 = dma.done %s1774, 1024
        $region72: #{tpu_custom_call.1} parent=67 // pred_fallthru
          _
      $region68: #{tpu_custom_call.1} parent=5 // pred_fallthru
        _
    $region6: #{tpu_custom_call.1} parent=1 // loop_footer
      %s22 = sadd.s32 1, %s18
    $region7: #{tpu_custom_call.1} parent=1 // loop_footer_branch
      %17 = sbr.rel target = $region3
    $region8: #{tpu_custom_call.1} parent=1 // loop_exit
      _
    %1779 = vsyncpa [#allocation4], 1
    %s1780 = scalar_lea.sflag [#allocation4], 1
    %1781 = vsyncpa %s1780, 1

</llo_original>
